<compile_context>
chip_gen: v7x
topology: tpu7x:2x2x1
jax: 0.10.0
libtpu: 0.0.40
codegen_flags: <defaults>
</compile_context>

<pallas_src>
import functools
import math

import jax
import jax.numpy as jnp
from jax import lax
from jax.experimental import pallas as pl
from jax.experimental.pallas import tpu as pltpu

LN_EPS = 1e-5   # torch.nn.LayerNorm default eps
GN_EPS = 1e-5   # torch.nn.GroupNorm default eps
F32 = jnp.float32
BF16 = jnp.bfloat16


# ----------------------------------------------------------------------------
# helpers traced into the kernel body (elementwise math in f32)
# ----------------------------------------------------------------------------
def _layernorm(x, w, b):
    mu = jnp.mean(x, axis=-1, keepdims=True)
    var = jnp.mean((x - mu) ** 2, axis=-1, keepdims=True)
    return (x - mu) * lax.rsqrt(var + LN_EPS) * w + b


def _gelu_exact(x):
    # nn.GELU() default (exact erf form).
    return 0.5 * x * (1.0 + lax.erf(x * (1.0 / math.sqrt(2.0))))


def _swish(x):
    return x * jax.nn.sigmoid(x)


# ----------------------------------------------------------------------------
# fused forward kernel: patch-embed + L retention blocks + final LayerNorm
# ----------------------------------------------------------------------------
def retnet_fused_kernel(patches_ref, pos_ref, pw_ref, pb_ref, decay_ref,
                        ln1w_ref, ln1b_ref, wqkvg_ref, wo_ref,
                        gnw_ref, gnb_ref, ln2w_ref, ln2b_ref,
                        w1_ref, b1_ref, w2_ref, b2_ref,
                        normw_ref, normb_ref,
                        out_ref, hs_ref,
                        *, num_layers, num_heads, hidden, v_dim, tokens_blk):
    nh, H, V = num_heads, hidden, v_dim
    hd = H // nh
    hv = V // nh
    TB = tokens_blk                                  # tokens in this block

    # ---- patch embedding: conv(kernel=stride=patch) == linear on flattened
    # patches, fused with bias + positional-embedding add.
    x = (jnp.dot(patches_ref[...].astype(BF16), pw_ref[...],
                 preferred_element_type=F32)
         + pb_ref[...] + pos_ref[...])                           # (TB, H) f32

    for l in range(num_layers):                      # static unroll over layers
        # ---------------- multi-scale retention (pre-LN, residual) ---------
        xn = _layernorm(x, ln1w_ref[l], ln1b_ref[l])
        # single fused QKVG projection: (TB, H) @ (H, 2H+2V)
        qkvg = jnp.dot(xn.astype(BF16), wqkvg_ref[l],
                       preferred_element_type=F32)               # (TB, 2H+2V)
        q = qkvg[:, :H]
        k = qkvg[:, H:2 * H]
        v = qkvg[:, 2 * H:2 * H + V]
        g = qkvg[:, 2 * H + V:]

        # per-head retention (Q K^T * D) V with per-head GroupNorm; the decay
        # mask (with 1/sqrt(hd) scaling folded in, block-diagonal over the
        # batches packed into this block) comes from the wrapper.
        head_outs = []
        for h in range(nh):
            qh = q[:, h * hd:(h + 1) * hd]                       # (TB, hd)
            kh = k[:, h * hd:(h + 1) * hd]
            vh = v[:, h * hv:(h + 1) * hv]                       # (TB, hv)
            sh = jnp.einsum('nd,md->nm', qh.astype(BF16), kh.astype(BF16),
                            preferred_element_type=F32)          # (TB, TB)
            sh = sh * decay_ref[h]
            yh = jnp.dot(sh.astype(BF16), vh.astype(BF16),
                         preferred_element_type=F32)             # (TB, hv)
            # GroupNorm(num_groups=heads): per-token, per-head normalization
            mu = jnp.mean(yh, axis=-1, keepdims=True)
            var = jnp.mean((yh - mu) ** 2, axis=-1, keepdims=True)
            head_outs.append((yh - mu) * lax.rsqrt(var + GN_EPS))

        yc = jnp.concatenate(head_outs, axis=-1)                 # (TB, V)
        yc = yc * gnw_ref[l] + gnb_ref[l]                        # lane-dense

        z = _swish(g) * yc                                       # gated output
        # single W_O projection on head-concatenated z: (TB, V) @ (V, H)
        ret = jnp.dot(z.astype(BF16), wo_ref[l],
                      preferred_element_type=F32)                # (TB, H)
        y1 = ret + x                                             # residual 1

        # ------------------------------- FFN --------------------------------
        yn2 = _layernorm(y1, ln2w_ref[l], ln2b_ref[l])
        h1 = _gelu_exact(jnp.dot(yn2.astype(BF16), w1_ref[l],
                                 preferred_element_type=F32) + b1_ref[l])
        x = (jnp.dot(h1.astype(BF16), w2_ref[l],
                     preferred_element_type=F32) + b2_ref[l] + y1)  # resid 2

        hs_ref[l] = x                                # per-layer hidden state

    out_ref[...] = _layernorm(x, normw_ref[...], normb_ref[...])


# ----------------------------------------------------------------------------
# wrapper-side preparation
# ----------------------------------------------------------------------------
def _tensorcores_per_chip():
    # v7x has 2 TensorCores per chip; v5e/v6e are single-TC.
    try:
        kind = jax.devices()[0].device_kind.lower()
    except Exception:
        return 1
    return 2 if "v7" in kind else 1


def build_decay_mask(num_heads, tokens, batches_per_block, head_size):
    """D[h, n, m] = gamma_h**(n-m) for n>=m else 0, with the 1/sqrt(head_size)
    Q.K^T scaling folded in; block-diagonal over the batches packed into one
    activation block so retention never mixes sequences."""
    gammas = 1.0 - jnp.exp(
        jnp.linspace(math.log(1.0 / 32.0), math.log(1.0 / 512.0), num_heads))
    idx = jnp.arange(tokens)
    diff = idx[:, None] - idx[None, :]                       # (T, T)
    causal = diff >= 0
    expo = jnp.maximum(diff, 0).astype(F32)
    d = jnp.where(causal[None],
                  gammas[:, None, None].astype(F32) ** expo[None], 0.0)
    d = d * (float(head_size) ** -0.5)
    if batches_per_block > 1:
        eye = jnp.eye(batches_per_block, dtype=F32)
        d = (eye[None, :, None, :, None] * d[:, None, :, None, :]).reshape(
            num_heads, batches_per_block * tokens, batches_per_block * tokens)
    return d.astype(F32)


def extract_patches(x, patch):
    # x: NCHW -> (B, T, C*ph*pw); pure data movement, done in plain JAX.
    B, C, H, W = x.shape
    gh, gw = H // patch, W // patch
    x = x.reshape(B, C, gh, patch, gw, patch)
    x = x.transpose(0, 2, 4, 1, 3, 5)
    return x.reshape(B, gh * gw, C * patch * patch)


def init_params(key, *, in_channels, patch_size, n_patches, hidden, ffn,
                num_layers, num_heads, double_v_dim):
    v_dim = hidden * 2 if double_v_dim else hidden
    patch_dim = in_channels * patch_size * patch_size
    keys = iter(jax.random.split(key, 4 + 8 * num_layers))

    def nrm(shape, scale):
        return scale * jax.random.normal(next(keys), shape, F32)

    params = {
        "patch_w": nrm((patch_dim, hidden), 1.0 / math.sqrt(patch_dim)),
        "patch_b": jnp.zeros((1, hidden), F32),
        "pos": nrm((n_patches, hidden), 0.02),
        "norm_w": jnp.ones((1, hidden), F32),
        "norm_b": jnp.zeros((1, hidden), F32),
        "blocks": [],
    }
    for _ in range(num_layers):
        params["blocks"].append({
            "ln1_w": jnp.ones((1, hidden), F32),
            "ln1_b": jnp.zeros((1, hidden), F32),
            "wq": nrm((hidden, hidden), 1.0 / hidden),
            "wk": nrm((hidden, hidden), 1.0 / hidden),
            "wv": nrm((hidden, v_dim), 1.0 / hidden),
            "wg": nrm((hidden, v_dim), 1.0 / hidden),
            "wo": nrm((v_dim, hidden), 1.0 / hidden),
            "gn_w": jnp.ones((v_dim,), F32),
            "gn_b": jnp.zeros((v_dim,), F32),
            "ln2_w": jnp.ones((1, hidden), F32),
            "ln2_b": jnp.zeros((1, hidden), F32),
            "w1": nrm((hidden, ffn), 1.0 / math.sqrt(hidden)),
            "b1": jnp.zeros((1, ffn), F32),
            "w2": nrm((ffn, hidden), 1.0 / math.sqrt(ffn)),
            "b2": jnp.zeros((1, hidden), F32),
        })
    return params


def prepare_kernel_params(params, *, v_dim):
    """Stack layer weights along a leading L axis, fuse QKVG columns, and
    pre-cast matmul weights to bf16 (all wrapper-side, done once)."""
    blocks = params["blocks"]

    def stk(name):
        return jnp.stack([b[name] for b in blocks], axis=0)

    wqkvg = jnp.stack(
        [jnp.concatenate([b["wq"], b["wk"], b["wv"], b["wg"]], axis=1)
         for b in blocks], axis=0)                       # (L, H, 2H+2V)
    return {
        "num_layers": len(blocks),
        "ln1_w": stk("ln1_w"), "ln1_b": stk("ln1_b"),            # (L,1,H)
        "wqkvg": wqkvg.astype(BF16),
        "wo": stk("wo").astype(BF16),                            # (L,V,H)
        "gn_w": jnp.stack([b["gn_w"].reshape(1, v_dim) for b in blocks], 0),
        "gn_b": jnp.stack([b["gn_b"].reshape(1, v_dim) for b in blocks], 0),
        "ln2_w": stk("ln2_w"), "ln2_b": stk("ln2_b"),
        "w1": stk("w1").astype(BF16), "b1": stk("b1"),           # (L,H,F),(L,1,F)
        "w2": stk("w2").astype(BF16), "b2": stk("b2"),           # (L,F,H),(L,1,H)
    }


# ----------------------------------------------------------------------------
# single-pallas_call forward
# ----------------------------------------------------------------------------
def retnet_forward(x, params, kparams, *, patch_size, num_heads, hidden, v_dim):
    B = x.shape[0]
    patches = extract_patches(x, patch_size)                 # (B, T, pd)
    T, PD = patches.shape[1], patches.shape[2]
    patches_flat = patches.reshape(B * T, PD)                # token-major slab
    pos_tiled = jnp.tile(params["pos"], (B, 1))              # (B*T, H)

    L = kparams["num_layers"]
    H, V = hidden, v_dim
    F = kparams["w1"].shape[-1]
    Dall = 2 * H + 2 * V

    # grid strategy: single step on single-TC chips (v5e/v6e); one batch per
    # TensorCore on v7x (grid over batch, "parallel").
    if _tensorcores_per_chip() >= 2 and B > 1:
        grid, nb = (B,), 1
    else:
        grid, nb = (1,), B
    tb = nb * T                                              # tokens per block

    decay = build_decay_mask(num_heads, T, nb, H // num_heads)  # (nh, tb, tb)

    def cst(shape):
        zeros = (0,) * len(shape)
        return pl.BlockSpec(shape, lambda b, _z=zeros: _z)

    kernel = functools.partial(
        retnet_fused_kernel, num_layers=L, num_heads=num_heads,
        hidden=H, v_dim=V, tokens_blk=tb)

    out, hs = pl.pallas_call(
        kernel,
        out_shape=(jax.ShapeDtypeStruct((B * T, H), F32),
                   jax.ShapeDtypeStruct((L, B * T, H), F32)),
        grid=grid,
        in_specs=[
            pl.BlockSpec((tb, PD), lambda b: (b, 0)),        # patches
            pl.BlockSpec((tb, H), lambda b: (b, 0)),         # pos (tiled)
            cst((PD, H)), cst((1, H)),                       # patch w / b
            cst((num_heads, tb, tb)),                        # decay mask
            cst((L, 1, H)), cst((L, 1, H)),                  # ln1 w / b
            cst((L, H, Dall)),                               # fused QKVG
            cst((L, V, H)),                                  # W_O
            cst((L, 1, V)), cst((L, 1, V)),                  # groupnorm w / b
            cst((L, 1, H)), cst((L, 1, H)),                  # ln2 w / b
            cst((L, H, F)), cst((L, 1, F)),                  # ffn w1 / b1
            cst((L, F, H)), cst((L, 1, H)),                  # ffn w2 / b2
            cst((1, H)), cst((1, H)),                        # final LN w / b
        ],
        out_specs=(pl.BlockSpec((tb, H), lambda b: (b, 0)),
                   pl.BlockSpec((L, tb, H), lambda b: (0, b, 0))),
        compiler_params=pltpu.CompilerParams(
            dimension_semantics=("parallel",),
            vmem_limit_bytes=64 * 1024 * 1024),
    )(patches_flat, pos_tiled,
      params["patch_w"].astype(BF16), params["patch_b"], decay,
      kparams["ln1_w"], kparams["ln1_b"], kparams["wqkvg"], kparams["wo"],
      kparams["gn_w"], kparams["gn_b"], kparams["ln2_w"], kparams["ln2_b"],
      kparams["w1"], kparams["b1"], kparams["w2"], kparams["b2"],
      params["norm_w"], params["norm_b"])

    hidden_states_out = [hs[l].reshape(B, T, H) for l in range(L)]
    return out.reshape(B, T, H), hidden_states_out


# ----------------------------------------------------------------------------
if __name__ == "__main__":
    # small RetNet config (spatial_dims=2 chosen for small shapes),
    # dims kept lane-friendly (hidden / v_dim / ffn multiples of 128).
    B, C, IMG, PATCH = 2, 4, 16, 4
    HIDDEN, HEADS, FFN, LAYERS = 128, 4, 256, 2
    DOUBLE_V = False
    T = (IMG // PATCH) ** 2                      # 16 tokens
    V_DIM = HIDDEN * 2 if DOUBLE_V else HIDDEN

    key = jax.random.PRNGKey(0)
    kx, kp = jax.random.split(key)
    x = jax.random.normal(kx, (B, C, IMG, IMG), F32)

    params = init_params(kp, in_channels=C, patch_size=PATCH, n_patches=T,
                         hidden=HIDDEN, ffn=FFN, num_layers=LAYERS,
                         num_heads=HEADS, double_v_dim=DOUBLE_V)
    kparams = prepare_kernel_params(params, v_dim=V_DIM)

    out, hidden_states = retnet_forward(x, params, kparams,
                                        patch_size=PATCH, num_heads=HEADS,
                                        hidden=HIDDEN, v_dim=V_DIM)

    jax.block_until_ready(out)
    for hs in hidden_states:
        jax.block_until_ready(hs)

    assert out.shape == (B, T, HIDDEN)
    assert len(hidden_states) == LAYERS
    assert all(hs.shape == (B, T, HIDDEN) for hs in hidden_states)
    assert bool(jnp.all(jnp.isfinite(out)))
    print("KERNEL_OK")
</pallas_src>

<mosaic_0001>
module attributes {stable_mosaic.version = 11 : i64} {
  func.func @retnet_fused_kernel(%arg0: i32, %arg1: memref<32x64xf32, #tpu.memory_space<vmem>>, %arg2: memref<32x128xf32, #tpu.memory_space<vmem>>, %arg3: memref<64x128xbf16, #tpu.memory_space<vmem>>, %arg4: memref<1x128xf32, #tpu.memory_space<vmem>>, %arg5: memref<4x32x32xf32, #tpu.memory_space<vmem>>, %arg6: memref<2x1x128xf32, #tpu.memory_space<vmem>>, %arg7: memref<2x1x128xf32, #tpu.memory_space<vmem>>, %arg8: memref<2x128x512xbf16, #tpu.memory_space<vmem>>, %arg9: memref<2x128x128xbf16, #tpu.memory_space<vmem>>, %arg10: memref<2x1x128xf32, #tpu.memory_space<vmem>>, %arg11: memref<2x1x128xf32, #tpu.memory_space<vmem>>, %arg12: memref<2x1x128xf32, #tpu.memory_space<vmem>>, %arg13: memref<2x1x128xf32, #tpu.memory_space<vmem>>, %arg14: memref<2x128x256xbf16, #tpu.memory_space<vmem>>, %arg15: memref<2x1x256xf32, #tpu.memory_space<vmem>>, %arg16: memref<2x256x128xbf16, #tpu.memory_space<vmem>>, %arg17: memref<2x1x128xf32, #tpu.memory_space<vmem>>, %arg18: memref<1x128xf32, #tpu.memory_space<vmem>>, %arg19: memref<1x128xf32, #tpu.memory_space<vmem>>, %arg20: memref<32x128xf32, #tpu.memory_space<vmem>>, %arg21: memref<2x32x128xf32, #tpu.memory_space<vmem>>) attributes {dimension_semantics = [#tpu.dimension_semantics<parallel>], iteration_bounds = array<i64: 1>, scalar_prefetch = 0 : i64, scratch_operands = 0 : i64, tpu.core_type = #tpu.core_type<tc>, window_params = [{transform_indices = @transform_0, window_bounds = array<i64: 32, 64>}, {transform_indices = @transform_1, window_bounds = array<i64: 32, 128>}, {pipeline_mode = #tpu.pipeline_mode<synchronous>, transform_indices = @transform_2, window_bounds = array<i64: 64, 128>}, {pipeline_mode = #tpu.pipeline_mode<synchronous>, transform_indices = @transform_3, window_bounds = array<i64: 1, 128>}, {pipeline_mode = #tpu.pipeline_mode<synchronous>, transform_indices = @transform_4, window_bounds = array<i64: 4, 32, 32>}, {pipeline_mode = #tpu.pipeline_mode<synchronous>, transform_indices = @transform_5, window_bounds = array<i64: 2, 1, 128>}, {pipeline_mode = #tpu.pipeline_mode<synchronous>, transform_indices = @transform_6, window_bounds = array<i64: 2, 1, 128>}, {pipeline_mode = #tpu.pipeline_mode<synchronous>, transform_indices = @transform_7, window_bounds = array<i64: 2, 128, 512>}, {pipeline_mode = #tpu.pipeline_mode<synchronous>, transform_indices = @transform_8, window_bounds = array<i64: 2, 128, 128>}, {pipeline_mode = #tpu.pipeline_mode<synchronous>, transform_indices = @transform_9, window_bounds = array<i64: 2, 1, 128>}, {pipeline_mode = #tpu.pipeline_mode<synchronous>, transform_indices = @transform_10, window_bounds = array<i64: 2, 1, 128>}, {pipeline_mode = #tpu.pipeline_mode<synchronous>, transform_indices = @transform_11, window_bounds = array<i64: 2, 1, 128>}, {pipeline_mode = #tpu.pipeline_mode<synchronous>, transform_indices = @transform_12, window_bounds = array<i64: 2, 1, 128>}, {pipeline_mode = #tpu.pipeline_mode<synchronous>, transform_indices = @transform_13, window_bounds = array<i64: 2, 128, 256>}, {pipeline_mode = #tpu.pipeline_mode<synchronous>, transform_indices = @transform_14, window_bounds = array<i64: 2, 1, 256>}, {pipeline_mode = #tpu.pipeline_mode<synchronous>, transform_indices = @transform_15, window_bounds = array<i64: 2, 256, 128>}, {pipeline_mode = #tpu.pipeline_mode<synchronous>, transform_indices = @transform_16, window_bounds = array<i64: 2, 1, 128>}, {pipeline_mode = #tpu.pipeline_mode<synchronous>, transform_indices = @transform_17, window_bounds = array<i64: 1, 128>}, {pipeline_mode = #tpu.pipeline_mode<synchronous>, transform_indices = @transform_18, window_bounds = array<i64: 1, 128>}, {transform_indices = @transform_19, window_bounds = array<i64: 32, 128>}, {transform_indices = @transform_20, window_bounds = array<i64: 2, 32, 128>}]} {
    %c0 = arith.constant 0 : index
    %c0_0 = arith.constant 0 : index
    %0 = vector.load %arg1[%c0, %c0_0] : memref<32x64xf32, #tpu.memory_space<vmem>>, vector<32x64xf32>
    %1 = arith.truncf %0 : vector<32x64xf32> to vector<32x64xbf16>
    %c0_1 = arith.constant 0 : index
    %c0_2 = arith.constant 0 : index
    %2 = vector.load %arg3[%c0_1, %c0_2] : memref<64x128xbf16, #tpu.memory_space<vmem>>, vector<64x128xbf16>
    %cst = arith.constant dense<0.000000e+00> : vector<32x128xf32>
    %3 = tpu.matmul %1, %2, %cst {dimension_numbers = #tpu.dot_dimension_numbers<[1], [0], [0], [1], [0, 0, 1, 1], [], []>} : vector<32x64xbf16>, vector<64x128xbf16>, vector<32x128xf32> -> vector<32x128xf32>
    %c0_3 = arith.constant 0 : index
    %c0_4 = arith.constant 0 : index
    %4 = vector.load %arg4[%c0_3, %c0_4] : memref<1x128xf32, #tpu.memory_space<vmem>>, vector<1x128xf32>
    %5 = vector.broadcast %4 : vector<1x128xf32> to vector<32x128xf32>
    %6 = arith.addf %3, %5 : vector<32x128xf32>
    %c0_5 = arith.constant 0 : index
    %c0_6 = arith.constant 0 : index
    %7 = vector.load %arg2[%c0_5, %c0_6] : memref<32x128xf32, #tpu.memory_space<vmem>>, vector<32x128xf32>
    %8 = arith.addf %6, %7 : vector<32x128xf32>
    %c0_7 = arith.constant 0 : index
    %c0_8 = arith.constant 0 : index
    %c0_9 = arith.constant 0 : index
    %9 = vector.load %arg6[%c0_7, %c0_8, %c0_9] : memref<2x1x128xf32, #tpu.memory_space<vmem>>, vector<1x1x128xf32>
    %10 = vector.shape_cast %9 : vector<1x1x128xf32> to vector<1x128xf32>
    %c0_10 = arith.constant 0 : index
    %c0_11 = arith.constant 0 : index
    %c0_12 = arith.constant 0 : index
    %11 = vector.load %arg7[%c0_10, %c0_11, %c0_12] : memref<2x1x128xf32, #tpu.memory_space<vmem>>, vector<1x1x128xf32>
    %12 = vector.shape_cast %11 : vector<1x1x128xf32> to vector<1x128xf32>
    %cst_13 = arith.constant dense<0.000000e+00> : vector<32xf32>
    %13 = vector.multi_reduction <add>, %8, %cst_13 [1] : vector<32x128xf32> to vector<32xf32>
    %14 = vector.shape_cast %13 : vector<32xf32> to vector<32x1xf32>
    %cst_14 = arith.constant 1.280000e+02 : f32
    %15 = vector.broadcast %cst_14 : f32 to vector<32x1xf32>
    %16 = arith.divf %14, %15 : vector<32x1xf32>
    %17 = vector.broadcast %16 : vector<32x1xf32> to vector<32x128xf32>
    %18 = arith.subf %8, %17 : vector<32x128xf32>
    %19 = arith.mulf %18, %18 : vector<32x128xf32>
    %cst_15 = arith.constant dense<0.000000e+00> : vector<32xf32>
    %20 = vector.multi_reduction <add>, %19, %cst_15 [1] : vector<32x128xf32> to vector<32xf32>
    %21 = vector.shape_cast %20 : vector<32xf32> to vector<32x1xf32>
    %cst_16 = arith.constant 1.280000e+02 : f32
    %22 = vector.broadcast %cst_16 : f32 to vector<32x1xf32>
    %23 = arith.divf %21, %22 : vector<32x1xf32>
    %24 = vector.broadcast %16 : vector<32x1xf32> to vector<32x128xf32>
    %25 = arith.subf %8, %24 : vector<32x128xf32>
    %cst_17 = arith.constant 9.99999974E-6 : f32
    %26 = vector.broadcast %cst_17 : f32 to vector<32x1xf32>
    %27 = arith.addf %23, %26 : vector<32x1xf32>
    %28 = math.rsqrt %27 : vector<32x1xf32>
    %29 = vector.broadcast %28 : vector<32x1xf32> to vector<32x128xf32>
    %30 = arith.mulf %25, %29 : vector<32x128xf32>
    %31 = vector.broadcast %10 : vector<1x128xf32> to vector<32x128xf32>
    %32 = arith.mulf %30, %31 : vector<32x128xf32>
    %33 = vector.broadcast %12 : vector<1x128xf32> to vector<32x128xf32>
    %34 = arith.addf %32, %33 : vector<32x128xf32>
    %35 = arith.truncf %34 : vector<32x128xf32> to vector<32x128xbf16>
    %c0_18 = arith.constant 0 : index
    %c0_19 = arith.constant 0 : index
    %c0_20 = arith.constant 0 : index
    %36 = vector.load %arg8[%c0_18, %c0_19, %c0_20] : memref<2x128x512xbf16, #tpu.memory_space<vmem>>, vector<1x128x512xbf16>
    %37 = vector.shape_cast %36 : vector<1x128x512xbf16> to vector<128x512xbf16>
    %cst_21 = arith.constant dense<0.000000e+00> : vector<32x512xf32>
    %38 = tpu.matmul %35, %37, %cst_21 {dimension_numbers = #tpu.dot_dimension_numbers<[1], [0], [0], [1], [0, 0, 1, 1], [], []>} : vector<32x128xbf16>, vector<128x512xbf16>, vector<32x512xf32> -> vector<32x512xf32>
    %39 = vector.extract_strided_slice %38 {offsets = [0, 0], sizes = [32, 128], strides = [1, 1]} : vector<32x512xf32> to vector<32x128xf32>
    %40 = vector.extract_strided_slice %38 {offsets = [0, 128], sizes = [32, 128], strides = [1, 1]} : vector<32x512xf32> to vector<32x128xf32>
    %41 = vector.extract_strided_slice %38 {offsets = [0, 256], sizes = [32, 128], strides = [1, 1]} : vector<32x512xf32> to vector<32x128xf32>
    %42 = vector.extract_strided_slice %38 {offsets = [0, 384], sizes = [32, 128], strides = [1, 1]} : vector<32x512xf32> to vector<32x128xf32>
    %43 = vector.extract_strided_slice %39 {offsets = [0, 0], sizes = [32, 32], strides = [1, 1]} : vector<32x128xf32> to vector<32x32xf32>
    %44 = vector.extract_strided_slice %40 {offsets = [0, 0], sizes = [32, 32], strides = [1, 1]} : vector<32x128xf32> to vector<32x32xf32>
    %45 = vector.extract_strided_slice %41 {offsets = [0, 0], sizes = [32, 32], strides = [1, 1]} : vector<32x128xf32> to vector<32x32xf32>
    %46 = arith.truncf %43 : vector<32x32xf32> to vector<32x32xbf16>
    %47 = arith.truncf %44 : vector<32x32xf32> to vector<32x32xbf16>
    "tpu.trace_start"() <{level = 10 : i32, message = "nd,md->nm"}> : () -> ()
    %cst_22 = arith.constant dense<0.000000e+00> : vector<32x32xf32>
    %48 = tpu.matmul %46, %47, %cst_22 {dimension_numbers = #tpu.dot_dimension_numbers<[1], [1], [0], [0], [0, 0, 1, 0], [], []>} : vector<32x32xbf16>, vector<32x32xbf16>, vector<32x32xf32> -> vector<32x32xf32>
    "tpu.trace_stop"() : () -> ()
    %c0_23 = arith.constant 0 : index
    %c0_24 = arith.constant 0 : index
    %c0_25 = arith.constant 0 : index
    %49 = vector.load %arg5[%c0_23, %c0_24, %c0_25] : memref<4x32x32xf32, #tpu.memory_space<vmem>>, vector<1x32x32xf32>
    %50 = vector.shape_cast %49 : vector<1x32x32xf32> to vector<32x32xf32>
    %51 = arith.mulf %48, %50 : vector<32x32xf32>
    %52 = arith.truncf %51 : vector<32x32xf32> to vector<32x32xbf16>
    %53 = arith.truncf %45 : vector<32x32xf32> to vector<32x32xbf16>
    %cst_26 = arith.constant dense<0.000000e+00> : vector<32x32xf32>
    %54 = tpu.matmul %52, %53, %cst_26 {dimension_numbers = #tpu.dot_dimension_numbers<[1], [0], [0], [1], [0, 0, 1, 1], [], []>} : vector<32x32xbf16>, vector<32x32xbf16>, vector<32x32xf32> -> vector<32x32xf32>
    %cst_27 = arith.constant dense<0.000000e+00> : vector<32xf32>
    %55 = vector.multi_reduction <add>, %54, %cst_27 [1] : vector<32x32xf32> to vector<32xf32>
    %56 = vector.shape_cast %55 : vector<32xf32> to vector<32x1xf32>
    %cst_28 = arith.constant 3.200000e+01 : f32
    %57 = vector.broadcast %cst_28 : f32 to vector<32x1xf32>
    %58 = arith.divf %56, %57 : vector<32x1xf32>
    %59 = vector.broadcast %58 : vector<32x1xf32> to vector<32x32xf32>
    %60 = arith.subf %54, %59 : vector<32x32xf32>
    %61 = arith.mulf %60, %60 : vector<32x32xf32>
    %cst_29 = arith.constant dense<0.000000e+00> : vector<32xf32>
    %62 = vector.multi_reduction <add>, %61, %cst_29 [1] : vector<32x32xf32> to vector<32xf32>
    %63 = vector.shape_cast %62 : vector<32xf32> to vector<32x1xf32>
    %cst_30 = arith.constant 3.200000e+01 : f32
    %64 = vector.broadcast %cst_30 : f32 to vector<32x1xf32>
    %65 = arith.divf %63, %64 : vector<32x1xf32>
    %66 = vector.broadcast %58 : vector<32x1xf32> to vector<32x32xf32>
    %67 = arith.subf %54, %66 : vector<32x32xf32>
    %cst_31 = arith.constant 9.99999974E-6 : f32
    %68 = vector.broadcast %cst_31 : f32 to vector<32x1xf32>
    %69 = arith.addf %65, %68 : vector<32x1xf32>
    %70 = math.rsqrt %69 : vector<32x1xf32>
    %71 = vector.broadcast %70 : vector<32x1xf32> to vector<32x32xf32>
    %72 = arith.mulf %67, %71 : vector<32x32xf32>
    %73 = vector.extract_strided_slice %39 {offsets = [0, 32], sizes = [32, 32], strides = [1, 1]} : vector<32x128xf32> to vector<32x32xf32>
    %74 = vector.extract_strided_slice %40 {offsets = [0, 32], sizes = [32, 32], strides = [1, 1]} : vector<32x128xf32> to vector<32x32xf32>
    %75 = vector.extract_strided_slice %41 {offsets = [0, 32], sizes = [32, 32], strides = [1, 1]} : vector<32x128xf32> to vector<32x32xf32>
    %76 = arith.truncf %73 : vector<32x32xf32> to vector<32x32xbf16>
    %77 = arith.truncf %74 : vector<32x32xf32> to vector<32x32xbf16>
    "tpu.trace_start"() <{level = 10 : i32, message = "nd,md->nm"}> : () -> ()
    %cst_32 = arith.constant dense<0.000000e+00> : vector<32x32xf32>
    %78 = tpu.matmul %76, %77, %cst_32 {dimension_numbers = #tpu.dot_dimension_numbers<[1], [1], [0], [0], [0, 0, 1, 0], [], []>} : vector<32x32xbf16>, vector<32x32xbf16>, vector<32x32xf32> -> vector<32x32xf32>
    "tpu.trace_stop"() : () -> ()
    %c1 = arith.constant 1 : index
    %c0_33 = arith.constant 0 : index
    %c0_34 = arith.constant 0 : index
    %79 = vector.load %arg5[%c1, %c0_33, %c0_34] : memref<4x32x32xf32, #tpu.memory_space<vmem>>, vector<1x32x32xf32>
    %80 = vector.shape_cast %79 : vector<1x32x32xf32> to vector<32x32xf32>
    %81 = arith.mulf %78, %80 : vector<32x32xf32>
    %82 = arith.truncf %81 : vector<32x32xf32> to vector<32x32xbf16>
    %83 = arith.truncf %75 : vector<32x32xf32> to vector<32x32xbf16>
    %cst_35 = arith.constant dense<0.000000e+00> : vector<32x32xf32>
    %84 = tpu.matmul %82, %83, %cst_35 {dimension_numbers = #tpu.dot_dimension_numbers<[1], [0], [0], [1], [0, 0, 1, 1], [], []>} : vector<32x32xbf16>, vector<32x32xbf16>, vector<32x32xf32> -> vector<32x32xf32>
    %cst_36 = arith.constant dense<0.000000e+00> : vector<32xf32>
    %85 = vector.multi_reduction <add>, %84, %cst_36 [1] : vector<32x32xf32> to vector<32xf32>
    %86 = vector.shape_cast %85 : vector<32xf32> to vector<32x1xf32>
    %cst_37 = arith.constant 3.200000e+01 : f32
    %87 = vector.broadcast %cst_37 : f32 to vector<32x1xf32>
    %88 = arith.divf %86, %87 : vector<32x1xf32>
    %89 = vector.broadcast %88 : vector<32x1xf32> to vector<32x32xf32>
    %90 = arith.subf %84, %89 : vector<32x32xf32>
    %91 = arith.mulf %90, %90 : vector<32x32xf32>
    %cst_38 = arith.constant dense<0.000000e+00> : vector<32xf32>
    %92 = vector.multi_reduction <add>, %91, %cst_38 [1] : vector<32x32xf32> to vector<32xf32>
    %93 = vector.shape_cast %92 : vector<32xf32> to vector<32x1xf32>
    %cst_39 = arith.constant 3.200000e+01 : f32
    %94 = vector.broadcast %cst_39 : f32 to vector<32x1xf32>
    %95 = arith.divf %93, %94 : vector<32x1xf32>
    %96 = vector.broadcast %88 : vector<32x1xf32> to vector<32x32xf32>
    %97 = arith.subf %84, %96 : vector<32x32xf32>
    %cst_40 = arith.constant 9.99999974E-6 : f32
    %98 = vector.broadcast %cst_40 : f32 to vector<32x1xf32>
    %99 = arith.addf %95, %98 : vector<32x1xf32>
    %100 = math.rsqrt %99 : vector<32x1xf32>
    %101 = vector.broadcast %100 : vector<32x1xf32> to vector<32x32xf32>
    %102 = arith.mulf %97, %101 : vector<32x32xf32>
    %103 = vector.extract_strided_slice %39 {offsets = [0, 64], sizes = [32, 32], strides = [1, 1]} : vector<32x128xf32> to vector<32x32xf32>
    %104 = vector.extract_strided_slice %40 {offsets = [0, 64], sizes = [32, 32], strides = [1, 1]} : vector<32x128xf32> to vector<32x32xf32>
    %105 = vector.extract_strided_slice %41 {offsets = [0, 64], sizes = [32, 32], strides = [1, 1]} : vector<32x128xf32> to vector<32x32xf32>
    %106 = arith.truncf %103 : vector<32x32xf32> to vector<32x32xbf16>
    %107 = arith.truncf %104 : vector<32x32xf32> to vector<32x32xbf16>
    "tpu.trace_start"() <{level = 10 : i32, message = "nd,md->nm"}> : () -> ()
    %cst_41 = arith.constant dense<0.000000e+00> : vector<32x32xf32>
    %108 = tpu.matmul %106, %107, %cst_41 {dimension_numbers = #tpu.dot_dimension_numbers<[1], [1], [0], [0], [0, 0, 1, 0], [], []>} : vector<32x32xbf16>, vector<32x32xbf16>, vector<32x32xf32> -> vector<32x32xf32>
    "tpu.trace_stop"() : () -> ()
    %c2 = arith.constant 2 : index
    %c0_42 = arith.constant 0 : index
    %c0_43 = arith.constant 0 : index
    %109 = vector.load %arg5[%c2, %c0_42, %c0_43] : memref<4x32x32xf32, #tpu.memory_space<vmem>>, vector<1x32x32xf32>
    %110 = vector.shape_cast %109 : vector<1x32x32xf32> to vector<32x32xf32>
    %111 = arith.mulf %108, %110 : vector<32x32xf32>
    %112 = arith.truncf %111 : vector<32x32xf32> to vector<32x32xbf16>
    %113 = arith.truncf %105 : vector<32x32xf32> to vector<32x32xbf16>
    %cst_44 = arith.constant dense<0.000000e+00> : vector<32x32xf32>
    %114 = tpu.matmul %112, %113, %cst_44 {dimension_numbers = #tpu.dot_dimension_numbers<[1], [0], [0], [1], [0, 0, 1, 1], [], []>} : vector<32x32xbf16>, vector<32x32xbf16>, vector<32x32xf32> -> vector<32x32xf32>
    %cst_45 = arith.constant dense<0.000000e+00> : vector<32xf32>
    %115 = vector.multi_reduction <add>, %114, %cst_45 [1] : vector<32x32xf32> to vector<32xf32>
    %116 = vector.shape_cast %115 : vector<32xf32> to vector<32x1xf32>
    %cst_46 = arith.constant 3.200000e+01 : f32
    %117 = vector.broadcast %cst_46 : f32 to vector<32x1xf32>
    %118 = arith.divf %116, %117 : vector<32x1xf32>
    %119 = vector.broadcast %118 : vector<32x1xf32> to vector<32x32xf32>
    %120 = arith.subf %114, %119 : vector<32x32xf32>
    %121 = arith.mulf %120, %120 : vector<32x32xf32>
    %cst_47 = arith.constant dense<0.000000e+00> : vector<32xf32>
    %122 = vector.multi_reduction <add>, %121, %cst_47 [1] : vector<32x32xf32> to vector<32xf32>
    %123 = vector.shape_cast %122 : vector<32xf32> to vector<32x1xf32>
    %cst_48 = arith.constant 3.200000e+01 : f32
    %124 = vector.broadcast %cst_48 : f32 to vector<32x1xf32>
    %125 = arith.divf %123, %124 : vector<32x1xf32>
    %126 = vector.broadcast %118 : vector<32x1xf32> to vector<32x32xf32>
    %127 = arith.subf %114, %126 : vector<32x32xf32>
    %cst_49 = arith.constant 9.99999974E-6 : f32
    %128 = vector.broadcast %cst_49 : f32 to vector<32x1xf32>
    %129 = arith.addf %125, %128 : vector<32x1xf32>
    %130 = math.rsqrt %129 : vector<32x1xf32>
    %131 = vector.broadcast %130 : vector<32x1xf32> to vector<32x32xf32>
    %132 = arith.mulf %127, %131 : vector<32x32xf32>
    %133 = vector.extract_strided_slice %39 {offsets = [0, 96], sizes = [32, 32], strides = [1, 1]} : vector<32x128xf32> to vector<32x32xf32>
    %134 = vector.extract_strided_slice %40 {offsets = [0, 96], sizes = [32, 32], strides = [1, 1]} : vector<32x128xf32> to vector<32x32xf32>
    %135 = vector.extract_strided_slice %41 {offsets = [0, 96], sizes = [32, 32], strides = [1, 1]} : vector<32x128xf32> to vector<32x32xf32>
    %136 = arith.truncf %133 : vector<32x32xf32> to vector<32x32xbf16>
    %137 = arith.truncf %134 : vector<32x32xf32> to vector<32x32xbf16>
    "tpu.trace_start"() <{level = 10 : i32, message = "nd,md->nm"}> : () -> ()
    %cst_50 = arith.constant dense<0.000000e+00> : vector<32x32xf32>
    %138 = tpu.matmul %136, %137, %cst_50 {dimension_numbers = #tpu.dot_dimension_numbers<[1], [1], [0], [0], [0, 0, 1, 0], [], []>} : vector<32x32xbf16>, vector<32x32xbf16>, vector<32x32xf32> -> vector<32x32xf32>
    "tpu.trace_stop"() : () -> ()
    %c3 = arith.constant 3 : index
    %c0_51 = arith.constant 0 : index
    %c0_52 = arith.constant 0 : index
    %139 = vector.load %arg5[%c3, %c0_51, %c0_52] : memref<4x32x32xf32, #tpu.memory_space<vmem>>, vector<1x32x32xf32>
    %140 = vector.shape_cast %139 : vector<1x32x32xf32> to vector<32x32xf32>
    %141 = arith.mulf %138, %140 : vector<32x32xf32>
    %142 = arith.truncf %141 : vector<32x32xf32> to vector<32x32xbf16>
    %143 = arith.truncf %135 : vector<32x32xf32> to vector<32x32xbf16>
    %cst_53 = arith.constant dense<0.000000e+00> : vector<32x32xf32>
    %144 = tpu.matmul %142, %143, %cst_53 {dimension_numbers = #tpu.dot_dimension_numbers<[1], [0], [0], [1], [0, 0, 1, 1], [], []>} : vector<32x32xbf16>, vector<32x32xbf16>, vector<32x32xf32> -> vector<32x32xf32>
    %cst_54 = arith.constant dense<0.000000e+00> : vector<32xf32>
    %145 = vector.multi_reduction <add>, %144, %cst_54 [1] : vector<32x32xf32> to vector<32xf32>
    %146 = vector.shape_cast %145 : vector<32xf32> to vector<32x1xf32>
    %cst_55 = arith.constant 3.200000e+01 : f32
    %147 = vector.broadcast %cst_55 : f32 to vector<32x1xf32>
    %148 = arith.divf %146, %147 : vector<32x1xf32>
    %149 = vector.broadcast %148 : vector<32x1xf32> to vector<32x32xf32>
    %150 = arith.subf %144, %149 : vector<32x32xf32>
    %151 = arith.mulf %150, %150 : vector<32x32xf32>
    %cst_56 = arith.constant dense<0.000000e+00> : vector<32xf32>
    %152 = vector.multi_reduction <add>, %151, %cst_56 [1] : vector<32x32xf32> to vector<32xf32>
    %153 = vector.shape_cast %152 : vector<32xf32> to vector<32x1xf32>
    %cst_57 = arith.constant 3.200000e+01 : f32
    %154 = vector.broadcast %cst_57 : f32 to vector<32x1xf32>
    %155 = arith.divf %153, %154 : vector<32x1xf32>
    %156 = vector.broadcast %148 : vector<32x1xf32> to vector<32x32xf32>
    %157 = arith.subf %144, %156 : vector<32x32xf32>
    %cst_58 = arith.constant 9.99999974E-6 : f32
    %158 = vector.broadcast %cst_58 : f32 to vector<32x1xf32>
    %159 = arith.addf %155, %158 : vector<32x1xf32>
    %160 = math.rsqrt %159 : vector<32x1xf32>
    %161 = vector.broadcast %160 : vector<32x1xf32> to vector<32x32xf32>
    %162 = arith.mulf %157, %161 : vector<32x32xf32>
    %163 = tpu.concatenate %72, %102, %132, %162 in 1 : vector<32x32xf32>, vector<32x32xf32>, vector<32x32xf32>, vector<32x32xf32> -> vector<32x128xf32>
    %c0_59 = arith.constant 0 : index
    %c0_60 = arith.constant 0 : index
    %c0_61 = arith.constant 0 : index
    %164 = vector.load %arg10[%c0_59, %c0_60, %c0_61] : memref<2x1x128xf32, #tpu.memory_space<vmem>>, vector<1x1x128xf32>
    %165 = vector.shape_cast %164 : vector<1x1x128xf32> to vector<1x128xf32>
    %166 = vector.broadcast %165 : vector<1x128xf32> to vector<32x128xf32>
    %167 = arith.mulf %163, %166 : vector<32x128xf32>
    %c0_62 = arith.constant 0 : index
    %c0_63 = arith.constant 0 : index
    %c0_64 = arith.constant 0 : index
    %168 = vector.load %arg11[%c0_62, %c0_63, %c0_64] : memref<2x1x128xf32, #tpu.memory_space<vmem>>, vector<1x1x128xf32>
    %169 = vector.shape_cast %168 : vector<1x1x128xf32> to vector<1x128xf32>
    %170 = vector.broadcast %169 : vector<1x128xf32> to vector<32x128xf32>
    %171 = arith.addf %167, %170 : vector<32x128xf32>
    %172 = arith.negf %42 : vector<32x128xf32>
    %173 = math.exp %172 : vector<32x128xf32>
    %cst_65 = arith.constant 1.000000e+00 : f32
    %174 = vector.broadcast %cst_65 : f32 to vector<32x128xf32>
    %175 = arith.addf %174, %173 : vector<32x128xf32>
    %176 = arith.divf %174, %175 : vector<32x128xf32>
    %177 = arith.mulf %42, %176 : vector<32x128xf32>
    %178 = arith.mulf %177, %171 : vector<32x128xf32>
    %179 = arith.truncf %178 : vector<32x128xf32> to vector<32x128xbf16>
    %c0_66 = arith.constant 0 : index
    %c0_67 = arith.constant 0 : index
    %c0_68 = arith.constant 0 : index
    %180 = vector.load %arg9[%c0_66, %c0_67, %c0_68] : memref<2x128x128xbf16, #tpu.memory_space<vmem>>, vector<1x128x128xbf16>
    %181 = vector.shape_cast %180 : vector<1x128x128xbf16> to vector<128x128xbf16>
    %cst_69 = arith.constant dense<0.000000e+00> : vector<32x128xf32>
    %182 = tpu.matmul %179, %181, %cst_69 {dimension_numbers = #tpu.dot_dimension_numbers<[1], [0], [0], [1], [0, 0, 1, 1], [], []>} : vector<32x128xbf16>, vector<128x128xbf16>, vector<32x128xf32> -> vector<32x128xf32>
    %183 = arith.addf %182, %8 : vector<32x128xf32>
    %c0_70 = arith.constant 0 : index
    %c0_71 = arith.constant 0 : index
    %c0_72 = arith.constant 0 : index
    %184 = vector.load %arg12[%c0_70, %c0_71, %c0_72] : memref<2x1x128xf32, #tpu.memory_space<vmem>>, vector<1x1x128xf32>
    %185 = vector.shape_cast %184 : vector<1x1x128xf32> to vector<1x128xf32>
    %c0_73 = arith.constant 0 : index
    %c0_74 = arith.constant 0 : index
    %c0_75 = arith.constant 0 : index
    %186 = vector.load %arg13[%c0_73, %c0_74, %c0_75] : memref<2x1x128xf32, #tpu.memory_space<vmem>>, vector<1x1x128xf32>
    %187 = vector.shape_cast %186 : vector<1x1x128xf32> to vector<1x128xf32>
    %cst_76 = arith.constant dense<0.000000e+00> : vector<32xf32>
    %188 = vector.multi_reduction <add>, %183, %cst_76 [1] : vector<32x128xf32> to vector<32xf32>
    %189 = vector.shape_cast %188 : vector<32xf32> to vector<32x1xf32>
    %cst_77 = arith.constant 1.280000e+02 : f32
    %190 = vector.broadcast %cst_77 : f32 to vector<32x1xf32>
    %191 = arith.divf %189, %190 : vector<32x1xf32>
    %192 = vector.broadcast %191 : vector<32x1xf32> to vector<32x128xf32>
    %193 = arith.subf %183, %192 : vector<32x128xf32>
    %194 = arith.mulf %193, %193 : vector<32x128xf32>
    %cst_78 = arith.constant dense<0.000000e+00> : vector<32xf32>
    %195 = vector.multi_reduction <add>, %194, %cst_78 [1] : vector<32x128xf32> to vector<32xf32>
    %196 = vector.shape_cast %195 : vector<32xf32> to vector<32x1xf32>
    %cst_79 = arith.constant 1.280000e+02 : f32
    %197 = vector.broadcast %cst_79 : f32 to vector<32x1xf32>
    %198 = arith.divf %196, %197 : vector<32x1xf32>
    %199 = vector.broadcast %191 : vector<32x1xf32> to vector<32x128xf32>
    %200 = arith.subf %183, %199 : vector<32x128xf32>
    %cst_80 = arith.constant 9.99999974E-6 : f32
    %201 = vector.broadcast %cst_80 : f32 to vector<32x1xf32>
    %202 = arith.addf %198, %201 : vector<32x1xf32>
    %203 = math.rsqrt %202 : vector<32x1xf32>
    %204 = vector.broadcast %203 : vector<32x1xf32> to vector<32x128xf32>
    %205 = arith.mulf %200, %204 : vector<32x128xf32>
    %206 = vector.broadcast %185 : vector<1x128xf32> to vector<32x128xf32>
    %207 = arith.mulf %205, %206 : vector<32x128xf32>
    %208 = vector.broadcast %187 : vector<1x128xf32> to vector<32x128xf32>
    %209 = arith.addf %207, %208 : vector<32x128xf32>
    %210 = arith.truncf %209 : vector<32x128xf32> to vector<32x128xbf16>
    %c0_81 = arith.constant 0 : index
    %c0_82 = arith.constant 0 : index
    %c0_83 = arith.constant 0 : index
    %211 = vector.load %arg14[%c0_81, %c0_82, %c0_83] : memref<2x128x256xbf16, #tpu.memory_space<vmem>>, vector<1x128x256xbf16>
    %212 = vector.shape_cast %211 : vector<1x128x256xbf16> to vector<128x256xbf16>
    %cst_84 = arith.constant dense<0.000000e+00> : vector<32x256xf32>
    %213 = tpu.matmul %210, %212, %cst_84 {dimension_numbers = #tpu.dot_dimension_numbers<[1], [0], [0], [1], [0, 0, 1, 1], [], []>} : vector<32x128xbf16>, vector<128x256xbf16>, vector<32x256xf32> -> vector<32x256xf32>
    %c0_85 = arith.constant 0 : index
    %c0_86 = arith.constant 0 : index
    %c0_87 = arith.constant 0 : index
    %214 = vector.load %arg15[%c0_85, %c0_86, %c0_87] : memref<2x1x256xf32, #tpu.memory_space<vmem>>, vector<1x1x256xf32>
    %215 = vector.shape_cast %214 : vector<1x1x256xf32> to vector<1x256xf32>
    %216 = vector.broadcast %215 : vector<1x256xf32> to vector<32x256xf32>
    %217 = arith.addf %213, %216 : vector<32x256xf32>
    %cst_88 = arith.constant 5.000000e-01 : f32
    %218 = vector.broadcast %cst_88 : f32 to vector<32x256xf32>
    %219 = arith.mulf %218, %217 : vector<32x256xf32>
    %cst_89 = arith.constant 0.707106769 : f32
    %220 = vector.broadcast %cst_89 : f32 to vector<32x256xf32>
    %221 = arith.mulf %217, %220 : vector<32x256xf32>
    %222 = math.erf %221 : vector<32x256xf32>
    %cst_90 = arith.constant 1.000000e+00 : f32
    %223 = vector.broadcast %cst_90 : f32 to vector<32x256xf32>
    %224 = arith.addf %223, %222 : vector<32x256xf32>
    %225 = arith.mulf %219, %224 : vector<32x256xf32>
    %226 = arith.truncf %225 : vector<32x256xf32> to vector<32x256xbf16>
    %c0_91 = arith.constant 0 : index
    %c0_92 = arith.constant 0 : index
    %c0_93 = arith.constant 0 : index
    %227 = vector.load %arg16[%c0_91, %c0_92, %c0_93] : memref<2x256x128xbf16, #tpu.memory_space<vmem>>, vector<1x256x128xbf16>
    %228 = vector.shape_cast %227 : vector<1x256x128xbf16> to vector<256x128xbf16>
    %cst_94 = arith.constant dense<0.000000e+00> : vector<32x128xf32>
    %229 = tpu.matmul %226, %228, %cst_94 {dimension_numbers = #tpu.dot_dimension_numbers<[1], [0], [0], [1], [0, 0, 1, 1], [], []>} : vector<32x256xbf16>, vector<256x128xbf16>, vector<32x128xf32> -> vector<32x128xf32>
    %c0_95 = arith.constant 0 : index
    %c0_96 = arith.constant 0 : index
    %c0_97 = arith.constant 0 : index
    %230 = vector.load %arg17[%c0_95, %c0_96, %c0_97] : memref<2x1x128xf32, #tpu.memory_space<vmem>>, vector<1x1x128xf32>
    %231 = vector.shape_cast %230 : vector<1x1x128xf32> to vector<1x128xf32>
    %232 = vector.broadcast %231 : vector<1x128xf32> to vector<32x128xf32>
    %233 = arith.addf %229, %232 : vector<32x128xf32>
    %234 = arith.addf %233, %183 : vector<32x128xf32>
    %c0_98 = arith.constant 0 : index
    %c0_99 = arith.constant 0 : index
    %c0_100 = arith.constant 0 : index
    %235 = vector.load %arg21[%c0_98, %c0_99, %c0_100] : memref<2x32x128xf32, #tpu.memory_space<vmem>>, vector<1x32x128xf32>
    %236 = vector.shape_cast %235 : vector<1x32x128xf32> to vector<32x128xf32>
    %237 = vector.shape_cast %234 : vector<32x128xf32> to vector<1x32x128xf32>
    tpu.vector_store %arg21[%c0_98, %c0_99, %c0_100], %237 {strides = array<i32>} : memref<2x32x128xf32, #tpu.memory_space<vmem>>, vector<1x32x128xf32>,
    %c1_101 = arith.constant 1 : index
    %c0_102 = arith.constant 0 : index
    %c0_103 = arith.constant 0 : index
    %238 = vector.load %arg6[%c1_101, %c0_102, %c0_103] : memref<2x1x128xf32, #tpu.memory_space<vmem>>, vector<1x1x128xf32>
    %239 = vector.shape_cast %238 : vector<1x1x128xf32> to vector<1x128xf32>
    %c1_104 = arith.constant 1 : index
    %c0_105 = arith.constant 0 : index
    %c0_106 = arith.constant 0 : index
    %240 = vector.load %arg7[%c1_104, %c0_105, %c0_106] : memref<2x1x128xf32, #tpu.memory_space<vmem>>, vector<1x1x128xf32>
    %241 = vector.shape_cast %240 : vector<1x1x128xf32> to vector<1x128xf32>
    %cst_107 = arith.constant dense<0.000000e+00> : vector<32xf32>
    %242 = vector.multi_reduction <add>, %234, %cst_107 [1] : vector<32x128xf32> to vector<32xf32>
    %243 = vector.shape_cast %242 : vector<32xf32> to vector<32x1xf32>
    %cst_108 = arith.constant 1.280000e+02 : f32
    %244 = vector.broadcast %cst_108 : f32 to vector<32x1xf32>
    %245 = arith.divf %243, %244 : vector<32x1xf32>
    %246 = vector.broadcast %245 : vector<32x1xf32> to vector<32x128xf32>
    %247 = arith.subf %234, %246 : vector<32x128xf32>
    %248 = arith.mulf %247, %247 : vector<32x128xf32>
    %cst_109 = arith.constant dense<0.000000e+00> : vector<32xf32>
    %249 = vector.multi_reduction <add>, %248, %cst_109 [1] : vector<32x128xf32> to vector<32xf32>
    %250 = vector.shape_cast %249 : vector<32xf32> to vector<32x1xf32>
    %cst_110 = arith.constant 1.280000e+02 : f32
    %251 = vector.broadcast %cst_110 : f32 to vector<32x1xf32>
    %252 = arith.divf %250, %251 : vector<32x1xf32>
    %253 = vector.broadcast %245 : vector<32x1xf32> to vector<32x128xf32>
    %254 = arith.subf %234, %253 : vector<32x128xf32>
    %cst_111 = arith.constant 9.99999974E-6 : f32
    %255 = vector.broadcast %cst_111 : f32 to vector<32x1xf32>
    %256 = arith.addf %252, %255 : vector<32x1xf32>
    %257 = math.rsqrt %256 : vector<32x1xf32>
    %258 = vector.broadcast %257 : vector<32x1xf32> to vector<32x128xf32>
    %259 = arith.mulf %254, %258 : vector<32x128xf32>
    %260 = vector.broadcast %239 : vector<1x128xf32> to vector<32x128xf32>
    %261 = arith.mulf %259, %260 : vector<32x128xf32>
    %262 = vector.broadcast %241 : vector<1x128xf32> to vector<32x128xf32>
    %263 = arith.addf %261, %262 : vector<32x128xf32>
    %264 = arith.truncf %263 : vector<32x128xf32> to vector<32x128xbf16>
    %c1_112 = arith.constant 1 : index
    %c0_113 = arith.constant 0 : index
    %c0_114 = arith.constant 0 : index
    %265 = vector.load %arg8[%c1_112, %c0_113, %c0_114] : memref<2x128x512xbf16, #tpu.memory_space<vmem>>, vector<1x128x512xbf16>
    %266 = vector.shape_cast %265 : vector<1x128x512xbf16> to vector<128x512xbf16>
    %cst_115 = arith.constant dense<0.000000e+00> : vector<32x512xf32>
    %267 = tpu.matmul %264, %266, %cst_115 {dimension_numbers = #tpu.dot_dimension_numbers<[1], [0], [0], [1], [0, 0, 1, 1], [], []>} : vector<32x128xbf16>, vector<128x512xbf16>, vector<32x512xf32> -> vector<32x512xf32>
    %268 = vector.extract_strided_slice %267 {offsets = [0, 0], sizes = [32, 128], strides = [1, 1]} : vector<32x512xf32> to vector<32x128xf32>
    %269 = vector.extract_strided_slice %267 {offsets = [0, 128], sizes = [32, 128], strides = [1, 1]} : vector<32x512xf32> to vector<32x128xf32>
    %270 = vector.extract_strided_slice %267 {offsets = [0, 256], sizes = [32, 128], strides = [1, 1]} : vector<32x512xf32> to vector<32x128xf32>
    %271 = vector.extract_strided_slice %267 {offsets = [0, 384], sizes = [32, 128], strides = [1, 1]} : vector<32x512xf32> to vector<32x128xf32>
    %272 = vector.extract_strided_slice %268 {offsets = [0, 0], sizes = [32, 32], strides = [1, 1]} : vector<32x128xf32> to vector<32x32xf32>
    %273 = vector.extract_strided_slice %269 {offsets = [0, 0], sizes = [32, 32], strides = [1, 1]} : vector<32x128xf32> to vector<32x32xf32>
    %274 = vector.extract_strided_slice %270 {offsets = [0, 0], sizes = [32, 32], strides = [1, 1]} : vector<32x128xf32> to vector<32x32xf32>
    %275 = arith.truncf %272 : vector<32x32xf32> to vector<32x32xbf16>
    %276 = arith.truncf %273 : vector<32x32xf32> to vector<32x32xbf16>
    "tpu.trace_start"() <{level = 10 : i32, message = "nd,md->nm"}> : () -> ()
    %cst_116 = arith.constant dense<0.000000e+00> : vector<32x32xf32>
    %277 = tpu.matmul %275, %276, %cst_116 {dimension_numbers = #tpu.dot_dimension_numbers<[1], [1], [0], [0], [0, 0, 1, 0], [], []>} : vector<32x32xbf16>, vector<32x32xbf16>, vector<32x32xf32> -> vector<32x32xf32>
    "tpu.trace_stop"() : () -> ()
    %c0_117 = arith.constant 0 : index
    %c0_118 = arith.constant 0 : index
    %c0_119 = arith.constant 0 : index
    %278 = vector.load %arg5[%c0_117, %c0_118, %c0_119] : memref<4x32x32xf32, #tpu.memory_space<vmem>>, vector<1x32x32xf32>
    %279 = vector.shape_cast %278 : vector<1x32x32xf32> to vector<32x32xf32>
    %280 = arith.mulf %277, %279 : vector<32x32xf32>
    %281 = arith.truncf %280 : vector<32x32xf32> to vector<32x32xbf16>
    %282 = arith.truncf %274 : vector<32x32xf32> to vector<32x32xbf16>
    %cst_120 = arith.constant dense<0.000000e+00> : vector<32x32xf32>
    %283 = tpu.matmul %281, %282, %cst_120 {dimension_numbers = #tpu.dot_dimension_numbers<[1], [0], [0], [1], [0, 0, 1, 1], [], []>} : vector<32x32xbf16>, vector<32x32xbf16>, vector<32x32xf32> -> vector<32x32xf32>
    %cst_121 = arith.constant dense<0.000000e+00> : vector<32xf32>
    %284 = vector.multi_reduction <add>, %283, %cst_121 [1] : vector<32x32xf32> to vector<32xf32>
    %285 = vector.shape_cast %284 : vector<32xf32> to vector<32x1xf32>
    %cst_122 = arith.constant 3.200000e+01 : f32
    %286 = vector.broadcast %cst_122 : f32 to vector<32x1xf32>
    %287 = arith.divf %285, %286 : vector<32x1xf32>
    %288 = vector.broadcast %287 : vector<32x1xf32> to vector<32x32xf32>
    %289 = arith.subf %283, %288 : vector<32x32xf32>
    %290 = arith.mulf %289, %289 : vector<32x32xf32>
    %cst_123 = arith.constant dense<0.000000e+00> : vector<32xf32>
    %291 = vector.multi_reduction <add>, %290, %cst_123 [1] : vector<32x32xf32> to vector<32xf32>
    %292 = vector.shape_cast %291 : vector<32xf32> to vector<32x1xf32>
    %cst_124 = arith.constant 3.200000e+01 : f32
    %293 = vector.broadcast %cst_124 : f32 to vector<32x1xf32>
    %294 = arith.divf %292, %293 : vector<32x1xf32>
    %295 = vector.broadcast %287 : vector<32x1xf32> to vector<32x32xf32>
    %296 = arith.subf %283, %295 : vector<32x32xf32>
    %cst_125 = arith.constant 9.99999974E-6 : f32
    %297 = vector.broadcast %cst_125 : f32 to vector<32x1xf32>
    %298 = arith.addf %294, %297 : vector<32x1xf32>
    %299 = math.rsqrt %298 : vector<32x1xf32>
    %300 = vector.broadcast %299 : vector<32x1xf32> to vector<32x32xf32>
    %301 = arith.mulf %296, %300 : vector<32x32xf32>
    %302 = vector.extract_strided_slice %268 {offsets = [0, 32], sizes = [32, 32], strides = [1, 1]} : vector<32x128xf32> to vector<32x32xf32>
    %303 = vector.extract_strided_slice %269 {offsets = [0, 32], sizes = [32, 32], strides = [1, 1]} : vector<32x128xf32> to vector<32x32xf32>
    %304 = vector.extract_strided_slice %270 {offsets = [0, 32], sizes = [32, 32], strides = [1, 1]} : vector<32x128xf32> to vector<32x32xf32>
    %305 = arith.truncf %302 : vector<32x32xf32> to vector<32x32xbf16>
    %306 = arith.truncf %303 : vector<32x32xf32> to vector<32x32xbf16>
    "tpu.trace_start"() <{level = 10 : i32, message = "nd,md->nm"}> : () -> ()
    %cst_126 = arith.constant dense<0.000000e+00> : vector<32x32xf32>
    %307 = tpu.matmul %305, %306, %cst_126 {dimension_numbers = #tpu.dot_dimension_numbers<[1], [1], [0], [0], [0, 0, 1, 0], [], []>} : vector<32x32xbf16>, vector<32x32xbf16>, vector<32x32xf32> -> vector<32x32xf32>
    "tpu.trace_stop"() : () -> ()
    %c1_127 = arith.constant 1 : index
    %c0_128 = arith.constant 0 : index
    %c0_129 = arith.constant 0 : index
    %308 = vector.load %arg5[%c1_127, %c0_128, %c0_129] : memref<4x32x32xf32, #tpu.memory_space<vmem>>, vector<1x32x32xf32>
    %309 = vector.shape_cast %308 : vector<1x32x32xf32> to vector<32x32xf32>
    %310 = arith.mulf %307, %309 : vector<32x32xf32>
    %311 = arith.truncf %310 : vector<32x32xf32> to vector<32x32xbf16>
    %312 = arith.truncf %304 : vector<32x32xf32> to vector<32x32xbf16>
    %cst_130 = arith.constant dense<0.000000e+00> : vector<32x32xf32>
    %313 = tpu.matmul %311, %312, %cst_130 {dimension_numbers = #tpu.dot_dimension_numbers<[1], [0], [0], [1], [0, 0, 1, 1], [], []>} : vector<32x32xbf16>, vector<32x32xbf16>, vector<32x32xf32> -> vector<32x32xf32>
    %cst_131 = arith.constant dense<0.000000e+00> : vector<32xf32>
    %314 = vector.multi_reduction <add>, %313, %cst_131 [1] : vector<32x32xf32> to vector<32xf32>
    %315 = vector.shape_cast %314 : vector<32xf32> to vector<32x1xf32>
    %cst_132 = arith.constant 3.200000e+01 : f32
    %316 = vector.broadcast %cst_132 : f32 to vector<32x1xf32>
    %317 = arith.divf %315, %316 : vector<32x1xf32>
    %318 = vector.broadcast %317 : vector<32x1xf32> to vector<32x32xf32>
    %319 = arith.subf %313, %318 : vector<32x32xf32>
    %320 = arith.mulf %319, %319 : vector<32x32xf32>
    %cst_133 = arith.constant dense<0.000000e+00> : vector<32xf32>
    %321 = vector.multi_reduction <add>, %320, %cst_133 [1] : vector<32x32xf32> to vector<32xf32>
    %322 = vector.shape_cast %321 : vector<32xf32> to vector<32x1xf32>
    %cst_134 = arith.constant 3.200000e+01 : f32
    %323 = vector.broadcast %cst_134 : f32 to vector<32x1xf32>
    %324 = arith.divf %322, %323 : vector<32x1xf32>
    %325 = vector.broadcast %317 : vector<32x1xf32> to vector<32x32xf32>
    %326 = arith.subf %313, %325 : vector<32x32xf32>
    %cst_135 = arith.constant 9.99999974E-6 : f32
    %327 = vector.broadcast %cst_135 : f32 to vector<32x1xf32>
    %328 = arith.addf %324, %327 : vector<32x1xf32>
    %329 = math.rsqrt %328 : vector<32x1xf32>
    %330 = vector.broadcast %329 : vector<32x1xf32> to vector<32x32xf32>
    %331 = arith.mulf %326, %330 : vector<32x32xf32>
    %332 = vector.extract_strided_slice %268 {offsets = [0, 64], sizes = [32, 32], strides = [1, 1]} : vector<32x128xf32> to vector<32x32xf32>
    %333 = vector.extract_strided_slice %269 {offsets = [0, 64], sizes = [32, 32], strides = [1, 1]} : vector<32x128xf32> to vector<32x32xf32>
    %334 = vector.extract_strided_slice %270 {offsets = [0, 64], sizes = [32, 32], strides = [1, 1]} : vector<32x128xf32> to vector<32x32xf32>
    %335 = arith.truncf %332 : vector<32x32xf32> to vector<32x32xbf16>
    %336 = arith.truncf %333 : vector<32x32xf32> to vector<32x32xbf16>
    "tpu.trace_start"() <{level = 10 : i32, message = "nd,md->nm"}> : () -> ()
    %cst_136 = arith.constant dense<0.000000e+00> : vector<32x32xf32>
    %337 = tpu.matmul %335, %336, %cst_136 {dimension_numbers = #tpu.dot_dimension_numbers<[1], [1], [0], [0], [0, 0, 1, 0], [], []>} : vector<32x32xbf16>, vector<32x32xbf16>, vector<32x32xf32> -> vector<32x32xf32>
    "tpu.trace_stop"() : () -> ()
    %c2_137 = arith.constant 2 : index
    %c0_138 = arith.constant 0 : index
    %c0_139 = arith.constant 0 : index
    %338 = vector.load %arg5[%c2_137, %c0_138, %c0_139] : memref<4x32x32xf32, #tpu.memory_space<vmem>>, vector<1x32x32xf32>
    %339 = vector.shape_cast %338 : vector<1x32x32xf32> to vector<32x32xf32>
    %340 = arith.mulf %337, %339 : vector<32x32xf32>
    %341 = arith.truncf %340 : vector<32x32xf32> to vector<32x32xbf16>
    %342 = arith.truncf %334 : vector<32x32xf32> to vector<32x32xbf16>
    %cst_140 = arith.constant dense<0.000000e+00> : vector<32x32xf32>
    %343 = tpu.matmul %341, %342, %cst_140 {dimension_numbers = #tpu.dot_dimension_numbers<[1], [0], [0], [1], [0, 0, 1, 1], [], []>} : vector<32x32xbf16>, vector<32x32xbf16>, vector<32x32xf32> -> vector<32x32xf32>
    %cst_141 = arith.constant dense<0.000000e+00> : vector<32xf32>
    %344 = vector.multi_reduction <add>, %343, %cst_141 [1] : vector<32x32xf32> to vector<32xf32>
    %345 = vector.shape_cast %344 : vector<32xf32> to vector<32x1xf32>
    %cst_142 = arith.constant 3.200000e+01 : f32
    %346 = vector.broadcast %cst_142 : f32 to vector<32x1xf32>
    %347 = arith.divf %345, %346 : vector<32x1xf32>
    %348 = vector.broadcast %347 : vector<32x1xf32> to vector<32x32xf32>
    %349 = arith.subf %343, %348 : vector<32x32xf32>
    %350 = arith.mulf %349, %349 : vector<32x32xf32>
    %cst_143 = arith.constant dense<0.000000e+00> : vector<32xf32>
    %351 = vector.multi_reduction <add>, %350, %cst_143 [1] : vector<32x32xf32> to vector<32xf32>
    %352 = vector.shape_cast %351 : vector<32xf32> to vector<32x1xf32>
    %cst_144 = arith.constant 3.200000e+01 : f32
    %353 = vector.broadcast %cst_144 : f32 to vector<32x1xf32>
    %354 = arith.divf %352, %353 : vector<32x1xf32>
    %355 = vector.broadcast %347 : vector<32x1xf32> to vector<32x32xf32>
    %356 = arith.subf %343, %355 : vector<32x32xf32>
    %cst_145 = arith.constant 9.99999974E-6 : f32
    %357 = vector.broadcast %cst_145 : f32 to vector<32x1xf32>
    %358 = arith.addf %354, %357 : vector<32x1xf32>
    %359 = math.rsqrt %358 : vector<32x1xf32>
    %360 = vector.broadcast %359 : vector<32x1xf32> to vector<32x32xf32>
    %361 = arith.mulf %356, %360 : vector<32x32xf32>
    %362 = vector.extract_strided_slice %268 {offsets = [0, 96], sizes = [32, 32], strides = [1, 1]} : vector<32x128xf32> to vector<32x32xf32>
    %363 = vector.extract_strided_slice %269 {offsets = [0, 96], sizes = [32, 32], strides = [1, 1]} : vector<32x128xf32> to vector<32x32xf32>
    %364 = vector.extract_strided_slice %270 {offsets = [0, 96], sizes = [32, 32], strides = [1, 1]} : vector<32x128xf32> to vector<32x32xf32>
    %365 = arith.truncf %362 : vector<32x32xf32> to vector<32x32xbf16>
    %366 = arith.truncf %363 : vector<32x32xf32> to vector<32x32xbf16>
    "tpu.trace_start"() <{level = 10 : i32, message = "nd,md->nm"}> : () -> ()
    %cst_146 = arith.constant dense<0.000000e+00> : vector<32x32xf32>
    %367 = tpu.matmul %365, %366, %cst_146 {dimension_numbers = #tpu.dot_dimension_numbers<[1], [1], [0], [0], [0, 0, 1, 0], [], []>} : vector<32x32xbf16>, vector<32x32xbf16>, vector<32x32xf32> -> vector<32x32xf32>
    "tpu.trace_stop"() : () -> ()
    %c3_147 = arith.constant 3 : index
    %c0_148 = arith.constant 0 : index
    %c0_149 = arith.constant 0 : index
    %368 = vector.load %arg5[%c3_147, %c0_148, %c0_149] : memref<4x32x32xf32, #tpu.memory_space<vmem>>, vector<1x32x32xf32>
    %369 = vector.shape_cast %368 : vector<1x32x32xf32> to vector<32x32xf32>
    %370 = arith.mulf %367, %369 : vector<32x32xf32>
    %371 = arith.truncf %370 : vector<32x32xf32> to vector<32x32xbf16>
    %372 = arith.truncf %364 : vector<32x32xf32> to vector<32x32xbf16>
    %cst_150 = arith.constant dense<0.000000e+00> : vector<32x32xf32>
    %373 = tpu.matmul %371, %372, %cst_150 {dimension_numbers = #tpu.dot_dimension_numbers<[1], [0], [0], [1], [0, 0, 1, 1], [], []>} : vector<32x32xbf16>, vector<32x32xbf16>, vector<32x32xf32> -> vector<32x32xf32>
    %cst_151 = arith.constant dense<0.000000e+00> : vector<32xf32>
    %374 = vector.multi_reduction <add>, %373, %cst_151 [1] : vector<32x32xf32> to vector<32xf32>
    %375 = vector.shape_cast %374 : vector<32xf32> to vector<32x1xf32>
    %cst_152 = arith.constant 3.200000e+01 : f32
    %376 = vector.broadcast %cst_152 : f32 to vector<32x1xf32>
    %377 = arith.divf %375, %376 : vector<32x1xf32>
    %378 = vector.broadcast %377 : vector<32x1xf32> to vector<32x32xf32>
    %379 = arith.subf %373, %378 : vector<32x32xf32>
    %380 = arith.mulf %379, %379 : vector<32x32xf32>
    %cst_153 = arith.constant dense<0.000000e+00> : vector<32xf32>
    %381 = vector.multi_reduction <add>, %380, %cst_153 [1] : vector<32x32xf32> to vector<32xf32>
    %382 = vector.shape_cast %381 : vector<32xf32> to vector<32x1xf32>
    %cst_154 = arith.constant 3.200000e+01 : f32
    %383 = vector.broadcast %cst_154 : f32 to vector<32x1xf32>
    %384 = arith.divf %382, %383 : vector<32x1xf32>
    %385 = vector.broadcast %377 : vector<32x1xf32> to vector<32x32xf32>
    %386 = arith.subf %373, %385 : vector<32x32xf32>
    %cst_155 = arith.constant 9.99999974E-6 : f32
    %387 = vector.broadcast %cst_155 : f32 to vector<32x1xf32>
    %388 = arith.addf %384, %387 : vector<32x1xf32>
    %389 = math.rsqrt %388 : vector<32x1xf32>
    %390 = vector.broadcast %389 : vector<32x1xf32> to vector<32x32xf32>
    %391 = arith.mulf %386, %390 : vector<32x32xf32>
    %392 = tpu.concatenate %301, %331, %361, %391 in 1 : vector<32x32xf32>, vector<32x32xf32>, vector<32x32xf32>, vector<32x32xf32> -> vector<32x128xf32>
    %c1_156 = arith.constant 1 : index
    %c0_157 = arith.constant 0 : index
    %c0_158 = arith.constant 0 : index
    %393 = vector.load %arg10[%c1_156, %c0_157, %c0_158] : memref<2x1x128xf32, #tpu.memory_space<vmem>>, vector<1x1x128xf32>
    %394 = vector.shape_cast %393 : vector<1x1x128xf32> to vector<1x128xf32>
    %395 = vector.broadcast %394 : vector<1x128xf32> to vector<32x128xf32>
    %396 = arith.mulf %392, %395 : vector<32x128xf32>
    %c1_159 = arith.constant 1 : index
    %c0_160 = arith.constant 0 : index
    %c0_161 = arith.constant 0 : index
    %397 = vector.load %arg11[%c1_159, %c0_160, %c0_161] : memref<2x1x128xf32, #tpu.memory_space<vmem>>, vector<1x1x128xf32>
    %398 = vector.shape_cast %397 : vector<1x1x128xf32> to vector<1x128xf32>
    %399 = vector.broadcast %398 : vector<1x128xf32> to vector<32x128xf32>
    %400 = arith.addf %396, %399 : vector<32x128xf32>
    %401 = arith.negf %271 : vector<32x128xf32>
    %402 = math.exp %401 : vector<32x128xf32>
    %cst_162 = arith.constant 1.000000e+00 : f32
    %403 = vector.broadcast %cst_162 : f32 to vector<32x128xf32>
    %404 = arith.addf %403, %402 : vector<32x128xf32>
    %405 = arith.divf %403, %404 : vector<32x128xf32>
    %406 = arith.mulf %271, %405 : vector<32x128xf32>
    %407 = arith.mulf %406, %400 : vector<32x128xf32>
    %408 = arith.truncf %407 : vector<32x128xf32> to vector<32x128xbf16>
    %c1_163 = arith.constant 1 : index
    %c0_164 = arith.constant 0 : index
    %c0_165 = arith.constant 0 : index
    %409 = vector.load %arg9[%c1_163, %c0_164, %c0_165] : memref<2x128x128xbf16, #tpu.memory_space<vmem>>, vector<1x128x128xbf16>
    %410 = vector.shape_cast %409 : vector<1x128x128xbf16> to vector<128x128xbf16>
    %cst_166 = arith.constant dense<0.000000e+00> : vector<32x128xf32>
    %411 = tpu.matmul %408, %410, %cst_166 {dimension_numbers = #tpu.dot_dimension_numbers<[1], [0], [0], [1], [0, 0, 1, 1], [], []>} : vector<32x128xbf16>, vector<128x128xbf16>, vector<32x128xf32> -> vector<32x128xf32>
    %412 = arith.addf %411, %234 : vector<32x128xf32>
    %c1_167 = arith.constant 1 : index
    %c0_168 = arith.constant 0 : index
    %c0_169 = arith.constant 0 : index
    %413 = vector.load %arg12[%c1_167, %c0_168, %c0_169] : memref<2x1x128xf32, #tpu.memory_space<vmem>>, vector<1x1x128xf32>
    %414 = vector.shape_cast %413 : vector<1x1x128xf32> to vector<1x128xf32>
    %c1_170 = arith.constant 1 : index
    %c0_171 = arith.constant 0 : index
    %c0_172 = arith.constant 0 : index
    %415 = vector.load %arg13[%c1_170, %c0_171, %c0_172] : memref<2x1x128xf32, #tpu.memory_space<vmem>>, vector<1x1x128xf32>
    %416 = vector.shape_cast %415 : vector<1x1x128xf32> to vector<1x128xf32>
    %cst_173 = arith.constant dense<0.000000e+00> : vector<32xf32>
    %417 = vector.multi_reduction <add>, %412, %cst_173 [1] : vector<32x128xf32> to vector<32xf32>
    %418 = vector.shape_cast %417 : vector<32xf32> to vector<32x1xf32>
    %cst_174 = arith.constant 1.280000e+02 : f32
    %419 = vector.broadcast %cst_174 : f32 to vector<32x1xf32>
    %420 = arith.divf %418, %419 : vector<32x1xf32>
    %421 = vector.broadcast %420 : vector<32x1xf32> to vector<32x128xf32>
    %422 = arith.subf %412, %421 : vector<32x128xf32>
    %423 = arith.mulf %422, %422 : vector<32x128xf32>
    %cst_175 = arith.constant dense<0.000000e+00> : vector<32xf32>
    %424 = vector.multi_reduction <add>, %423, %cst_175 [1] : vector<32x128xf32> to vector<32xf32>
    %425 = vector.shape_cast %424 : vector<32xf32> to vector<32x1xf32>
    %cst_176 = arith.constant 1.280000e+02 : f32
    %426 = vector.broadcast %cst_176 : f32 to vector<32x1xf32>
    %427 = arith.divf %425, %426 : vector<32x1xf32>
    %428 = vector.broadcast %420 : vector<32x1xf32> to vector<32x128xf32>
    %429 = arith.subf %412, %428 : vector<32x128xf32>
    %cst_177 = arith.constant 9.99999974E-6 : f32
    %430 = vector.broadcast %cst_177 : f32 to vector<32x1xf32>
    %431 = arith.addf %427, %430 : vector<32x1xf32>
    %432 = math.rsqrt %431 : vector<32x1xf32>
    %433 = vector.broadcast %432 : vector<32x1xf32> to vector<32x128xf32>
    %434 = arith.mulf %429, %433 : vector<32x128xf32>
    %435 = vector.broadcast %414 : vector<1x128xf32> to vector<32x128xf32>
    %436 = arith.mulf %434, %435 : vector<32x128xf32>
    %437 = vector.broadcast %416 : vector<1x128xf32> to vector<32x128xf32>
    %438 = arith.addf %436, %437 : vector<32x128xf32>
    %439 = arith.truncf %438 : vector<32x128xf32> to vector<32x128xbf16>
    %c1_178 = arith.constant 1 : index
    %c0_179 = arith.constant 0 : index
    %c0_180 = arith.constant 0 : index
    %440 = vector.load %arg14[%c1_178, %c0_179, %c0_180] : memref<2x128x256xbf16, #tpu.memory_space<vmem>>, vector<1x128x256xbf16>
    %441 = vector.shape_cast %440 : vector<1x128x256xbf16> to vector<128x256xbf16>
    %cst_181 = arith.constant dense<0.000000e+00> : vector<32x256xf32>
    %442 = tpu.matmul %439, %441, %cst_181 {dimension_numbers = #tpu.dot_dimension_numbers<[1], [0], [0], [1], [0, 0, 1, 1], [], []>} : vector<32x128xbf16>, vector<128x256xbf16>, vector<32x256xf32> -> vector<32x256xf32>
    %c1_182 = arith.constant 1 : index
    %c0_183 = arith.constant 0 : index
    %c0_184 = arith.constant 0 : index
    %443 = vector.load %arg15[%c1_182, %c0_183, %c0_184] : memref<2x1x256xf32, #tpu.memory_space<vmem>>, vector<1x1x256xf32>
    %444 = vector.shape_cast %443 : vector<1x1x256xf32> to vector<1x256xf32>
    %445 = vector.broadcast %444 : vector<1x256xf32> to vector<32x256xf32>
    %446 = arith.addf %442, %445 : vector<32x256xf32>
    %cst_185 = arith.constant 5.000000e-01 : f32
    %447 = vector.broadcast %cst_185 : f32 to vector<32x256xf32>
    %448 = arith.mulf %447, %446 : vector<32x256xf32>
    %cst_186 = arith.constant 0.707106769 : f32
    %449 = vector.broadcast %cst_186 : f32 to vector<32x256xf32>
    %450 = arith.mulf %446, %449 : vector<32x256xf32>
    %451 = math.erf %450 : vector<32x256xf32>
    %cst_187 = arith.constant 1.000000e+00 : f32
    %452 = vector.broadcast %cst_187 : f32 to vector<32x256xf32>
    %453 = arith.addf %452, %451 : vector<32x256xf32>
    %454 = arith.mulf %448, %453 : vector<32x256xf32>
    %455 = arith.truncf %454 : vector<32x256xf32> to vector<32x256xbf16>
    %c1_188 = arith.constant 1 : index
    %c0_189 = arith.constant 0 : index
    %c0_190 = arith.constant 0 : index
    %456 = vector.load %arg16[%c1_188, %c0_189, %c0_190] : memref<2x256x128xbf16, #tpu.memory_space<vmem>>, vector<1x256x128xbf16>
    %457 = vector.shape_cast %456 : vector<1x256x128xbf16> to vector<256x128xbf16>
    %cst_191 = arith.constant dense<0.000000e+00> : vector<32x128xf32>
    %458 = tpu.matmul %455, %457, %cst_191 {dimension_numbers = #tpu.dot_dimension_numbers<[1], [0], [0], [1], [0, 0, 1, 1], [], []>} : vector<32x256xbf16>, vector<256x128xbf16>, vector<32x128xf32> -> vector<32x128xf32>
    %c1_192 = arith.constant 1 : index
    %c0_193 = arith.constant 0 : index
    %c0_194 = arith.constant 0 : index
    %459 = vector.load %arg17[%c1_192, %c0_193, %c0_194] : memref<2x1x128xf32, #tpu.memory_space<vmem>>, vector<1x1x128xf32>
    %460 = vector.shape_cast %459 : vector<1x1x128xf32> to vector<1x128xf32>
    %461 = vector.broadcast %460 : vector<1x128xf32> to vector<32x128xf32>
    %462 = arith.addf %458, %461 : vector<32x128xf32>
    %463 = arith.addf %462, %412 : vector<32x128xf32>
    %c1_195 = arith.constant 1 : index
    %c0_196 = arith.constant 0 : index
    %c0_197 = arith.constant 0 : index
    %464 = vector.load %arg21[%c1_195, %c0_196, %c0_197] : memref<2x32x128xf32, #tpu.memory_space<vmem>>, vector<1x32x128xf32>
    %465 = vector.shape_cast %464 : vector<1x32x128xf32> to vector<32x128xf32>
    %466 = vector.shape_cast %463 : vector<32x128xf32> to vector<1x32x128xf32>
    tpu.vector_store %arg21[%c1_195, %c0_196, %c0_197], %466 {strides = array<i32>} : memref<2x32x128xf32, #tpu.memory_space<vmem>>, vector<1x32x128xf32>,
    %c0_198 = arith.constant 0 : index
    %c0_199 = arith.constant 0 : index
    %467 = vector.load %arg18[%c0_198, %c0_199] : memref<1x128xf32, #tpu.memory_space<vmem>>, vector<1x128xf32>
    %c0_200 = arith.constant 0 : index
    %c0_201 = arith.constant 0 : index
    %468 = vector.load %arg19[%c0_200, %c0_201] : memref<1x128xf32, #tpu.memory_space<vmem>>, vector<1x128xf32>
    %cst_202 = arith.constant dense<0.000000e+00> : vector<32xf32>
    %469 = vector.multi_reduction <add>, %463, %cst_202 [1] : vector<32x128xf32> to vector<32xf32>
    %470 = vector.shape_cast %469 : vector<32xf32> to vector<32x1xf32>
    %cst_203 = arith.constant 1.280000e+02 : f32
    %471 = vector.broadcast %cst_203 : f32 to vector<32x1xf32>
    %472 = arith.divf %470, %471 : vector<32x1xf32>
    %473 = vector.broadcast %472 : vector<32x1xf32> to vector<32x128xf32>
    %474 = arith.subf %463, %473 : vector<32x128xf32>
    %475 = arith.mulf %474, %474 : vector<32x128xf32>
    %cst_204 = arith.constant dense<0.000000e+00> : vector<32xf32>
    %476 = vector.multi_reduction <add>, %475, %cst_204 [1] : vector<32x128xf32> to vector<32xf32>
    %477 = vector.shape_cast %476 : vector<32xf32> to vector<32x1xf32>
    %cst_205 = arith.constant 1.280000e+02 : f32
    %478 = vector.broadcast %cst_205 : f32 to vector<32x1xf32>
    %479 = arith.divf %477, %478 : vector<32x1xf32>
    %480 = vector.broadcast %472 : vector<32x1xf32> to vector<32x128xf32>
    %481 = arith.subf %463, %480 : vector<32x128xf32>
    %cst_206 = arith.constant 9.99999974E-6 : f32
    %482 = vector.broadcast %cst_206 : f32 to vector<32x1xf32>
    %483 = arith.addf %479, %482 : vector<32x1xf32>
    %484 = math.rsqrt %483 : vector<32x1xf32>
    %485 = vector.broadcast %484 : vector<32x1xf32> to vector<32x128xf32>
    %486 = arith.mulf %481, %485 : vector<32x128xf32>
    %487 = vector.broadcast %467 : vector<1x128xf32> to vector<32x128xf32>
    %488 = arith.mulf %486, %487 : vector<32x128xf32>
    %489 = vector.broadcast %468 : vector<1x128xf32> to vector<32x128xf32>
    %490 = arith.addf %488, %489 : vector<32x128xf32>
    %c0_207 = arith.constant 0 : index
    %c0_208 = arith.constant 0 : index
    %491 = vector.load %arg20[%c0_207, %c0_208] : memref<32x128xf32, #tpu.memory_space<vmem>>, vector<32x128xf32>
    tpu.vector_store %arg20[%c0_207, %c0_208], %490 {strides = array<i32>} : memref<32x128xf32, #tpu.memory_space<vmem>>, vector<32x128xf32>,
    return
  }
  func.func @transform_0(%arg0: i32) -> (i32, i32) {
    %c0_i32 = arith.constant 0 : i32
    %c0_i32_0 = arith.constant 0 : i32
    return %arg0, %c0_i32 : i32, i32
  }
  func.func @transform_1(%arg0: i32) -> (i32, i32) {
    %c0_i32 = arith.constant 0 : i32
    %c0_i32_0 = arith.constant 0 : i32
    return %arg0, %c0_i32 : i32, i32
  }
  func.func @transform_2(%arg0: i32) -> (i32, i32) {
    %c0_i32 = arith.constant 0 : i32
    %c0_i32_0 = arith.constant 0 : i32
    %c0_i32_1 = arith.constant 0 : i32
    return %c0_i32, %c0_i32_0 : i32, i32
  }
  func.func @transform_3(%arg0: i32) -> (i32, i32) {
    %c0_i32 = arith.constant 0 : i32
    %c0_i32_0 = arith.constant 0 : i32
    %c0_i32_1 = arith.constant 0 : i32
    return %c0_i32, %c0_i32_0 : i32, i32
  }
  func.func @transform_4(%arg0: i32) -> (i32, i32, i32) {
    %c0_i32 = arith.constant 0 : i32
    %c0_i32_0 = arith.constant 0 : i32
    %c0_i32_1 = arith.constant 0 : i32
    %c0_i32_2 = arith.constant 0 : i32
    return %c0_i32, %c0_i32_0, %c0_i32_1 : i32, i32, i32
  }
  func.func @transform_5(%arg0: i32) -> (i32, i32, i32) {
    %c0_i32 = arith.constant 0 : i32
    %c0_i32_0 = arith.constant 0 : i32
    %c0_i32_1 = arith.constant 0 : i32
    %c0_i32_2 = arith.constant 0 : i32
    return %c0_i32, %c0_i32_0, %c0_i32_1 : i32, i32, i32
  }
  func.func @transform_6(%arg0: i32) -> (i32, i32, i32) {
    %c0_i32 = arith.constant 0 : i32
    %c0_i32_0 = arith.constant 0 : i32
    %c0_i32_1 = arith.constant 0 : i32
    %c0_i32_2 = arith.constant 0 : i32
    return %c0_i32, %c0_i32_0, %c0_i32_1 : i32, i32, i32
  }
  func.func @transform_7(%arg0: i32) -> (i32, i32, i32) {
    %c0_i32 = arith.constant 0 : i32
    %c0_i32_0 = arith.constant 0 : i32
    %c0_i32_1 = arith.constant 0 : i32
    %c0_i32_2 = arith.constant 0 : i32
    return %c0_i32, %c0_i32_0, %c0_i32_1 : i32, i32, i32
  }
  func.func @transform_8(%arg0: i32) -> (i32, i32, i32) {
    %c0_i32 = arith.constant 0 : i32
    %c0_i32_0 = arith.constant 0 : i32
    %c0_i32_1 = arith.constant 0 : i32
    %c0_i32_2 = arith.constant 0 : i32
    return %c0_i32, %c0_i32_0, %c0_i32_1 : i32, i32, i32
  }
  func.func @transform_9(%arg0: i32) -> (i32, i32, i32) {
    %c0_i32 = arith.constant 0 : i32
    %c0_i32_0 = arith.constant 0 : i32
    %c0_i32_1 = arith.constant 0 : i32
    %c0_i32_2 = arith.constant 0 : i32
    return %c0_i32, %c0_i32_0, %c0_i32_1 : i32, i32, i32
  }
  func.func @transform_10(%arg0: i32) -> (i32, i32, i32) {
    %c0_i32 = arith.constant 0 : i32
    %c0_i32_0 = arith.constant 0 : i32
    %c0_i32_1 = arith.constant 0 : i32
    %c0_i32_2 = arith.constant 0 : i32
    return %c0_i32, %c0_i32_0, %c0_i32_1 : i32, i32, i32
  }
  func.func @transform_11(%arg0: i32) -> (i32, i32, i32) {
    %c0_i32 = arith.constant 0 : i32
    %c0_i32_0 = arith.constant 0 : i32
    %c0_i32_1 = arith.constant 0 : i32
    %c0_i32_2 = arith.constant 0 : i32
    return %c0_i32, %c0_i32_0, %c0_i32_1 : i32, i32, i32
  }
  func.func @transform_12(%arg0: i32) -> (i32, i32, i32) {
    %c0_i32 = arith.constant 0 : i32
    %c0_i32_0 = arith.constant 0 : i32
    %c0_i32_1 = arith.constant 0 : i32
    %c0_i32_2 = arith.constant 0 : i32
    return %c0_i32, %c0_i32_0, %c0_i32_1 : i32, i32, i32
  }
  func.func @transform_13(%arg0: i32) -> (i32, i32, i32) {
    %c0_i32 = arith.constant 0 : i32
    %c0_i32_0 = arith.constant 0 : i32
    %c0_i32_1 = arith.constant 0 : i32
    %c0_i32_2 = arith.constant 0 : i32
    return %c0_i32, %c0_i32_0, %c0_i32_1 : i32, i32, i32
  }
  func.func @transform_14(%arg0: i32) -> (i32, i32, i32) {
    %c0_i32 = arith.constant 0 : i32
    %c0_i32_0 = arith.constant 0 : i32
    %c0_i32_1 = arith.constant 0 : i32
    %c0_i32_2 = arith.constant 0 : i32
    return %c0_i32, %c0_i32_0, %c0_i32_1 : i32, i32, i32
  }
  func.func @transform_15(%arg0: i32) -> (i32, i32, i32) {
    %c0_i32 = arith.constant 0 : i32
    %c0_i32_0 = arith.constant 0 : i32
    %c0_i32_1 = arith.constant 0 : i32
    %c0_i32_2 = arith.constant 0 : i32
    return %c0_i32, %c0_i32_0, %c0_i32_1 : i32, i32, i32
  }
  func.func @transform_16(%arg0: i32) -> (i32, i32, i32) {
    %c0_i32 = arith.constant 0 : i32
    %c0_i32_0 = arith.constant 0 : i32
    %c0_i32_1 = arith.constant 0 : i32
    %c0_i32_2 = arith.constant 0 : i32
    return %c0_i32, %c0_i32_0, %c0_i32_1 : i32, i32, i32
  }
  func.func @transform_17(%arg0: i32) -> (i32, i32) {
    %c0_i32 = arith.constant 0 : i32
    %c0_i32_0 = arith.constant 0 : i32
    %c0_i32_1 = arith.constant 0 : i32
    return %c0_i32, %c0_i32_0 : i32, i32
  }
  func.func @transform_18(%arg0: i32) -> (i32, i32) {
    %c0_i32 = arith.constant 0 : i32
    %c0_i32_0 = arith.constant 0 : i32
    %c0_i32_1 = arith.constant 0 : i32
    return %c0_i32, %c0_i32_0 : i32, i32
  }
  func.func @transform_19(%arg0: i32) -> (i32, i32) {
    %c0_i32 = arith.constant 0 : i32
    %c0_i32_0 = arith.constant 0 : i32
    return %arg0, %c0_i32 : i32, i32
  }
  func.func @transform_20(%arg0: i32) -> (i32, i32, i32) {
    %c0_i32 = arith.constant 0 : i32
    %c0_i32_0 = arith.constant 0 : i32
    %c0_i32_1 = arith.constant 0 : i32
    return %c0_i32, %arg0, %c0_i32_0 : i32, i32, i32
  }
}

</mosaic_0001>

<llo_original>
// kernel: tpu_custom_call.1
$region0: #{tpu_custom_call.1}
  #allocation0 [shape = 'u32[]', space=smem, size = 0x4, offset = 0x4, fixed_abs, tag = 'smem constant byte address 0x4 - core index']
  #allocation1 [shape = 'u32[144,128]{1,0:T(1,128)}', space=vmem, size = 0x12000, scoped, tag = 'internal scratch']
  %s0 = inlined_call_operand.hbm [shape: f32[32,64], index: 0, kind: input, shape index: {}]
  %s1 = inlined_call_operand.hbm [shape: f32[32,128], index: 1, kind: input, shape index: {}]
  %s2 = inlined_call_operand.hbm [shape: bf16[64,128], index: 2, kind: input, shape index: {}]
  %s3 = inlined_call_operand.hbm [shape: f32[1,128], index: 3, kind: input, shape index: {}]
  %s4 = inlined_call_operand.hbm [shape: f32[4,32,32], index: 4, kind: input, shape index: {}]
  %s5 = inlined_call_operand.hbm [shape: f32[2,1,128], index: 5, kind: input, shape index: {}]
  %s6 = inlined_call_operand.hbm [shape: f32[2,1,128], index: 6, kind: input, shape index: {}]
  %s7 = inlined_call_operand.hbm [shape: bf16[2,128,512], index: 7, kind: input, shape index: {}]
  %s8 = inlined_call_operand.hbm [shape: bf16[2,128,128], index: 8, kind: input, shape index: {}]
  %s9 = inlined_call_operand.hbm [shape: f32[2,1,128], index: 9, kind: input, shape index: {}]
  %s10 = inlined_call_operand.hbm [shape: f32[2,1,128], index: 10, kind: input, shape index: {}]
  %s11 = inlined_call_operand.hbm [shape: f32[2,1,128], index: 11, kind: input, shape index: {}]
  %s12 = inlined_call_operand.hbm [shape: f32[2,1,128], index: 12, kind: input, shape index: {}]
  %s13 = inlined_call_operand.hbm [shape: bf16[2,128,256], index: 13, kind: input, shape index: {}]
  %s14 = inlined_call_operand.hbm [shape: f32[2,1,256], index: 14, kind: input, shape index: {}]
  %s15 = inlined_call_operand.hbm [shape: bf16[2,256,128], index: 15, kind: input, shape index: {}]
  %s16 = inlined_call_operand.hbm [shape: f32[2,1,128], index: 16, kind: input, shape index: {}]
  %s17 = inlined_call_operand.hbm [shape: f32[1,128], index: 17, kind: input, shape index: {}]
  %s18 = inlined_call_operand.hbm [shape: f32[1,128], index: 18, kind: input, shape index: {}]
  %s19 = inlined_call_operand.hbm [shape: f32[32,128], index: 19, kind: output, shape index: {0}]
  %s20 = inlined_call_operand.hbm [shape: f32[2,32,128], index: 20, kind: output, shape index: {1}]
  %21 = xla_tuple %s19, %s20
  %s22 = sld [smem:[#allocation0]]
  $region170: #{tpu_custom_call.1} parent=0
    _
  %s24 = ssub.s32 1, %s22
  %s25 = scalar_select 0, %s24, %s22
  $region1: #{tpu_custom_call.1} parent=0
    #allocation2 [shape = 'u8[16384]{0}', space=vmem, size = 0x4000, scoped, tag = 'input window, operand 0, single buffered']
    #allocation3 [shape = 's32[1]{0}', space=sflag, size = 0x4, scoped, tag = 'scoped memory for tpu_custom_call.1']
    #allocation4 [shape = 's32[1]{0}', space=sflag, size = 0x4, scoped, tag = 'scoped memory for tpu_custom_call.1']
    #allocation5 [shape = 'u8[16384]{0}', space=vmem, size = 0x4000, scoped, tag = 'input window, operand 1, single buffered']
    #allocation6 [shape = 's32[1]{0}', space=sflag, size = 0x4, scoped, tag = 'scoped memory for tpu_custom_call.1']
    #allocation7 [shape = 'u8[16384]{0}', space=vmem, size = 0x4000, scoped, tag = 'input window, operand 2, single buffered']
    #allocation8 [shape = 'u8[512]{0}', space=vmem, size = 0x400, scoped, tag = 'input window, operand 3, single buffered']
    #allocation9 [shape = 's32[1]{0}', space=sflag, size = 0x4, scoped, tag = 'scoped memory for tpu_custom_call.1']
    #allocation10 [shape = 'u8[65536]{0}', space=vmem, size = 0x10000, scoped, tag = 'input window, operand 4, single buffered']
    #allocation11 [shape = 'u8[1024]{0}', space=vmem, size = 0x400, scoped, tag = 'input window, operand 5, single buffered']
    #allocation12 [shape = 's32[1]{0}', space=sflag, size = 0x4, scoped, tag = 'scoped memory for tpu_custom_call.1']
    #allocation13 [shape = 'u8[1024]{0}', space=vmem, size = 0x400, scoped, tag = 'input window, operand 6, single buffered']
    #allocation14 [shape = 'u8[262144]{0}', space=vmem, size = 0x40000, scoped, tag = 'input window, operand 7, single buffered']
    #allocation15 [shape = 's32[1]{0}', space=sflag, size = 0x4, scoped, tag = 'scoped memory for tpu_custom_call.1']
    #allocation16 [shape = 'u8[65536]{0}', space=vmem, size = 0x10000, scoped, tag = 'input window, operand 8, single buffered']
    #allocation17 [shape = 'u8[1024]{0}', space=vmem, size = 0x400, scoped, tag = 'input window, operand 9, single buffered']
    #allocation18 [shape = 's32[1]{0}', space=sflag, size = 0x4, scoped, tag = 'scoped memory for tpu_custom_call.1']
    #allocation19 [shape = 'u8[1024]{0}', space=vmem, size = 0x400, scoped, tag = 'input window, operand 10, single buffered']
    #allocation20 [shape = 'u8[1024]{0}', space=vmem, size = 0x400, scoped, tag = 'input window, operand 11, single buffered']
    #allocation21 [shape = 's32[1]{0}', space=sflag, size = 0x4, scoped, tag = 'scoped memory for tpu_custom_call.1']
    #allocation22 [shape = 'u8[1024]{0}', space=vmem, size = 0x400, scoped, tag = 'input window, operand 12, single buffered']
    #allocation23 [shape = 'u8[131072]{0}', space=vmem, size = 0x20000, scoped, tag = 'input window, operand 13, single buffered']
    #allocation24 [shape = 's32[1]{0}', space=sflag, size = 0x4, scoped, tag = 'scoped memory for tpu_custom_call.1']
    #allocation25 [shape = 'u8[2048]{0}', space=vmem, size = 0x800, scoped, tag = 'input window, operand 14, single buffered']
    #allocation26 [shape = 'u8[131072]{0}', space=vmem, size = 0x20000, scoped, tag = 'input window, operand 15, single buffered']
    #allocation27 [shape = 's32[1]{0}', space=sflag, size = 0x4, scoped, tag = 'scoped memory for tpu_custom_call.1']
    #allocation28 [shape = 'u8[1024]{0}', space=vmem, size = 0x400, scoped, tag = 'input window, operand 16, single buffered']
    #allocation29 [shape = 'u8[512]{0}', space=vmem, size = 0x400, scoped, tag = 'input window, operand 17, single buffered']
    #allocation30 [shape = 's32[1]{0}', space=sflag, size = 0x4, scoped, tag = 'scoped memory for tpu_custom_call.1']
    #allocation31 [shape = 'u8[512]{0}', space=vmem, size = 0x400, scoped, tag = 'input window, operand 18, single buffered']
    #allocation32 [shape = 'u8[16384]{0}', space=vmem, size = 0x4000, scoped, tag = 'output window, operand 0, single buffered']
    #allocation33 [shape = 'u8[32768]{0}', space=vmem, size = 0x8000, scoped, tag = 'output window, operand 1, single buffered']
    #allocation34 [shape = 's32[1]{0}', space=sflag, size = 0x4, scoped, tag = 'scoped memory for tpu_custom_call.1']
    %26 = vsyncpa [#allocation3], 0
    %27 = vsyncpa [#allocation6], 0
    %28 = vsyncpa [#allocation9], 0
    %29 = vsyncpa [#allocation12], 0
    %30 = vsyncpa [#allocation15], 0
    %31 = vsyncpa [#allocation18], 0
    %32 = vsyncpa [#allocation21], 0
    %33 = vsyncpa [#allocation24], 0
    %34 = vsyncpa [#allocation27], 0
    %35 = vsyncpa [#allocation30], 0
    %36 = vsyncpa [#allocation4], 0
    %37 = vsyncpa [#allocation34], 0
    // Predicated region
    $region2: #{tpu_custom_call.1} parent=1 // pred_check
      _
    $region3: #{tpu_custom_call.1} parent=1 // pred_check_branch
      %39 = sbr.rel (0) target = $region5
    $region4: #{tpu_custom_call.1} parent=1 // pred_region
      %s41 = ssub.s32 512, 512
      %42 = vsyncadd [#allocation3], %s41
      %s43 = sshll.u32 [#allocation2], 4
      %s44 = int_to_ptr.vmem [resolvable:$true] %s43
      %49 = dma.hbm_to_vmem [thread:$0]  %s0, 512, %s44, [#allocation3], 128, 128, 8
    $region5: #{tpu_custom_call.1} parent=1 // pred_fallthru
      _
    // Predicated region
    $region6: #{tpu_custom_call.1} parent=1 // pred_check
      _
    $region7: #{tpu_custom_call.1} parent=1 // pred_check_branch
      %51 = sbr.rel (0) target = $region9
    $region8: #{tpu_custom_call.1} parent=1 // pred_region
      %s53 = ssub.s32 512, 512
      %54 = vsyncadd [#allocation6], %s53
      %s55 = sshll.u32 [#allocation5], 4
      %s56 = int_to_ptr.vmem [resolvable:$true] %s55
      %61 = dma.hbm_to_vmem [thread:$0]  %s1, 512, %s56, [#allocation6], 128, 128, 8
    $region9: #{tpu_custom_call.1} parent=1 // pred_fallthru
      _
    // Predicated region
    $region10: #{tpu_custom_call.1} parent=1 // pred_check
      _
    $region11: #{tpu_custom_call.1} parent=1 // pred_check_branch
      %63 = sbr.rel (0) target = $region13
    $region12: #{tpu_custom_call.1} parent=1 // pred_region
      %s65 = ssub.s32 512, 512
      %66 = vsyncadd [#allocation6], %s65
      %s67 = sshll.u32 [#allocation7], 4
      %s68 = int_to_ptr.vmem [resolvable:$true] %s67
      %73 = dma.hbm_to_vmem [thread:$0]  %s2, 512, %s68, [#allocation6], 64, 64, 4
    $region13: #{tpu_custom_call.1} parent=1 // pred_fallthru
      _
    // Predicated region
    $region14: #{tpu_custom_call.1} parent=1 // pred_check
      _
    $region15: #{tpu_custom_call.1} parent=1 // pred_check_branch
      %75 = sbr.rel (0) target = $region17
    $region16: #{tpu_custom_call.1} parent=1 // pred_region
      %s77 = ssub.s32 16, 16
      %78 = vsyncadd [#allocation9], %s77
      %s80 = sshll.u32 [#allocation8], 4
      %s81 = int_to_ptr.vmem [resolvable:$true] %s80
      %83 = dma.hbm_to_vmem [thread:$0]  %s3, 16, %s81, [#allocation9]
    $region17: #{tpu_custom_call.1} parent=1 // pred_fallthru
      _
    // Predicated region
    $region18: #{tpu_custom_call.1} parent=1 // pred_check
      _
    $region19: #{tpu_custom_call.1} parent=1 // pred_check_branch
      %85 = sbr.rel (0) target = $region21
    $region20: #{tpu_custom_call.1} parent=1 // pred_region
      %s87 = ssub.s32 2048, 2048
      %88 = vsyncadd [#allocation9], %s87
      %s89 = sshll.u32 [#allocation10], 4
      %s90 = int_to_ptr.vmem [resolvable:$true] %s89
      %95 = dma.hbm_to_vmem [thread:$0]  %s4, 2048, %s90, [#allocation9], 128, 128, 8
    $region21: #{tpu_custom_call.1} parent=1 // pred_fallthru
      _
    // Predicated region
    $region22: #{tpu_custom_call.1} parent=1 // pred_check
      _
    $region23: #{tpu_custom_call.1} parent=1 // pred_check_branch
      %97 = sbr.rel (0) target = $region25
    $region24: #{tpu_custom_call.1} parent=1 // pred_region
      %s99 = ssub.s32 32, 32
      %100 = vsyncadd [#allocation12], %s99
      %s101 = sshll.u32 [#allocation11], 4
      %s102 = int_to_ptr.vmem [resolvable:$true] %s101
      %107 = dma.hbm_to_vmem [thread:$0]  %s5, 32, %s102, [#allocation12], 16, 16, 1
    $region25: #{tpu_custom_call.1} parent=1 // pred_fallthru
      _
    // Predicated region
    $region26: #{tpu_custom_call.1} parent=1 // pred_check
      _
    $region27: #{tpu_custom_call.1} parent=1 // pred_check_branch
      %109 = sbr.rel (0) target = $region29
    $region28: #{tpu_custom_call.1} parent=1 // pred_region
      %s111 = ssub.s32 32, 32
      %112 = vsyncadd [#allocation12], %s111
      %s113 = sshll.u32 [#allocation13], 4
      %s114 = int_to_ptr.vmem [resolvable:$true] %s113
      %119 = dma.hbm_to_vmem [thread:$0]  %s6, 32, %s114, [#allocation12], 16, 16, 1
    $region29: #{tpu_custom_call.1} parent=1 // pred_fallthru
      _
    // Predicated region
    $region30: #{tpu_custom_call.1} parent=1 // pred_check
      _
    $region31: #{tpu_custom_call.1} parent=1 // pred_check_branch
      %121 = sbr.rel (0) target = $region33
    $region32: #{tpu_custom_call.1} parent=1 // pred_region
      %s123 = ssub.s32 8192, 8192
      %124 = vsyncadd [#allocation15], %s123
      %s125 = sshll.u32 [#allocation14], 4
      %s126 = int_to_ptr.vmem [resolvable:$true] %s125
      %131 = dma.hbm_to_vmem [thread:$0]  %s7, 8192, %s126, [#allocation15], 256, 256, 16
    $region33: #{tpu_custom_call.1} parent=1 // pred_fallthru
      _
    // Predicated region
    $region34: #{tpu_custom_call.1} parent=1 // pred_check
      _
    $region35: #{tpu_custom_call.1} parent=1 // pred_check_branch
      %133 = sbr.rel (0) target = $region37
    $region36: #{tpu_custom_call.1} parent=1 // pred_region
      %s135 = ssub.s32 2048, 2048
      %136 = vsyncadd [#allocation15], %s135
      %s137 = sshll.u32 [#allocation16], 4
      %s138 = int_to_ptr.vmem [resolvable:$true] %s137
      %143 = dma.hbm_to_vmem [thread:$0]  %s8, 2048, %s138, [#allocation15], 64, 64, 4
    $region37: #{tpu_custom_call.1} parent=1 // pred_fallthru
      _
    // Predicated region
    $region38: #{tpu_custom_call.1} parent=1 // pred_check
      _
    $region39: #{tpu_custom_call.1} parent=1 // pred_check_branch
      %145 = sbr.rel (0) target = $region41
    $region40: #{tpu_custom_call.1} parent=1 // pred_region
      %s147 = ssub.s32 32, 32
      %148 = vsyncadd [#allocation18], %s147
      %s149 = sshll.u32 [#allocation17], 4
      %s150 = int_to_ptr.vmem [resolvable:$true] %s149
      %155 = dma.hbm_to_vmem [thread:$0]  %s9, 32, %s150, [#allocation18], 16, 16, 1
    $region41: #{tpu_custom_call.1} parent=1 // pred_fallthru
      _
    // Predicated region
    $region42: #{tpu_custom_call.1} parent=1 // pred_check
      _
    $region43: #{tpu_custom_call.1} parent=1 // pred_check_branch
      %157 = sbr.rel (0) target = $region45
    $region44: #{tpu_custom_call.1} parent=1 // pred_region
      %s159 = ssub.s32 32, 32
      %160 = vsyncadd [#allocation18], %s159
      %s161 = sshll.u32 [#allocation19], 4
      %s162 = int_to_ptr.vmem [resolvable:$true] %s161
      %167 = dma.hbm_to_vmem [thread:$0]  %s10, 32, %s162, [#allocation18], 16, 16, 1
    $region45: #{tpu_custom_call.1} parent=1 // pred_fallthru
      _
    // Predicated region
    $region46: #{tpu_custom_call.1} parent=1 // pred_check
      _
    $region47: #{tpu_custom_call.1} parent=1 // pred_check_branch
      %169 = sbr.rel (0) target = $region49
    $region48: #{tpu_custom_call.1} parent=1 // pred_region
      %s171 = ssub.s32 32, 32
      %172 = vsyncadd [#allocation21], %s171
      %s173 = sshll.u32 [#allocation20], 4
      %s174 = int_to_ptr.vmem [resolvable:$true] %s173
      %179 = dma.hbm_to_vmem [thread:$0]  %s11, 32, %s174, [#allocation21], 16, 16, 1
    $region49: #{tpu_custom_call.1} parent=1 // pred_fallthru
      _
    // Predicated region
    $region50: #{tpu_custom_call.1} parent=1 // pred_check
      _
    $region51: #{tpu_custom_call.1} parent=1 // pred_check_branch
      %181 = sbr.rel (0) target = $region53
    $region52: #{tpu_custom_call.1} parent=1 // pred_region
      %s183 = ssub.s32 32, 32
      %184 = vsyncadd [#allocation21], %s183
      %s185 = sshll.u32 [#allocation22], 4
      %s186 = int_to_ptr.vmem [resolvable:$true] %s185
      %191 = dma.hbm_to_vmem [thread:$0]  %s12, 32, %s186, [#allocation21], 16, 16, 1
    $region53: #{tpu_custom_call.1} parent=1 // pred_fallthru
      _
    // Predicated region
    $region54: #{tpu_custom_call.1} parent=1 // pred_check
      _
    $region55: #{tpu_custom_call.1} parent=1 // pred_check_branch
      %193 = sbr.rel (0) target = $region57
    $region56: #{tpu_custom_call.1} parent=1 // pred_region
      %s195 = ssub.s32 4096, 4096
      %196 = vsyncadd [#allocation24], %s195
      %s197 = sshll.u32 [#allocation23], 4
      %s198 = int_to_ptr.vmem [resolvable:$true] %s197
      %203 = dma.hbm_to_vmem [thread:$0]  %s13, 4096, %s198, [#allocation24], 128, 128, 8
    $region57: #{tpu_custom_call.1} parent=1 // pred_fallthru
      _
    // Predicated region
    $region58: #{tpu_custom_call.1} parent=1 // pred_check
      _
    $region59: #{tpu_custom_call.1} parent=1 // pred_check_branch
      %205 = sbr.rel (0) target = $region61
    $region60: #{tpu_custom_call.1} parent=1 // pred_region
      %s207 = ssub.s32 64, 64
      %208 = vsyncadd [#allocation24], %s207
      %s209 = sshll.u32 [#allocation25], 4
      %s210 = int_to_ptr.vmem [resolvable:$true] %s209
      %215 = dma.hbm_to_vmem [thread:$0]  %s14, 64, %s210, [#allocation24], 32, 32, 2
    $region61: #{tpu_custom_call.1} parent=1 // pred_fallthru
      _
    // Predicated region
    $region62: #{tpu_custom_call.1} parent=1 // pred_check
      _
    $region63: #{tpu_custom_call.1} parent=1 // pred_check_branch
      %217 = sbr.rel (0) target = $region65
    $region64: #{tpu_custom_call.1} parent=1 // pred_region
      %s219 = ssub.s32 4096, 4096
      %220 = vsyncadd [#allocation27], %s219
      %s221 = sshll.u32 [#allocation26], 4
      %s222 = int_to_ptr.vmem [resolvable:$true] %s221
      %227 = dma.hbm_to_vmem [thread:$0]  %s15, 4096, %s222, [#allocation27], 64, 64, 4
    $region65: #{tpu_custom_call.1} parent=1 // pred_fallthru
      _
    // Predicated region
    $region66: #{tpu_custom_call.1} parent=1 // pred_check
      _
    $region67: #{tpu_custom_call.1} parent=1 // pred_check_branch
      %229 = sbr.rel (0) target = $region69
    $region68: #{tpu_custom_call.1} parent=1 // pred_region
      %s231 = ssub.s32 32, 32
      %232 = vsyncadd [#allocation27], %s231
      %s233 = sshll.u32 [#allocation28], 4
      %s234 = int_to_ptr.vmem [resolvable:$true] %s233
      %239 = dma.hbm_to_vmem [thread:$0]  %s16, 32, %s234, [#allocation27], 16, 16, 1
    $region69: #{tpu_custom_call.1} parent=1 // pred_fallthru
      _
    // Predicated region
    $region70: #{tpu_custom_call.1} parent=1 // pred_check
      _
    $region71: #{tpu_custom_call.1} parent=1 // pred_check_branch
      %241 = sbr.rel (0) target = $region73
    $region72: #{tpu_custom_call.1} parent=1 // pred_region
      %s243 = ssub.s32 16, 16
      %244 = vsyncadd [#allocation30], %s243
      %s246 = sshll.u32 [#allocation29], 4
      %s247 = int_to_ptr.vmem [resolvable:$true] %s246
      %249 = dma.hbm_to_vmem [thread:$0]  %s17, 16, %s247, [#allocation30]
    $region73: #{tpu_custom_call.1} parent=1 // pred_fallthru
      _
    // Predicated region
    $region74: #{tpu_custom_call.1} parent=1 // pred_check
      _
    $region75: #{tpu_custom_call.1} parent=1 // pred_check_branch
      %251 = sbr.rel (0) target = $region77
    $region76: #{tpu_custom_call.1} parent=1 // pred_region
      %s253 = ssub.s32 16, 16
      %254 = vsyncadd [#allocation30], %s253
      %s256 = sshll.u32 [#allocation31], 4
      %s257 = int_to_ptr.vmem [resolvable:$true] %s256
      %259 = dma.hbm_to_vmem [thread:$0]  %s18, 16, %s257, [#allocation30]
    $region77: #{tpu_custom_call.1} parent=1 // pred_fallthru
      _
    // Predicated region
    $region78: #{tpu_custom_call.1} parent=1 // pred_check
      _
    $region79: #{tpu_custom_call.1} parent=1 // pred_check_branch
      %261 = sbr.rel (0) target = $region81
    $region80: #{tpu_custom_call.1} parent=1 // pred_region
      %262 = dma.done [#allocation3], 512
    $region81: #{tpu_custom_call.1} parent=1 // pred_fallthru
      _
    // Predicated region
    $region82: #{tpu_custom_call.1} parent=1 // pred_check
      _
    $region83: #{tpu_custom_call.1} parent=1 // pred_check_branch
      %264 = sbr.rel (0) target = $region85
    $region84: #{tpu_custom_call.1} parent=1 // pred_region
      %265 = dma.done [#allocation6], 512
    $region85: #{tpu_custom_call.1} parent=1 // pred_fallthru
      _
    // Predicated region
    $region86: #{tpu_custom_call.1} parent=1 // pred_check
      _
    $region87: #{tpu_custom_call.1} parent=1 // pred_check_branch
      %267 = sbr.rel (0) target = $region89
    $region88: #{tpu_custom_call.1} parent=1 // pred_region
      %268 = dma.done [#allocation6], 512
    $region89: #{tpu_custom_call.1} parent=1 // pred_fallthru
      _
    // Predicated region
    $region90: #{tpu_custom_call.1} parent=1 // pred_check
      _
    $region91: #{tpu_custom_call.1} parent=1 // pred_check_branch
      %270 = sbr.rel (0) target = $region93
    $region92: #{tpu_custom_call.1} parent=1 // pred_region
      %271 = dma.done [#allocation9], 16
    $region93: #{tpu_custom_call.1} parent=1 // pred_fallthru
      _
    // Predicated region
    $region94: #{tpu_custom_call.1} parent=1 // pred_check
      _
    $region95: #{tpu_custom_call.1} parent=1 // pred_check_branch
      %273 = sbr.rel (0) target = $region97
    $region96: #{tpu_custom_call.1} parent=1 // pred_region
      %274 = dma.done [#allocation9], 2048
    $region97: #{tpu_custom_call.1} parent=1 // pred_fallthru
      _
    // Predicated region
    $region98: #{tpu_custom_call.1} parent=1 // pred_check
      _
    $region99: #{tpu_custom_call.1} parent=1 // pred_check_branch
      %276 = sbr.rel (0) target = $region101
    $region100: #{tpu_custom_call.1} parent=1 // pred_region
      %277 = dma.done [#allocation12], 32
    $region101: #{tpu_custom_call.1} parent=1 // pred_fallthru
      _
    // Predicated region
    $region102: #{tpu_custom_call.1} parent=1 // pred_check
      _
    $region103: #{tpu_custom_call.1} parent=1 // pred_check_branch
      %279 = sbr.rel (0) target = $region105
    $region104: #{tpu_custom_call.1} parent=1 // pred_region
      %280 = dma.done [#allocation12], 32
    $region105: #{tpu_custom_call.1} parent=1 // pred_fallthru
      _
    // Predicated region
    $region106: #{tpu_custom_call.1} parent=1 // pred_check
      _
    $region107: #{tpu_custom_call.1} parent=1 // pred_check_branch
      %282 = sbr.rel (0) target = $region109
    $region108: #{tpu_custom_call.1} parent=1 // pred_region
      %283 = dma.done [#allocation15], 8192
    $region109: #{tpu_custom_call.1} parent=1 // pred_fallthru
      _
    // Predicated region
    $region110: #{tpu_custom_call.1} parent=1 // pred_check
      _
    $region111: #{tpu_custom_call.1} parent=1 // pred_check_branch
      %285 = sbr.rel (0) target = $region113
    $region112: #{tpu_custom_call.1} parent=1 // pred_region
      %286 = dma.done [#allocation15], 2048
    $region113: #{tpu_custom_call.1} parent=1 // pred_fallthru
      _
    // Predicated region
    $region114: #{tpu_custom_call.1} parent=1 // pred_check
      _
    $region115: #{tpu_custom_call.1} parent=1 // pred_check_branch
      %288 = sbr.rel (0) target = $region117
    $region116: #{tpu_custom_call.1} parent=1 // pred_region
      %289 = dma.done [#allocation18], 32
    $region117: #{tpu_custom_call.1} parent=1 // pred_fallthru
      _
    // Predicated region
    $region118: #{tpu_custom_call.1} parent=1 // pred_check
      _
    $region119: #{tpu_custom_call.1} parent=1 // pred_check_branch
      %291 = sbr.rel (0) target = $region121
    $region120: #{tpu_custom_call.1} parent=1 // pred_region
      %292 = dma.done [#allocation18], 32
    $region121: #{tpu_custom_call.1} parent=1 // pred_fallthru
      _
    // Predicated region
    $region122: #{tpu_custom_call.1} parent=1 // pred_check
      _
    $region123: #{tpu_custom_call.1} parent=1 // pred_check_branch
      %294 = sbr.rel (0) target = $region125
    $region124: #{tpu_custom_call.1} parent=1 // pred_region
      %295 = dma.done [#allocation21], 32
    $region125: #{tpu_custom_call.1} parent=1 // pred_fallthru
      _
    // Predicated region
    $region126: #{tpu_custom_call.1} parent=1 // pred_check
      _
    $region127: #{tpu_custom_call.1} parent=1 // pred_check_branch
      %297 = sbr.rel (0) target = $region129
    $region128: #{tpu_custom_call.1} parent=1 // pred_region
      %298 = dma.done [#allocation21], 32
    $region129: #{tpu_custom_call.1} parent=1 // pred_fallthru
      _
    // Predicated region
    $region130: #{tpu_custom_call.1} parent=1 // pred_check
      _
    $region131: #{tpu_custom_call.1} parent=1 // pred_check_branch
      %300 = sbr.rel (0) target = $region133
    $region132: #{tpu_custom_call.1} parent=1 // pred_region
      %301 = dma.done [#allocation24], 4096
    $region133: #{tpu_custom_call.1} parent=1 // pred_fallthru
      _
    // Predicated region
    $region134: #{tpu_custom_call.1} parent=1 // pred_check
      _
    $region135: #{tpu_custom_call.1} parent=1 // pred_check_branch
      %303 = sbr.rel (0) target = $region137
    $region136: #{tpu_custom_call.1} parent=1 // pred_region
      %304 = dma.done [#allocation24], 64
    $region137: #{tpu_custom_call.1} parent=1 // pred_fallthru
      _
    // Predicated region
    $region138: #{tpu_custom_call.1} parent=1 // pred_check
      _
    $region139: #{tpu_custom_call.1} parent=1 // pred_check_branch
      %306 = sbr.rel (0) target = $region141
    $region140: #{tpu_custom_call.1} parent=1 // pred_region
      %307 = dma.done [#allocation27], 4096
    $region141: #{tpu_custom_call.1} parent=1 // pred_fallthru
      _
    // Predicated region
    $region142: #{tpu_custom_call.1} parent=1 // pred_check
      _
    $region143: #{tpu_custom_call.1} parent=1 // pred_check_branch
      %309 = sbr.rel (0) target = $region145
    $region144: #{tpu_custom_call.1} parent=1 // pred_region
      %310 = dma.done [#allocation27], 32
    $region145: #{tpu_custom_call.1} parent=1 // pred_fallthru
      _
    // Predicated region
    $region146: #{tpu_custom_call.1} parent=1 // pred_check
      _
    $region147: #{tpu_custom_call.1} parent=1 // pred_check_branch
      %312 = sbr.rel (0) target = $region149
    $region148: #{tpu_custom_call.1} parent=1 // pred_region
      %313 = dma.done [#allocation30], 16
    $region149: #{tpu_custom_call.1} parent=1 // pred_fallthru
      _
    // Predicated region
    $region150: #{tpu_custom_call.1} parent=1 // pred_check
      _
    $region151: #{tpu_custom_call.1} parent=1 // pred_check_branch
      %315 = sbr.rel (0) target = $region153
    $region152: #{tpu_custom_call.1} parent=1 // pred_region
      %316 = dma.done [#allocation30], 16
    $region153: #{tpu_custom_call.1} parent=1 // pred_fallthru
      _
    %v318 = vld [vmem:[#allocation2] sm:$0xff]
    %v319 = vld [vmem:[#allocation2 + $0x8] sm:$0xff]
    %v320 = vld [vmem:[#allocation2 + $0x10] sm:$0xff]
    %v321 = vld [vmem:[#allocation2 + $0x18] sm:$0xff]
    %v322 = vpack.c.bf16 %v319, %v318
    %v323 = vpack.c.bf16 %v321, %v320
    %v324 = vld [vmem:[#allocation7] sm:$0xf]
    %v325 = vld [vmem:[#allocation7 + $0x4] sm:$0xf]
    %v326 = vld [vmem:[#allocation7 + $0x8] sm:$0xf]
    %v327 = vld [vmem:[#allocation7 + $0xc] sm:$0xf]
    %v328 = vld [vmem:[#allocation7 + $0x10] sm:$0xf]
    %v329 = vld [vmem:[#allocation7 + $0x14] sm:$0xf]
    %v330 = vld [vmem:[#allocation7 + $0x18] sm:$0xf]
    %v331 = vld [vmem:[#allocation7 + $0x1c] sm:$0xf]
    %v332 = vld [vmem:[#allocation8] sm:$0x1]
    %v334 = vlaneseq
    %v335 = vshrl.u32 %v334, 7
    %v336 = vsub.s32 0, %v335
    %v337 = vrot.slane %v332, %v336
    %v347 = vunpack.c.l.b16 %v324
    %v348 = vunpack.c.l.b16 %v325
    %v349 = vunpack.c.l.b16 %v326
    %v350 = vunpack.c.l.b16 %v327
    %v351 = vunpack.c.l.b16 %v328
    %v352 = vunpack.c.l.b16 %v329
    %v353 = vunpack.c.l.b16 %v330
    %v354 = vunpack.c.l.b16 %v331
    %v355 = vpack.c.b16 %v348, %v347
    %v356 = vpack.c.b16 %v350, %v349
    %v357 = vpack.c.b16 %v352, %v351
    %v358 = vpack.c.b16 %v354, %v353
    %vm363 = vcmask 523264
    %v365 = vsel %vm363, %v322, 0
    %v368 = vsel %vm363, %v323, 0
    %370 = vmatprep.subr.bf16.mxu0 0
    %371 = vmatpush1.bf16.msra.mxu0 %v355
    %372 = vmatprep.subr.bf16.mxu0 0
    %373 = vmatpush1.bf16.msra.mxu0 %v356
    %374 = vmatprep.subr.bf16.mxu0 0
    %375 = vmatpush1.bf16.msra.mxu0 %v357
    %376 = vmatprep.subr.bf16.mxu0 0
    %377 = vmatpush1.bf16.msra.mxu0 %v358
    %378 = vmatprep.subr.bf16.mxu0 0
    %379 = vmatpush1.bf16.msra.mxu0 0
    %380 = vmatprep.subr.bf16.mxu0 0
    %381 = vmatpush1.bf16.msra.mxu0 0
    %382 = vmatprep.subr.bf16.mxu0 0
    %383 = vmatpush1.bf16.msra.mxu0 0
    %384 = vmatprep.subr.bf16.mxu0 0
    %385 = vmatpush1.bf16.msra.mxu0 0
    %386 = vmatprep.subr.bf16.mxu0 0
    %387 = vmatpush1.bf16.msra.mxu0 0
    %388 = vmatprep.subr.bf16.mxu0 0
    %389 = vmatpush1.bf16.msra.mxu0 0
    %390 = vmatprep.subr.bf16.mxu0 0
    %391 = vmatpush1.bf16.msra.mxu0 0
    %392 = vmatprep.subr.bf16.mxu0 0
    %393 = vmatpush1.bf16.msra.mxu0 0
    %394 = vmatprep.subr.bf16.mxu0 0
    %395 = vmatpush1.bf16.msra.mxu0 0
    %396 = vmatprep.subr.bf16.mxu0 0
    %397 = vmatpush1.bf16.msra.mxu0 0
    %398 = vmatprep.subr.bf16.mxu0 0
    %399 = vmatpush1.bf16.msra.mxu0 0
    %400 = vmatprep.subr.bf16.mxu0 0
    %401 = vmatpush1.bf16.msra.mxu0 0
    %402 = vmatprep.mubr.bf16.mxu0 0
    %403 = vmatmul.mubr.bf16.gmra.mrb[0].mxu0 %v365
    %v404 = vpop.f32.mrb[0].mxu0
    %v405 = vadd.f32 %v337, %v404
    %v406 = vpop.f32.mrb[0].mxu0
    %v407 = vpop.f32.mrb[0].mxu0
    %v408 = vadd.f32 %v337, %v407
    %v409 = vpop.f32.mrb[0].mxu0
    %410 = vmatprep.mubr.bf16.mxu0 0
    %411 = vmatmul.mubr.bf16.gmra.mrb[0].mxu0 %v368
    %v412 = vpop.f32.mrb[0].mxu0
    %v413 = vadd.f32 %v337, %v412
    %v414 = vpop.f32.mrb[0].mxu0
    %v415 = vpop.f32.mrb[0].mxu0
    %v416 = vadd.f32 %v337, %v415
    %v417 = vpop.f32.mrb[0].mxu0
    %418 = vdwg.mxu0
    %v419 = vld [vmem:[#allocation5] sm:$0xff]
    %v420 = vld [vmem:[#allocation5 + $0x8] sm:$0xff]
    %v421 = vld [vmem:[#allocation5 + $0x10] sm:$0xff]
    %v422 = vld [vmem:[#allocation5 + $0x18] sm:$0xff]
    %v423 = vadd.f32 %v405, %v419
    %v424 = vadd.f32 %v408, %v420
    %v425 = vadd.f32 %v413, %v421
    %v426 = vadd.f32 %v416, %v422
    %v427 = vld [vmem:[#allocation11] sm:$0x1]
    %v428 = vld [vmem:[#allocation13] sm:$0x1]
    %429 = vadd.xlane.f32.xlu0 %v423
    %v430 = vpop.xlane.xlu0 %429
    %431 = vadd.xlane.f32.xlu0 %v424
    %v432 = vpop.xlane.xlu0 %431
    %433 = vadd.xlane.f32.xlu0 %v425
    %v434 = vpop.xlane.xlu0 %433
    %435 = vadd.xlane.f32.xlu0 %v426
    %v436 = vpop.xlane.xlu0 %435
    %v437 = vrcp.pop 128.0
    %v438 = vmul.f32 %v430, %v437
    %v439 = vmul.f32 %v432, %v437
    %v440 = vmul.f32 %v434, %v437
    %v441 = vmul.f32 %v436, %v437
    %v442 = vsub.f32 %v423, %v438
    %v443 = vsub.f32 %v424, %v439
    %v444 = vsub.f32 %v425, %v440
    %v445 = vsub.f32 %v426, %v441
    %v446 = vmul.f32 %v442, %v442
    %v447 = vmul.f32 %v443, %v443
    %v448 = vmul.f32 %v444, %v444
    %v449 = vmul.f32 %v445, %v445
    %450 = vadd.xlane.f32.xlu0 %v446
    %v451 = vpop.xlane.xlu0 %450
    %452 = vadd.xlane.f32.xlu0 %v447
    %v453 = vpop.xlane.xlu0 %452
    %454 = vadd.xlane.f32.xlu0 %v448
    %v455 = vpop.xlane.xlu0 %454
    %456 = vadd.xlane.f32.xlu0 %v449
    %v457 = vpop.xlane.xlu0 %456
    %v458 = vmul.f32 %v451, %v437
    %v459 = vmul.f32 %v453, %v437
    %v460 = vmul.f32 %v455, %v437
    %v461 = vmul.f32 %v457, %v437
    %v462 = vadd.f32 %v458, 1e-05
    %v463 = vadd.f32 %v459, 1e-05
    %v464 = vadd.f32 %v460, 1e-05
    %v465 = vadd.f32 %v461, 1e-05
    %v466 = vrsqrt.pop %v462
    %v467 = vrsqrt.pop %v463
    %v468 = vrsqrt.pop %v464
    %v469 = vrsqrt.pop %v465
    %v470 = vmul.f32 %v442, %v466
    %v471 = vmul.f32 %v443, %v467
    %v472 = vmul.f32 %v444, %v468
    %v473 = vmul.f32 %v445, %v469
    %v475 = vlaneseq
    %v476 = vshrl.u32 %v475, 7
    %v477 = vsub.s32 0, %v476
    %v478 = vrot.slane %v427, %v477
    %v480 = vmul.f32 %v470, %v478
    %v481 = vmul.f32 %v471, %v478
    %v482 = vmul.f32 %v472, %v478
    %v483 = vmul.f32 %v473, %v478
    %v485 = vlaneseq
    %v486 = vshrl.u32 %v485, 7
    %v487 = vsub.s32 0, %v486
    %v488 = vrot.slane %v428, %v487
    %v490 = vadd.f32 %v480, %v488
    %v491 = vadd.f32 %v481, %v488
    %v492 = vadd.f32 %v482, %v488
    %v493 = vadd.f32 %v483, %v488
    %v494 = vpack.c.bf16 %v491, %v490
    %v495 = vpack.c.bf16 %v493, %v492
    %v496 = vld [vmem:[#allocation14] sm:$0xff]
    %v497 = vld [vmem:[#allocation14 + $0x8] sm:$0xff]
    %v498 = vld [vmem:[#allocation14 + $0x10] sm:$0xff]
    %v499 = vld [vmem:[#allocation14 + $0x18] sm:$0xff]
    %v500 = vld [vmem:[#allocation14 + $0x20] sm:$0xff]
    %v501 = vld [vmem:[#allocation14 + $0x28] sm:$0xff]
    %v502 = vld [vmem:[#allocation14 + $0x30] sm:$0xff]
    %v503 = vld [vmem:[#allocation14 + $0x38] sm:$0xff]
    %v504 = vld [vmem:[#allocation14 + $0x40] sm:$0xff]
    %v505 = vld [vmem:[#allocation14 + $0x48] sm:$0xff]
    %v506 = vld [vmem:[#allocation14 + $0x50] sm:$0xff]
    %v507 = vld [vmem:[#allocation14 + $0x58] sm:$0xff]
    %v508 = vld [vmem:[#allocation14 + $0x60] sm:$0xff]
    %v509 = vld [vmem:[#allocation14 + $0x68] sm:$0xff]
    %v510 = vld [vmem:[#allocation14 + $0x70] sm:$0xff]
    %v511 = vld [vmem:[#allocation14 + $0x78] sm:$0xff]
    %v512 = vld [vmem:[#allocation14 + $0x80] sm:$0xff]
    %v513 = vld [vmem:[#allocation14 + $0x88] sm:$0xff]
    %v514 = vld [vmem:[#allocation14 + $0x90] sm:$0xff]
    %v515 = vld [vmem:[#allocation14 + $0x98] sm:$0xff]
    %v516 = vld [vmem:[#allocation14 + $0xa0] sm:$0xff]
    %v517 = vld [vmem:[#allocation14 + $0xa8] sm:$0xff]
    %v518 = vld [vmem:[#allocation14 + $0xb0] sm:$0xff]
    %v519 = vld [vmem:[#allocation14 + $0xb8] sm:$0xff]
    %v520 = vld [vmem:[#allocation14 + $0xc0] sm:$0xff]
    %v521 = vld [vmem:[#allocation14 + $0xc8] sm:$0xff]
    %v522 = vld [vmem:[#allocation14 + $0xd0] sm:$0xff]
    %v523 = vld [vmem:[#allocation14 + $0xd8] sm:$0xff]
    %v524 = vld [vmem:[#allocation14 + $0xe0] sm:$0xff]
    %v525 = vld [vmem:[#allocation14 + $0xe8] sm:$0xff]
    %v526 = vld [vmem:[#allocation14 + $0xf0] sm:$0xff]
    %v527 = vld [vmem:[#allocation14 + $0xf8] sm:$0xff]
    %v560 = vunpack.c.l.b16 %v496
    %v561 = vunpack.c.h.b16 %v496
    %v562 = vunpack.c.l.b16 %v497
    %v563 = vunpack.c.h.b16 %v497
    %v564 = vunpack.c.l.b16 %v498
    %v565 = vunpack.c.h.b16 %v498
    %v566 = vunpack.c.l.b16 %v499
    %v567 = vunpack.c.h.b16 %v499
    %v568 = vunpack.c.l.b16 %v500
    %v569 = vunpack.c.h.b16 %v500
    %v570 = vunpack.c.l.b16 %v501
    %v571 = vunpack.c.h.b16 %v501
    %v572 = vunpack.c.l.b16 %v502
    %v573 = vunpack.c.h.b16 %v502
    %v574 = vunpack.c.l.b16 %v503
    %v575 = vunpack.c.h.b16 %v503
    %v576 = vunpack.c.l.b16 %v504
    %v577 = vunpack.c.h.b16 %v504
    %v578 = vunpack.c.l.b16 %v505
    %v579 = vunpack.c.h.b16 %v505
    %v580 = vunpack.c.l.b16 %v506
    %v581 = vunpack.c.h.b16 %v506
    %v582 = vunpack.c.l.b16 %v507
    %v583 = vunpack.c.h.b16 %v507
    %v584 = vunpack.c.l.b16 %v508
    %v585 = vunpack.c.h.b16 %v508
    %v586 = vunpack.c.l.b16 %v509
    %v587 = vunpack.c.h.b16 %v509
    %v588 = vunpack.c.l.b16 %v510
    %v589 = vunpack.c.h.b16 %v510
    %v590 = vunpack.c.l.b16 %v511
    %v591 = vunpack.c.h.b16 %v511
    %v592 = vunpack.c.l.b16 %v512
    %v593 = vunpack.c.h.b16 %v512
    %v594 = vunpack.c.l.b16 %v513
    %v595 = vunpack.c.h.b16 %v513
    %v596 = vunpack.c.l.b16 %v514
    %v597 = vunpack.c.h.b16 %v514
    %v598 = vunpack.c.l.b16 %v515
    %v599 = vunpack.c.h.b16 %v515
    %v600 = vunpack.c.l.b16 %v516
    %v601 = vunpack.c.h.b16 %v516
    %v602 = vunpack.c.l.b16 %v517
    %v603 = vunpack.c.h.b16 %v517
    %v604 = vunpack.c.l.b16 %v518
    %v605 = vunpack.c.h.b16 %v518
    %v606 = vunpack.c.l.b16 %v519
    %v607 = vunpack.c.h.b16 %v519
    %v608 = vunpack.c.l.b16 %v520
    %v609 = vunpack.c.h.b16 %v520
    %v610 = vunpack.c.l.b16 %v521
    %v611 = vunpack.c.h.b16 %v521
    %v612 = vunpack.c.l.b16 %v522
    %v613 = vunpack.c.h.b16 %v522
    %v614 = vunpack.c.l.b16 %v523
    %v615 = vunpack.c.h.b16 %v523
    %v616 = vunpack.c.l.b16 %v524
    %v617 = vunpack.c.h.b16 %v524
    %v618 = vunpack.c.l.b16 %v525
    %v619 = vunpack.c.h.b16 %v525
    %v620 = vunpack.c.l.b16 %v526
    %v621 = vunpack.c.h.b16 %v526
    %v622 = vunpack.c.l.b16 %v527
    %v623 = vunpack.c.h.b16 %v527
    %v624 = vpack.c.b16 %v564, %v560
    %v625 = vpack.c.b16 %v565, %v561
    %v626 = vpack.c.b16 %v566, %v562
    %v627 = vpack.c.b16 %v567, %v563
    %v628 = vpack.c.b16 %v572, %v568
    %v629 = vpack.c.b16 %v573, %v569
    %v630 = vpack.c.b16 %v574, %v570
    %v631 = vpack.c.b16 %v575, %v571
    %v632 = vpack.c.b16 %v580, %v576
    %v633 = vpack.c.b16 %v581, %v577
    %v634 = vpack.c.b16 %v582, %v578
    %v635 = vpack.c.b16 %v583, %v579
    %v636 = vpack.c.b16 %v588, %v584
    %v637 = vpack.c.b16 %v589, %v585
    %v638 = vpack.c.b16 %v590, %v586
    %v639 = vpack.c.b16 %v591, %v587
    %v640 = vpack.c.b16 %v596, %v592
    %v641 = vpack.c.b16 %v597, %v593
    %v642 = vpack.c.b16 %v598, %v594
    %v643 = vpack.c.b16 %v599, %v595
    %v644 = vpack.c.b16 %v604, %v600
    %v645 = vpack.c.b16 %v605, %v601
    %v646 = vpack.c.b16 %v606, %v602
    %v647 = vpack.c.b16 %v607, %v603
    %v648 = vpack.c.b16 %v612, %v608
    %v649 = vpack.c.b16 %v613, %v609
    %v650 = vpack.c.b16 %v614, %v610
    %v651 = vpack.c.b16 %v615, %v611
    %v652 = vpack.c.b16 %v620, %v616
    %v653 = vpack.c.b16 %v621, %v617
    %v654 = vpack.c.b16 %v622, %v618
    %v655 = vpack.c.b16 %v623, %v619
    %688 = vmatprep.subr.bf16.mxu0 %v625
    %689 = vmatpush1.bf16.msra.mxu0 %v624
    %690 = vmatprep.subr.bf16.mxu0 %v629
    %691 = vmatpush1.bf16.msra.mxu0 %v628
    %692 = vmatprep.subr.bf16.mxu0 %v633
    %693 = vmatpush1.bf16.msra.mxu0 %v632
    %694 = vmatprep.subr.bf16.mxu0 %v637
    %695 = vmatpush1.bf16.msra.mxu0 %v636
    %696 = vmatprep.subr.bf16.mxu0 %v641
    %697 = vmatpush1.bf16.msra.mxu0 %v640
    %698 = vmatprep.subr.bf16.mxu0 %v645
    %699 = vmatpush1.bf16.msra.mxu0 %v644
    %700 = vmatprep.subr.bf16.mxu0 %v649
    %701 = vmatpush1.bf16.msra.mxu0 %v648
    %702 = vmatprep.subr.bf16.mxu0 %v653
    %703 = vmatpush1.bf16.msra.mxu0 %v652
    %704 = vmatprep.subr.bf16.mxu0 0
    %705 = vmatpush1.bf16.msra.mxu0 0
    %706 = vmatprep.subr.bf16.mxu0 0
    %707 = vmatpush1.bf16.msra.mxu0 0
    %708 = vmatprep.subr.bf16.mxu0 0
    %709 = vmatpush1.bf16.msra.mxu0 0
    %710 = vmatprep.subr.bf16.mxu0 0
    %711 = vmatpush1.bf16.msra.mxu0 0
    %712 = vmatprep.subr.bf16.mxu0 0
    %713 = vmatpush1.bf16.msra.mxu0 0
    %714 = vmatprep.subr.bf16.mxu0 0
    %715 = vmatpush1.bf16.msra.mxu0 0
    %716 = vmatprep.subr.bf16.mxu0 0
    %717 = vmatpush1.bf16.msra.mxu0 0
    %718 = vmatprep.subr.bf16.mxu0 0
    %719 = vmatpush1.bf16.msra.mxu0 0
    %720 = vmatprep.mubr.bf16.mxu0 0
    %721 = vmatmul.mubr.bf16.gmra.mrb[0].mxu0 %v494
    %v722 = vpop.f32.mrb[0].mxu0
    %v723 = vadd.f32 0.0, %v722
    %v724 = vpop.f32.mrb[0].mxu0
    %v725 = vadd.f32 0.0, %v724
    %v726 = vpop.f32.mrb[0].mxu0
    %v727 = vadd.f32 0.0, %v726
    %v728 = vpop.f32.mrb[0].mxu0
    %v729 = vadd.f32 0.0, %v728
    %730 = vmatprep.mubr.bf16.mxu0 0
    %731 = vmatmul.mubr.bf16.gmra.mrb[0].mxu0 %v495
    %v732 = vpop.f32.mrb[0].mxu0
    %v733 = vadd.f32 0.0, %v732
    %v734 = vpop.f32.mrb[0].mxu0
    %v735 = vadd.f32 0.0, %v734
    %v736 = vpop.f32.mrb[0].mxu0
    %v737 = vadd.f32 0.0, %v736
    %v738 = vpop.f32.mrb[0].mxu0
    %v739 = vadd.f32 0.0, %v738
    %740 = vdwg.mxu0
    %741 = vmatprep.subr.bf16.mxu0 %v627
    %742 = vmatpush1.bf16.msra.mxu0 %v626
    %743 = vmatprep.subr.bf16.mxu0 %v631
    %744 = vmatpush1.bf16.msra.mxu0 %v630
    %745 = vmatprep.subr.bf16.mxu0 %v635
    %746 = vmatpush1.bf16.msra.mxu0 %v634
    %747 = vmatprep.subr.bf16.mxu0 %v639
    %748 = vmatpush1.bf16.msra.mxu0 %v638
    %749 = vmatprep.subr.bf16.mxu0 %v643
    %750 = vmatpush1.bf16.msra.mxu0 %v642
    %751 = vmatprep.subr.bf16.mxu0 %v647
    %752 = vmatpush1.bf16.msra.mxu0 %v646
    %753 = vmatprep.subr.bf16.mxu0 %v651
    %754 = vmatpush1.bf16.msra.mxu0 %v650
    %755 = vmatprep.subr.bf16.mxu0 %v655
    %756 = vmatpush1.bf16.msra.mxu0 %v654
    %757 = vmatprep.subr.bf16.mxu0 0
    %758 = vmatpush1.bf16.msra.mxu0 0
    %759 = vmatprep.subr.bf16.mxu0 0
    %760 = vmatpush1.bf16.msra.mxu0 0
    %761 = vmatprep.subr.bf16.mxu0 0
    %762 = vmatpush1.bf16.msra.mxu0 0
    %763 = vmatprep.subr.bf16.mxu0 0
    %764 = vmatpush1.bf16.msra.mxu0 0
    %765 = vmatprep.subr.bf16.mxu0 0
    %766 = vmatpush1.bf16.msra.mxu0 0
    %767 = vmatprep.subr.bf16.mxu0 0
    %768 = vmatpush1.bf16.msra.mxu0 0
    %769 = vmatprep.subr.bf16.mxu0 0
    %770 = vmatpush1.bf16.msra.mxu0 0
    %771 = vmatprep.subr.bf16.mxu0 0
    %772 = vmatpush1.bf16.msra.mxu0 0
    %773 = vmatprep.mubr.bf16.mxu0 0
    %774 = vmatmul.mubr.bf16.gmra.mrb[0].mxu0 %v494
    %v775 = vpop.f32.mrb[0].mxu0
    %v776 = vadd.f32 0.0, %v775
    %v777 = vpop.f32.mrb[0].mxu0
    %v778 = vadd.f32 0.0, %v777
    %v779 = vpop.f32.mrb[0].mxu0
    %v780 = vadd.f32 0.0, %v779
    %v781 = vpop.f32.mrb[0].mxu0
    %v782 = vadd.f32 0.0, %v781
    %783 = vmatprep.mubr.bf16.mxu0 0
    %784 = vmatmul.mubr.bf16.gmra.mrb[0].mxu0 %v495
    %v785 = vpop.f32.mrb[0].mxu0
    %v786 = vadd.f32 0.0, %v785
    %v787 = vpop.f32.mrb[0].mxu0
    %v788 = vadd.f32 0.0, %v787
    %v789 = vpop.f32.mrb[0].mxu0
    %v790 = vadd.f32 0.0, %v789
    %v791 = vpop.f32.mrb[0].mxu0
    %v792 = vadd.f32 0.0, %v791
    %793 = vdwg.mxu0
    %v794 = vpack.c.bf16 %v727, %v723
    %v795 = vpack.c.bf16 %v737, %v733
    %v796 = vpack.c.bf16 %v729, %v725
    %v797 = vpack.c.bf16 %v739, %v735
    %vm798 = vcmask 261120
    %v800 = vsel %vm798, %v794, 0
    %v803 = vsel %vm798, %v795, 0
    %v806 = vsel %vm798, %v796, 0
    %v809 = vsel %vm798, %v797, 0
    %811 = vmatprep.subr.bf16.mxu0 0
    %812 = vmatpush1.bf16.xpose.msra.mxu0 %v806
    %813 = vmatprep.subr.bf16.mxu0 0
    %814 = vmatpush1.bf16.xpose.msra.mxu0 %v809
    %815 = vmatprep.subr.bf16.mxu0 0
    %816 = vmatpush1.bf16.xpose.msra.mxu0 0
    %817 = vmatprep.subr.bf16.mxu0 0
    %818 = vmatpush1.bf16.xpose.msra.mxu0 0
    %819 = vmatprep.subr.bf16.mxu0 0
    %820 = vmatpush1.bf16.xpose.msra.mxu0 0
    %821 = vmatprep.subr.bf16.mxu0 0
    %822 = vmatpush1.bf16.xpose.msra.mxu0 0
    %823 = vmatprep.subr.bf16.mxu0 0
    %824 = vmatpush1.bf16.xpose.msra.mxu0 0
    %825 = vmatprep.subr.bf16.mxu0 0
    %826 = vmatpush1.bf16.xpose.msra.mxu0 0
    %827 = vmatprep.subr.bf16.mxu0 0
    %828 = vmatpush1.bf16.xpose.msra.mxu0 0
    %829 = vmatprep.subr.bf16.mxu0 0
    %830 = vmatpush1.bf16.xpose.msra.mxu0 0
    %831 = vmatprep.subr.bf16.mxu0 0
    %832 = vmatpush1.bf16.xpose.msra.mxu0 0
    %833 = vmatprep.subr.bf16.mxu0 0
    %834 = vmatpush1.bf16.xpose.msra.mxu0 0
    %835 = vmatprep.subr.bf16.mxu0 0
    %836 = vmatpush1.bf16.xpose.msra.mxu0 0
    %837 = vmatprep.subr.bf16.mxu0 0
    %838 = vmatpush1.bf16.xpose.msra.mxu0 0
    %839 = vmatprep.subr.bf16.mxu0 0
    %840 = vmatpush1.bf16.xpose.msra.mxu0 0
    %841 = vmatprep.subr.bf16.mxu0 0
    %842 = vmatpush1.bf16.xpose.msra.mxu0 0
    %843 = vmatprep.mubr.bf16.mxu0 0
    %844 = vmatmul.mubr.bf16.gmra.mrb[0].mxu0 %v800
    %v845 = vpop.f32.mrb[0].mxu0
    %v846 = vadd.f32 0.0, %v845
    %v847 = vpop.f32.mrb[0].mxu0
    %v848 = vpop.f32.mrb[0].mxu0
    %v849 = vadd.f32 0.0, %v848
    %v850 = vpop.f32.mrb[0].mxu0
    %851 = vmatprep.mubr.bf16.mxu0 0
    %852 = vmatmul.mubr.bf16.gmra.mrb[0].mxu0 %v803
    %v853 = vpop.f32.mrb[0].mxu0
    %v854 = vadd.f32 0.0, %v853
    %v855 = vpop.f32.mrb[0].mxu0
    %v856 = vpop.f32.mrb[0].mxu0
    %v857 = vadd.f32 0.0, %v856
    %v858 = vpop.f32.mrb[0].mxu0
    %859 = vdwg.mxu0
    %v860 = vld [vmem:[#allocation10] sm:$0xff]
    %v861 = vld [vmem:[#allocation10 + $0x8] sm:$0xff]
    %v862 = vld [vmem:[#allocation10 + $0x10] sm:$0xff]
    %v863 = vld [vmem:[#allocation10 + $0x18] sm:$0xff]
    %v864 = vmul.f32 %v846, %v860
    %v865 = vmul.f32 %v849, %v861
    %v866 = vmul.f32 %v854, %v862
    %v867 = vmul.f32 %v857, %v863
    %v868 = vpack.c.bf16 %v865, %v864
    %v869 = vpack.c.bf16 %v867, %v866
    %v870 = vpack.c.bf16 %v780, %v776
    %v871 = vpack.c.bf16 %v790, %v786
    %v873 = vsel %vm798, %v868, 0
    %v876 = vsel %vm798, %v869, 0
    %878 = vmatprep.subr.bf16.mxu0 0
    %879 = vmatpush1.bf16.msra.mxu0 %v870
    %880 = vmatprep.subr.bf16.mxu0 0
    %881 = vmatpush1.bf16.msra.mxu0 %v871
    %882 = vmatprep.subr.bf16.mxu0 0
    %883 = vmatpush1.bf16.msra.mxu0 0
    %884 = vmatprep.subr.bf16.mxu0 0
    %885 = vmatpush1.bf16.msra.mxu0 0
    %886 = vmatprep.subr.bf16.mxu0 0
    %887 = vmatpush1.bf16.msra.mxu0 0
    %888 = vmatprep.subr.bf16.mxu0 0
    %889 = vmatpush1.bf16.msra.mxu0 0
    %890 = vmatprep.subr.bf16.mxu0 0
    %891 = vmatpush1.bf16.msra.mxu0 0
    %892 = vmatprep.subr.bf16.mxu0 0
    %893 = vmatpush1.bf16.msra.mxu0 0
    %894 = vmatprep.subr.bf16.mxu0 0
    %895 = vmatpush1.bf16.msra.mxu0 0
    %896 = vmatprep.subr.bf16.mxu0 0
    %897 = vmatpush1.bf16.msra.mxu0 0
    %898 = vmatprep.subr.bf16.mxu0 0
    %899 = vmatpush1.bf16.msra.mxu0 0
    %900 = vmatprep.subr.bf16.mxu0 0
    %901 = vmatpush1.bf16.msra.mxu0 0
    %902 = vmatprep.subr.bf16.mxu0 0
    %903 = vmatpush1.bf16.msra.mxu0 0
    %904 = vmatprep.subr.bf16.mxu0 0
    %905 = vmatpush1.bf16.msra.mxu0 0
    %906 = vmatprep.subr.bf16.mxu0 0
    %907 = vmatpush1.bf16.msra.mxu0 0
    %908 = vmatprep.subr.bf16.mxu0 0
    %909 = vmatpush1.bf16.msra.mxu0 0
    %910 = vmatprep.mubr.bf16.mxu0 0
    %911 = vmatmul.mubr.bf16.gmra.mrb[0].mxu0 %v873
    %v912 = vpop.f32.mrb[0].mxu0
    %v913 = vadd.f32 0.0, %v912
    %v914 = vpop.f32.mrb[0].mxu0
    %v915 = vpop.f32.mrb[0].mxu0
    %v916 = vadd.f32 0.0, %v915
    %v917 = vpop.f32.mrb[0].mxu0
    %918 = vmatprep.mubr.bf16.mxu0 0
    %919 = vmatmul.mubr.bf16.gmra.mrb[0].mxu0 %v876
    %v920 = vpop.f32.mrb[0].mxu0
    %v921 = vadd.f32 0.0, %v920
    %v922 = vpop.f32.mrb[0].mxu0
    %v923 = vpop.f32.mrb[0].mxu0
    %v924 = vadd.f32 0.0, %v923
    %v925 = vpop.f32.mrb[0].mxu0
    %926 = vdwg.mxu0
    %v927 = vsel %vm798, %v913, 0.0
    %928 = vadd.xlane.f32.xlu0 %v927
    %v929 = vpop.xlane.xlu0 %928
    %v930 = vsel %vm798, %v916, 0.0
    %931 = vadd.xlane.f32.xlu0 %v930
    %v932 = vpop.xlane.xlu0 %931
    %v933 = vsel %vm798, %v921, 0.0
    %934 = vadd.xlane.f32.xlu0 %v933
    %v935 = vpop.xlane.xlu0 %934
    %v936 = vsel %vm798, %v924, 0.0
    %937 = vadd.xlane.f32.xlu0 %v936
    %v938 = vpop.xlane.xlu0 %937
    %v939 = vrcp.pop 32.0
    %v940 = vmul.f32 %v929, %v939
    %v941 = vmul.f32 %v932, %v939
    %v942 = vmul.f32 %v935, %v939
    %v943 = vmul.f32 %v938, %v939
    %v944 = vsub.f32 %v913, %v940
    %v945 = vsub.f32 %v916, %v941
    %v946 = vsub.f32 %v921, %v942
    %v947 = vsub.f32 %v924, %v943
    %v948 = vmul.f32 %v944, %v944
    %v949 = vmul.f32 %v945, %v945
    %v950 = vmul.f32 %v946, %v946
    %v951 = vmul.f32 %v947, %v947
    %v952 = vsel %vm798, %v948, 0.0
    %953 = vadd.xlane.f32.xlu0 %v952
    %v954 = vpop.xlane.xlu0 %953
    %v955 = vsel %vm798, %v949, 0.0
    %956 = vadd.xlane.f32.xlu0 %v955
    %v957 = vpop.xlane.xlu0 %956
    %v958 = vsel %vm798, %v950, 0.0
    %959 = vadd.xlane.f32.xlu0 %v958
    %v960 = vpop.xlane.xlu0 %959
    %v961 = vsel %vm798, %v951, 0.0
    %962 = vadd.xlane.f32.xlu0 %v961
    %v963 = vpop.xlane.xlu0 %962
    %v964 = vmul.f32 %v954, %v939
    %v965 = vmul.f32 %v957, %v939
    %v966 = vmul.f32 %v960, %v939
    %v967 = vmul.f32 %v963, %v939
    %v968 = vadd.f32 %v964, 1e-05
    %v969 = vadd.f32 %v965, 1e-05
    %v970 = vadd.f32 %v966, 1e-05
    %v971 = vadd.f32 %v967, 1e-05
    %v972 = vrsqrt.pop %v968
    %v973 = vrsqrt.pop %v969
    %v974 = vrsqrt.pop %v970
    %v975 = vrsqrt.pop %v971
    %v976 = vmul.f32 %v944, %v972
    %v977 = vmul.f32 %v945, %v973
    %v978 = vmul.f32 %v946, %v974
    %v979 = vmul.f32 %v947, %v975
    %982 = vrot.lane.b32.xlu0 %v794, 96
    %v983 = vpop.permute.xlu0 %982
    %984 = vrot.lane.b32.xlu0 %v795, 96
    %v985 = vpop.permute.xlu0 %984
    %988 = vrot.lane.b32.xlu0 %v796, 96
    %v989 = vpop.permute.xlu0 %988
    %990 = vrot.lane.b32.xlu0 %v797, 96
    %v991 = vpop.permute.xlu0 %990
    %v993 = vsel %vm798, %v983, 0
    %v996 = vsel %vm798, %v985, 0
    %v999 = vsel %vm798, %v989, 0
    %v1002 = vsel %vm798, %v991, 0
    %1004 = vmatprep.subr.bf16.mxu0 0
    %1005 = vmatpush1.bf16.xpose.msra.mxu0 %v999
    %1006 = vmatprep.subr.bf16.mxu0 0
    %1007 = vmatpush1.bf16.xpose.msra.mxu0 %v1002
    %1008 = vmatprep.subr.bf16.mxu0 0
    %1009 = vmatpush1.bf16.xpose.msra.mxu0 0
    %1010 = vmatprep.subr.bf16.mxu0 0
    %1011 = vmatpush1.bf16.xpose.msra.mxu0 0
    %1012 = vmatprep.subr.bf16.mxu0 0
    %1013 = vmatpush1.bf16.xpose.msra.mxu0 0
    %1014 = vmatprep.subr.bf16.mxu0 0
    %1015 = vmatpush1.bf16.xpose.msra.mxu0 0
    %1016 = vmatprep.subr.bf16.mxu0 0
    %1017 = vmatpush1.bf16.xpose.msra.mxu0 0
    %1018 = vmatprep.subr.bf16.mxu0 0
    %1019 = vmatpush1.bf16.xpose.msra.mxu0 0
    %1020 = vmatprep.subr.bf16.mxu0 0
    %1021 = vmatpush1.bf16.xpose.msra.mxu0 0
    %1022 = vmatprep.subr.bf16.mxu0 0
    %1023 = vmatpush1.bf16.xpose.msra.mxu0 0
    %1024 = vmatprep.subr.bf16.mxu0 0
    %1025 = vmatpush1.bf16.xpose.msra.mxu0 0
    %1026 = vmatprep.subr.bf16.mxu0 0
    %1027 = vmatpush1.bf16.xpose.msra.mxu0 0
    %1028 = vmatprep.subr.bf16.mxu0 0
    %1029 = vmatpush1.bf16.xpose.msra.mxu0 0
    %1030 = vmatprep.subr.bf16.mxu0 0
    %1031 = vmatpush1.bf16.xpose.msra.mxu0 0
    %1032 = vmatprep.subr.bf16.mxu0 0
    %1033 = vmatpush1.bf16.xpose.msra.mxu0 0
    %1034 = vmatprep.subr.bf16.mxu0 0
    %1035 = vmatpush1.bf16.xpose.msra.mxu0 0
    %1036 = vmatprep.mubr.bf16.mxu0 0
    %1037 = vmatmul.mubr.bf16.gmra.mrb[0].mxu0 %v993
    %v1038 = vpop.f32.mrb[0].mxu0
    %v1039 = vadd.f32 0.0, %v1038
    %v1040 = vpop.f32.mrb[0].mxu0
    %v1041 = vpop.f32.mrb[0].mxu0
    %v1042 = vadd.f32 0.0, %v1041
    %v1043 = vpop.f32.mrb[0].mxu0
    %1044 = vmatprep.mubr.bf16.mxu0 0
    %1045 = vmatmul.mubr.bf16.gmra.mrb[0].mxu0 %v996
    %v1046 = vpop.f32.mrb[0].mxu0
    %v1047 = vadd.f32 0.0, %v1046
    %v1048 = vpop.f32.mrb[0].mxu0
    %v1049 = vpop.f32.mrb[0].mxu0
    %v1050 = vadd.f32 0.0, %v1049
    %v1051 = vpop.f32.mrb[0].mxu0
    %1052 = vdwg.mxu0
    %s1053 = scalar_lea.vmem [#allocation10], 32
    %v1054 = vld [vmem:[%s1053] sm:$0xff]
    %v1055 = vld [vmem:[%s1053 + $0x8] sm:$0xff]
    %v1056 = vld [vmem:[%s1053 + $0x10] sm:$0xff]
    %v1057 = vld [vmem:[%s1053 + $0x18] sm:$0xff]
    %v1058 = vmul.f32 %v1039, %v1054
    %v1059 = vmul.f32 %v1042, %v1055
    %v1060 = vmul.f32 %v1047, %v1056
    %v1061 = vmul.f32 %v1050, %v1057
    %v1062 = vpack.c.bf16 %v1059, %v1058
    %v1063 = vpack.c.bf16 %v1061, %v1060
    %1066 = vrot.lane.b32.xlu0 %v870, 96
    %v1067 = vpop.permute.xlu0 %1066
    %1068 = vrot.lane.b32.xlu0 %v871, 96
    %v1069 = vpop.permute.xlu0 %1068
    %v1073 = vsel %vm798, %v1062, 0
    %v1076 = vsel %vm798, %v1063, 0
    %1078 = vmatprep.subr.bf16.mxu0 0
    %1079 = vmatpush1.bf16.msra.mxu0 %v1067
    %1080 = vmatprep.subr.bf16.mxu0 0
    %1081 = vmatpush1.bf16.msra.mxu0 %v1069
    %1082 = vmatprep.subr.bf16.mxu0 0
    %1083 = vmatpush1.bf16.msra.mxu0 0
    %1084 = vmatprep.subr.bf16.mxu0 0
    %1085 = vmatpush1.bf16.msra.mxu0 0
    %1086 = vmatprep.subr.bf16.mxu0 0
    %1087 = vmatpush1.bf16.msra.mxu0 0
    %1088 = vmatprep.subr.bf16.mxu0 0
    %1089 = vmatpush1.bf16.msra.mxu0 0
    %1090 = vmatprep.subr.bf16.mxu0 0
    %1091 = vmatpush1.bf16.msra.mxu0 0
    %1092 = vmatprep.subr.bf16.mxu0 0
    %1093 = vmatpush1.bf16.msra.mxu0 0
    %1094 = vmatprep.subr.bf16.mxu0 0
    %1095 = vmatpush1.bf16.msra.mxu0 0
    %1096 = vmatprep.subr.bf16.mxu0 0
    %1097 = vmatpush1.bf16.msra.mxu0 0
    %1098 = vmatprep.subr.bf16.mxu0 0
    %1099 = vmatpush1.bf16.msra.mxu0 0
    %1100 = vmatprep.subr.bf16.mxu0 0
    %1101 = vmatpush1.bf16.msra.mxu0 0
    %1102 = vmatprep.subr.bf16.mxu0 0
    %1103 = vmatpush1.bf16.msra.mxu0 0
    %1104 = vmatprep.subr.bf16.mxu0 0
    %1105 = vmatpush1.bf16.msra.mxu0 0
    %1106 = vmatprep.subr.bf16.mxu0 0
    %1107 = vmatpush1.bf16.msra.mxu0 0
    %1108 = vmatprep.subr.bf16.mxu0 0
    %1109 = vmatpush1.bf16.msra.mxu0 0
    %1110 = vmatprep.mubr.bf16.mxu0 0
    %1111 = vmatmul.mubr.bf16.gmra.mrb[0].mxu0 %v1073
    %v1112 = vpop.f32.mrb[0].mxu0
    %v1113 = vadd.f32 0.0, %v1112
    %v1114 = vpop.f32.mrb[0].mxu0
    %v1115 = vpop.f32.mrb[0].mxu0
    %v1116 = vadd.f32 0.0, %v1115
    %v1117 = vpop.f32.mrb[0].mxu0
    %1118 = vmatprep.mubr.bf16.mxu0 0
    %1119 = vmatmul.mubr.bf16.gmra.mrb[0].mxu0 %v1076
    %v1120 = vpop.f32.mrb[0].mxu0
    %v1121 = vadd.f32 0.0, %v1120
    %v1122 = vpop.f32.mrb[0].mxu0
    %v1123 = vpop.f32.mrb[0].mxu0
    %v1124 = vadd.f32 0.0, %v1123
    %v1125 = vpop.f32.mrb[0].mxu0
    %1126 = vdwg.mxu0
    %v1127 = vsel %vm798, %v1113, 0.0
    %1128 = vadd.xlane.f32.xlu0 %v1127
    %v1129 = vpop.xlane.xlu0 %1128
    %v1130 = vsel %vm798, %v1116, 0.0
    %1131 = vadd.xlane.f32.xlu0 %v1130
    %v1132 = vpop.xlane.xlu0 %1131
    %v1133 = vsel %vm798, %v1121, 0.0
    %1134 = vadd.xlane.f32.xlu0 %v1133
    %v1135 = vpop.xlane.xlu0 %1134
    %v1136 = vsel %vm798, %v1124, 0.0
    %1137 = vadd.xlane.f32.xlu0 %v1136
    %v1138 = vpop.xlane.xlu0 %1137
    %v1139 = vmul.f32 %v1129, %v939
    %v1140 = vmul.f32 %v1132, %v939
    %v1141 = vmul.f32 %v1135, %v939
    %v1142 = vmul.f32 %v1138, %v939
    %v1143 = vsub.f32 %v1113, %v1139
    %v1144 = vsub.f32 %v1116, %v1140
    %v1145 = vsub.f32 %v1121, %v1141
    %v1146 = vsub.f32 %v1124, %v1142
    %v1147 = vmul.f32 %v1143, %v1143
    %v1148 = vmul.f32 %v1144, %v1144
    %v1149 = vmul.f32 %v1145, %v1145
    %v1150 = vmul.f32 %v1146, %v1146
    %v1151 = vsel %vm798, %v1147, 0.0
    %1152 = vadd.xlane.f32.xlu0 %v1151
    %v1153 = vpop.xlane.xlu0 %1152
    %v1154 = vsel %vm798, %v1148, 0.0
    %1155 = vadd.xlane.f32.xlu0 %v1154
    %v1156 = vpop.xlane.xlu0 %1155
    %v1157 = vsel %vm798, %v1149, 0.0
    %1158 = vadd.xlane.f32.xlu0 %v1157
    %v1159 = vpop.xlane.xlu0 %1158
    %v1160 = vsel %vm798, %v1150, 0.0
    %1161 = vadd.xlane.f32.xlu0 %v1160
    %v1162 = vpop.xlane.xlu0 %1161
    %v1163 = vmul.f32 %v1153, %v939
    %v1164 = vmul.f32 %v1156, %v939
    %v1165 = vmul.f32 %v1159, %v939
    %v1166 = vmul.f32 %v1162, %v939
    %v1167 = vadd.f32 %v1163, 1e-05
    %v1168 = vadd.f32 %v1164, 1e-05
    %v1169 = vadd.f32 %v1165, 1e-05
    %v1170 = vadd.f32 %v1166, 1e-05
    %v1171 = vrsqrt.pop %v1167
    %v1172 = vrsqrt.pop %v1168
    %v1173 = vrsqrt.pop %v1169
    %v1174 = vrsqrt.pop %v1170
    %v1175 = vmul.f32 %v1143, %v1171
    %v1176 = vmul.f32 %v1144, %v1172
    %v1177 = vmul.f32 %v1145, %v1173
    %v1178 = vmul.f32 %v1146, %v1174
    %1179 = vrot.lane.b32.xlu0 %v794, 64
    %v1180 = vpop.permute.xlu0 %1179
    %1181 = vrot.lane.b32.xlu0 %v795, 64
    %v1182 = vpop.permute.xlu0 %1181
    %1183 = vrot.lane.b32.xlu0 %v796, 64
    %v1184 = vpop.permute.xlu0 %1183
    %1185 = vrot.lane.b32.xlu0 %v797, 64
    %v1186 = vpop.permute.xlu0 %1185
    %v1188 = vsel %vm798, %v1180, 0
    %v1191 = vsel %vm798, %v1182, 0
    %v1194 = vsel %vm798, %v1184, 0
    %v1197 = vsel %vm798, %v1186, 0
    %1199 = vmatprep.subr.bf16.mxu0 0
    %1200 = vmatpush1.bf16.xpose.msra.mxu0 %v1194
    %1201 = vmatprep.subr.bf16.mxu0 0
    %1202 = vmatpush1.bf16.xpose.msra.mxu0 %v1197
    %1203 = vmatprep.subr.bf16.mxu0 0
    %1204 = vmatpush1.bf16.xpose.msra.mxu0 0
    %1205 = vmatprep.subr.bf16.mxu0 0
    %1206 = vmatpush1.bf16.xpose.msra.mxu0 0
    %1207 = vmatprep.subr.bf16.mxu0 0
    %1208 = vmatpush1.bf16.xpose.msra.mxu0 0
    %1209 = vmatprep.subr.bf16.mxu0 0
    %1210 = vmatpush1.bf16.xpose.msra.mxu0 0
    %1211 = vmatprep.subr.bf16.mxu0 0
    %1212 = vmatpush1.bf16.xpose.msra.mxu0 0
    %1213 = vmatprep.subr.bf16.mxu0 0
    %1214 = vmatpush1.bf16.xpose.msra.mxu0 0
    %1215 = vmatprep.subr.bf16.mxu0 0
    %1216 = vmatpush1.bf16.xpose.msra.mxu0 0
    %1217 = vmatprep.subr.bf16.mxu0 0
    %1218 = vmatpush1.bf16.xpose.msra.mxu0 0
    %1219 = vmatprep.subr.bf16.mxu0 0
    %1220 = vmatpush1.bf16.xpose.msra.mxu0 0
    %1221 = vmatprep.subr.bf16.mxu0 0
    %1222 = vmatpush1.bf16.xpose.msra.mxu0 0
    %1223 = vmatprep.subr.bf16.mxu0 0
    %1224 = vmatpush1.bf16.xpose.msra.mxu0 0
    %1225 = vmatprep.subr.bf16.mxu0 0
    %1226 = vmatpush1.bf16.xpose.msra.mxu0 0
    %1227 = vmatprep.subr.bf16.mxu0 0
    %1228 = vmatpush1.bf16.xpose.msra.mxu0 0
    %1229 = vmatprep.subr.bf16.mxu0 0
    %1230 = vmatpush1.bf16.xpose.msra.mxu0 0
    %1231 = vmatprep.mubr.bf16.mxu0 0
    %1232 = vmatmul.mubr.bf16.gmra.mrb[0].mxu0 %v1188
    %v1233 = vpop.f32.mrb[0].mxu0
    %v1234 = vadd.f32 0.0, %v1233
    %v1235 = vpop.f32.mrb[0].mxu0
    %v1236 = vpop.f32.mrb[0].mxu0
    %v1237 = vadd.f32 0.0, %v1236
    %v1238 = vpop.f32.mrb[0].mxu0
    %1239 = vmatprep.mubr.bf16.mxu0 0
    %1240 = vmatmul.mubr.bf16.gmra.mrb[0].mxu0 %v1191
    %v1241 = vpop.f32.mrb[0].mxu0
    %v1242 = vadd.f32 0.0, %v1241
    %v1243 = vpop.f32.mrb[0].mxu0
    %v1244 = vpop.f32.mrb[0].mxu0
    %v1245 = vadd.f32 0.0, %v1244
    %v1246 = vpop.f32.mrb[0].mxu0
    %1247 = vdwg.mxu0
    %s1248 = scalar_lea.vmem [#allocation10], 64
    %v1249 = vld [vmem:[%s1248] sm:$0xff]
    %v1250 = vld [vmem:[%s1248 + $0x8] sm:$0xff]
    %v1251 = vld [vmem:[%s1248 + $0x10] sm:$0xff]
    %v1252 = vld [vmem:[%s1248 + $0x18] sm:$0xff]
    %v1253 = vmul.f32 %v1234, %v1249
    %v1254 = vmul.f32 %v1237, %v1250
    %v1255 = vmul.f32 %v1242, %v1251
    %v1256 = vmul.f32 %v1245, %v1252
    %v1257 = vpack.c.bf16 %v1254, %v1253
    %v1258 = vpack.c.bf16 %v1256, %v1255
    %1259 = vrot.lane.b32.xlu0 %v870, 64
    %v1260 = vpop.permute.xlu0 %1259
    %1261 = vrot.lane.b32.xlu0 %v871, 64
    %v1262 = vpop.permute.xlu0 %1261
    %v1266 = vsel %vm798, %v1257, 0
    %v1269 = vsel %vm798, %v1258, 0
    %1271 = vmatprep.subr.bf16.mxu0 0
    %1272 = vmatpush1.bf16.msra.mxu0 %v1260
    %1273 = vmatprep.subr.bf16.mxu0 0
    %1274 = vmatpush1.bf16.msra.mxu0 %v1262
    %1275 = vmatprep.subr.bf16.mxu0 0
    %1276 = vmatpush1.bf16.msra.mxu0 0
    %1277 = vmatprep.subr.bf16.mxu0 0
    %1278 = vmatpush1.bf16.msra.mxu0 0
    %1279 = vmatprep.subr.bf16.mxu0 0
    %1280 = vmatpush1.bf16.msra.mxu0 0
    %1281 = vmatprep.subr.bf16.mxu0 0
    %1282 = vmatpush1.bf16.msra.mxu0 0
    %1283 = vmatprep.subr.bf16.mxu0 0
    %1284 = vmatpush1.bf16.msra.mxu0 0
    %1285 = vmatprep.subr.bf16.mxu0 0
    %1286 = vmatpush1.bf16.msra.mxu0 0
    %1287 = vmatprep.subr.bf16.mxu0 0
    %1288 = vmatpush1.bf16.msra.mxu0 0
    %1289 = vmatprep.subr.bf16.mxu0 0
    %1290 = vmatpush1.bf16.msra.mxu0 0
    %1291 = vmatprep.subr.bf16.mxu0 0
    %1292 = vmatpush1.bf16.msra.mxu0 0
    %1293 = vmatprep.subr.bf16.mxu0 0
    %1294 = vmatpush1.bf16.msra.mxu0 0
    %1295 = vmatprep.subr.bf16.mxu0 0
    %1296 = vmatpush1.bf16.msra.mxu0 0
    %1297 = vmatprep.subr.bf16.mxu0 0
    %1298 = vmatpush1.bf16.msra.mxu0 0
    %1299 = vmatprep.subr.bf16.mxu0 0
    %1300 = vmatpush1.bf16.msra.mxu0 0
    %1301 = vmatprep.subr.bf16.mxu0 0
    %1302 = vmatpush1.bf16.msra.mxu0 0
    %1303 = vmatprep.mubr.bf16.mxu0 0
    %1304 = vmatmul.mubr.bf16.gmra.mrb[0].mxu0 %v1266
    %v1305 = vpop.f32.mrb[0].mxu0
    %v1306 = vadd.f32 0.0, %v1305
    %v1307 = vpop.f32.mrb[0].mxu0
    %v1308 = vpop.f32.mrb[0].mxu0
    %v1309 = vadd.f32 0.0, %v1308
    %v1310 = vpop.f32.mrb[0].mxu0
    %1311 = vmatprep.mubr.bf16.mxu0 0
    %1312 = vmatmul.mubr.bf16.gmra.mrb[0].mxu0 %v1269
    %v1313 = vpop.f32.mrb[0].mxu0
    %v1314 = vadd.f32 0.0, %v1313
    %v1315 = vpop.f32.mrb[0].mxu0
    %v1316 = vpop.f32.mrb[0].mxu0
    %v1317 = vadd.f32 0.0, %v1316
    %v1318 = vpop.f32.mrb[0].mxu0
    %1319 = vdwg.mxu0
    %v1320 = vsel %vm798, %v1306, 0.0
    %1321 = vadd.xlane.f32.xlu0 %v1320
    %v1322 = vpop.xlane.xlu0 %1321
    %v1323 = vsel %vm798, %v1309, 0.0
    %1324 = vadd.xlane.f32.xlu0 %v1323
    %v1325 = vpop.xlane.xlu0 %1324
    %v1326 = vsel %vm798, %v1314, 0.0
    %1327 = vadd.xlane.f32.xlu0 %v1326
    %v1328 = vpop.xlane.xlu0 %1327
    %v1329 = vsel %vm798, %v1317, 0.0
    %1330 = vadd.xlane.f32.xlu0 %v1329
    %v1331 = vpop.xlane.xlu0 %1330
    %v1332 = vmul.f32 %v1322, %v939
    %v1333 = vmul.f32 %v1325, %v939
    %v1334 = vmul.f32 %v1328, %v939
    %v1335 = vmul.f32 %v1331, %v939
    %v1336 = vsub.f32 %v1306, %v1332
    %v1337 = vsub.f32 %v1309, %v1333
    %v1338 = vsub.f32 %v1314, %v1334
    %v1339 = vsub.f32 %v1317, %v1335
    %v1340 = vmul.f32 %v1336, %v1336
    %v1341 = vmul.f32 %v1337, %v1337
    %v1342 = vmul.f32 %v1338, %v1338
    %v1343 = vmul.f32 %v1339, %v1339
    %v1344 = vsel %vm798, %v1340, 0.0
    %1345 = vadd.xlane.f32.xlu0 %v1344
    %v1346 = vpop.xlane.xlu0 %1345
    %v1347 = vsel %vm798, %v1341, 0.0
    %1348 = vadd.xlane.f32.xlu0 %v1347
    %v1349 = vpop.xlane.xlu0 %1348
    %v1350 = vsel %vm798, %v1342, 0.0
    %1351 = vadd.xlane.f32.xlu0 %v1350
    %v1352 = vpop.xlane.xlu0 %1351
    %v1353 = vsel %vm798, %v1343, 0.0
    %1354 = vadd.xlane.f32.xlu0 %v1353
    %v1355 = vpop.xlane.xlu0 %1354
    %v1356 = vmul.f32 %v1346, %v939
    %v1357 = vmul.f32 %v1349, %v939
    %v1358 = vmul.f32 %v1352, %v939
    %v1359 = vmul.f32 %v1355, %v939
    %v1360 = vadd.f32 %v1356, 1e-05
    %v1361 = vadd.f32 %v1357, 1e-05
    %v1362 = vadd.f32 %v1358, 1e-05
    %v1363 = vadd.f32 %v1359, 1e-05
    %v1364 = vrsqrt.pop %v1360
    %v1365 = vrsqrt.pop %v1361
    %v1366 = vrsqrt.pop %v1362
    %v1367 = vrsqrt.pop %v1363
    %v1368 = vmul.f32 %v1336, %v1364
    %v1369 = vmul.f32 %v1337, %v1365
    %v1370 = vmul.f32 %v1338, %v1366
    %v1371 = vmul.f32 %v1339, %v1367
    %1372 = vrot.lane.b32.xlu0 %v794, 32
    %v1373 = vpop.permute.xlu0 %1372
    %1374 = vrot.lane.b32.xlu0 %v795, 32
    %v1375 = vpop.permute.xlu0 %1374
    %1376 = vrot.lane.b32.xlu0 %v796, 32
    %v1377 = vpop.permute.xlu0 %1376
    %1378 = vrot.lane.b32.xlu0 %v797, 32
    %v1379 = vpop.permute.xlu0 %1378
    %v1381 = vsel %vm798, %v1373, 0
    %v1384 = vsel %vm798, %v1375, 0
    %v1387 = vsel %vm798, %v1377, 0
    %v1390 = vsel %vm798, %v1379, 0
    %1392 = vmatprep.subr.bf16.mxu0 0
    %1393 = vmatpush1.bf16.xpose.msra.mxu0 %v1387
    %1394 = vmatprep.subr.bf16.mxu0 0
    %1395 = vmatpush1.bf16.xpose.msra.mxu0 %v1390
    %1396 = vmatprep.subr.bf16.mxu0 0
    %1397 = vmatpush1.bf16.xpose.msra.mxu0 0
    %1398 = vmatprep.subr.bf16.mxu0 0
    %1399 = vmatpush1.bf16.xpose.msra.mxu0 0
    %1400 = vmatprep.subr.bf16.mxu0 0
    %1401 = vmatpush1.bf16.xpose.msra.mxu0 0
    %1402 = vmatprep.subr.bf16.mxu0 0
    %1403 = vmatpush1.bf16.xpose.msra.mxu0 0
    %1404 = vmatprep.subr.bf16.mxu0 0
    %1405 = vmatpush1.bf16.xpose.msra.mxu0 0
    %1406 = vmatprep.subr.bf16.mxu0 0
    %1407 = vmatpush1.bf16.xpose.msra.mxu0 0
    %1408 = vmatprep.subr.bf16.mxu0 0
    %1409 = vmatpush1.bf16.xpose.msra.mxu0 0
    %1410 = vmatprep.subr.bf16.mxu0 0
    %1411 = vmatpush1.bf16.xpose.msra.mxu0 0
    %1412 = vmatprep.subr.bf16.mxu0 0
    %1413 = vmatpush1.bf16.xpose.msra.mxu0 0
    %1414 = vmatprep.subr.bf16.mxu0 0
    %1415 = vmatpush1.bf16.xpose.msra.mxu0 0
    %1416 = vmatprep.subr.bf16.mxu0 0
    %1417 = vmatpush1.bf16.xpose.msra.mxu0 0
    %1418 = vmatprep.subr.bf16.mxu0 0
    %1419 = vmatpush1.bf16.xpose.msra.mxu0 0
    %1420 = vmatprep.subr.bf16.mxu0 0
    %1421 = vmatpush1.bf16.xpose.msra.mxu0 0
    %1422 = vmatprep.subr.bf16.mxu0 0
    %1423 = vmatpush1.bf16.xpose.msra.mxu0 0
    %1424 = vmatprep.mubr.bf16.mxu0 0
    %1425 = vmatmul.mubr.bf16.gmra.mrb[0].mxu0 %v1381
    %v1426 = vpop.f32.mrb[0].mxu0
    %v1427 = vadd.f32 0.0, %v1426
    %v1428 = vpop.f32.mrb[0].mxu0
    %v1429 = vpop.f32.mrb[0].mxu0
    %v1430 = vadd.f32 0.0, %v1429
    %v1431 = vpop.f32.mrb[0].mxu0
    %1432 = vmatprep.mubr.bf16.mxu0 0
    %1433 = vmatmul.mubr.bf16.gmra.mrb[0].mxu0 %v1384
    %v1434 = vpop.f32.mrb[0].mxu0
    %v1435 = vadd.f32 0.0, %v1434
    %v1436 = vpop.f32.mrb[0].mxu0
    %v1437 = vpop.f32.mrb[0].mxu0
    %v1438 = vadd.f32 0.0, %v1437
    %v1439 = vpop.f32.mrb[0].mxu0
    %1440 = vdwg.mxu0
    %s1441 = scalar_lea.vmem [#allocation10], 96
    %v1442 = vld [vmem:[%s1441] sm:$0xff]
    %v1443 = vld [vmem:[%s1441 + $0x8] sm:$0xff]
    %v1444 = vld [vmem:[%s1441 + $0x10] sm:$0xff]
    %v1445 = vld [vmem:[%s1441 + $0x18] sm:$0xff]
    %v1446 = vmul.f32 %v1427, %v1442
    %v1447 = vmul.f32 %v1430, %v1443
    %v1448 = vmul.f32 %v1435, %v1444
    %v1449 = vmul.f32 %v1438, %v1445
    %v1450 = vpack.c.bf16 %v1447, %v1446
    %v1451 = vpack.c.bf16 %v1449, %v1448
    %1452 = vrot.lane.b32.xlu0 %v870, 32
    %v1453 = vpop.permute.xlu0 %1452
    %1454 = vrot.lane.b32.xlu0 %v871, 32
    %v1455 = vpop.permute.xlu0 %1454
    %v1459 = vsel %vm798, %v1450, 0
    %v1462 = vsel %vm798, %v1451, 0
    %1464 = vmatprep.subr.bf16.mxu0 0
    %1465 = vmatpush1.bf16.msra.mxu0 %v1453
    %1466 = vmatprep.subr.bf16.mxu0 0
    %1467 = vmatpush1.bf16.msra.mxu0 %v1455
    %1468 = vmatprep.subr.bf16.mxu0 0
    %1469 = vmatpush1.bf16.msra.mxu0 0
    %1470 = vmatprep.subr.bf16.mxu0 0
    %1471 = vmatpush1.bf16.msra.mxu0 0
    %1472 = vmatprep.subr.bf16.mxu0 0
    %1473 = vmatpush1.bf16.msra.mxu0 0
    %1474 = vmatprep.subr.bf16.mxu0 0
    %1475 = vmatpush1.bf16.msra.mxu0 0
    %1476 = vmatprep.subr.bf16.mxu0 0
    %1477 = vmatpush1.bf16.msra.mxu0 0
    %1478 = vmatprep.subr.bf16.mxu0 0
    %1479 = vmatpush1.bf16.msra.mxu0 0
    %1480 = vmatprep.subr.bf16.mxu0 0
    %1481 = vmatpush1.bf16.msra.mxu0 0
    %1482 = vmatprep.subr.bf16.mxu0 0
    %1483 = vmatpush1.bf16.msra.mxu0 0
    %1484 = vmatprep.subr.bf16.mxu0 0
    %1485 = vmatpush1.bf16.msra.mxu0 0
    %1486 = vmatprep.subr.bf16.mxu0 0
    %1487 = vmatpush1.bf16.msra.mxu0 0
    %1488 = vmatprep.subr.bf16.mxu0 0
    %1489 = vmatpush1.bf16.msra.mxu0 0
    %1490 = vmatprep.subr.bf16.mxu0 0
    %1491 = vmatpush1.bf16.msra.mxu0 0
    %1492 = vmatprep.subr.bf16.mxu0 0
    %1493 = vmatpush1.bf16.msra.mxu0 0
    %1494 = vmatprep.subr.bf16.mxu0 0
    %1495 = vmatpush1.bf16.msra.mxu0 0
    %1496 = vmatprep.mubr.bf16.mxu0 0
    %1497 = vmatmul.mubr.bf16.gmra.mrb[0].mxu0 %v1459
    %v1498 = vpop.f32.mrb[0].mxu0
    %v1499 = vadd.f32 0.0, %v1498
    %v1500 = vpop.f32.mrb[0].mxu0
    %v1501 = vpop.f32.mrb[0].mxu0
    %v1502 = vadd.f32 0.0, %v1501
    %v1503 = vpop.f32.mrb[0].mxu0
    %1504 = vmatprep.mubr.bf16.mxu0 0
    %1505 = vmatmul.mubr.bf16.gmra.mrb[0].mxu0 %v1462
    %v1506 = vpop.f32.mrb[0].mxu0
    %v1507 = vadd.f32 0.0, %v1506
    %v1508 = vpop.f32.mrb[0].mxu0
    %v1509 = vpop.f32.mrb[0].mxu0
    %v1510 = vadd.f32 0.0, %v1509
    %v1511 = vpop.f32.mrb[0].mxu0
    %1512 = vdwg.mxu0
    %v1513 = vsel %vm798, %v1499, 0.0
    %1514 = vadd.xlane.f32.xlu0 %v1513
    %v1515 = vpop.xlane.xlu0 %1514
    %v1516 = vsel %vm798, %v1502, 0.0
    %1517 = vadd.xlane.f32.xlu0 %v1516
    %v1518 = vpop.xlane.xlu0 %1517
    %v1519 = vsel %vm798, %v1507, 0.0
    %1520 = vadd.xlane.f32.xlu0 %v1519
    %v1521 = vpop.xlane.xlu0 %1520
    %v1522 = vsel %vm798, %v1510, 0.0
    %1523 = vadd.xlane.f32.xlu0 %v1522
    %v1524 = vpop.xlane.xlu0 %1523
    %v1525 = vmul.f32 %v1515, %v939
    %v1526 = vmul.f32 %v1518, %v939
    %v1527 = vmul.f32 %v1521, %v939
    %v1528 = vmul.f32 %v1524, %v939
    %v1529 = vsub.f32 %v1499, %v1525
    %v1530 = vsub.f32 %v1502, %v1526
    %v1531 = vsub.f32 %v1507, %v1527
    %v1532 = vsub.f32 %v1510, %v1528
    %v1533 = vmul.f32 %v1529, %v1529
    %v1534 = vmul.f32 %v1530, %v1530
    %v1535 = vmul.f32 %v1531, %v1531
    %v1536 = vmul.f32 %v1532, %v1532
    %v1537 = vsel %vm798, %v1533, 0.0
    %1538 = vadd.xlane.f32.xlu0 %v1537
    %v1539 = vpop.xlane.xlu0 %1538
    %v1540 = vsel %vm798, %v1534, 0.0
    %1541 = vadd.xlane.f32.xlu0 %v1540
    %v1542 = vpop.xlane.xlu0 %1541
    %v1543 = vsel %vm798, %v1535, 0.0
    %1544 = vadd.xlane.f32.xlu0 %v1543
    %v1545 = vpop.xlane.xlu0 %1544
    %v1546 = vsel %vm798, %v1536, 0.0
    %1547 = vadd.xlane.f32.xlu0 %v1546
    %v1548 = vpop.xlane.xlu0 %1547
    %v1549 = vmul.f32 %v1539, %v939
    %v1550 = vmul.f32 %v1542, %v939
    %v1551 = vmul.f32 %v1545, %v939
    %v1552 = vmul.f32 %v1548, %v939
    %v1553 = vadd.f32 %v1549, 1e-05
    %v1554 = vadd.f32 %v1550, 1e-05
    %v1555 = vadd.f32 %v1551, 1e-05
    %v1556 = vadd.f32 %v1552, 1e-05
    %v1557 = vrsqrt.pop %v1553
    %v1558 = vrsqrt.pop %v1554
    %v1559 = vrsqrt.pop %v1555
    %v1560 = vrsqrt.pop %v1556
    %v1561 = vmul.f32 %v1529, %v1557
    %v1562 = vmul.f32 %v1530, %v1558
    %v1563 = vmul.f32 %v1531, %v1559
    %v1564 = vmul.f32 %v1532, %v1560
    %1569 = vrot.lane.b32.xlu0 %v1175, 32
    %v1570 = vpop.permute.xlu0 %1569
    %1571 = vrot.lane.b32.xlu0 %v1176, 32
    %v1572 = vpop.permute.xlu0 %1571
    %1573 = vrot.lane.b32.xlu0 %v1177, 32
    %v1574 = vpop.permute.xlu0 %1573
    %1575 = vrot.lane.b32.xlu0 %v1178, 32
    %v1576 = vpop.permute.xlu0 %1575
    %1585 = vrot.lane.b32.xlu0 %v1368, 64
    %v1586 = vpop.permute.xlu0 %1585
    %1587 = vrot.lane.b32.xlu0 %v1369, 64
    %v1588 = vpop.permute.xlu0 %1587
    %1589 = vrot.lane.b32.xlu0 %v1370, 64
    %v1590 = vpop.permute.xlu0 %1589
    %1591 = vrot.lane.b32.xlu0 %v1371, 64
    %v1592 = vpop.permute.xlu0 %1591
    %1601 = vrot.lane.b32.xlu0 %v1561, 96
    %v1602 = vpop.permute.xlu0 %1601
    %1603 = vrot.lane.b32.xlu0 %v1562, 96
    %v1604 = vpop.permute.xlu0 %1603
    %1605 = vrot.lane.b32.xlu0 %v1563, 96
    %v1606 = vpop.permute.xlu0 %1605
    %1607 = vrot.lane.b32.xlu0 %v1564, 96
    %v1608 = vpop.permute.xlu0 %1607
    %v1613 = vsel %vm798, %v976, %v1570
    %v1614 = vsel %vm798, %v977, %v1572
    %v1615 = vsel %vm798, %v978, %v1574
    %v1616 = vsel %vm798, %v979, %v1576
    %v1617 = vsel %vm363, %v1613, %v1586
    %v1618 = vsel %vm363, %v1614, %v1588
    %v1619 = vsel %vm363, %v1615, %v1590
    %v1620 = vsel %vm363, %v1616, %v1592
    %vm1621 = vcmask 785408
    %v1622 = vsel %vm1621, %v1617, %v1602
    %v1623 = vsel %vm1621, %v1618, %v1604
    %v1624 = vsel %vm1621, %v1619, %v1606
    %v1625 = vsel %vm1621, %v1620, %v1608
    %v1626 = vld [vmem:[#allocation17] sm:$0x1]
    %v1628 = vlaneseq
    %v1629 = vshrl.u32 %v1628, 7
    %v1630 = vsub.s32 0, %v1629
    %v1631 = vrot.slane %v1626, %v1630
    %v1633 = vmul.f32 %v1622, %v1631
    %v1634 = vmul.f32 %v1623, %v1631
    %v1635 = vmul.f32 %v1624, %v1631
    %v1636 = vmul.f32 %v1625, %v1631
    %v1637 = vld [vmem:[#allocation19] sm:$0x1]
    %v1639 = vlaneseq
    %v1640 = vshrl.u32 %v1639, 7
    %v1641 = vsub.s32 0, %v1640
    %v1642 = vrot.slane %v1637, %v1641
    %v1644 = vadd.f32 %v1633, %v1642
    %v1645 = vadd.f32 %v1634, %v1642
    %v1646 = vadd.f32 %v1635, %v1642
    %v1647 = vadd.f32 %v1636, %v1642
    %v1648 = vxor.u32 %v778, 2147483648
    %v1649 = vxor.u32 %v782, 2147483648
    %v1650 = vxor.u32 %v788, 2147483648
    %v1651 = vxor.u32 %v792, 2147483648
    %v1652 = vmul.f32 %v1648, 1.442695
    %v1653 = vpow.pop %v1652
    %v1654 = vmul.f32 %v1649, 1.442695
    %v1655 = vpow.pop %v1654
    %v1656 = vmul.f32 %v1650, 1.442695
    %v1657 = vpow.pop %v1656
    %v1658 = vmul.f32 %v1651, 1.442695
    %v1659 = vpow.pop %v1658
    %v1660 = vadd.f32 %v1653, 1.0
    %v1661 = vadd.f32 %v1655, 1.0
    %v1662 = vadd.f32 %v1657, 1.0
    %v1663 = vadd.f32 %v1659, 1.0
    %v1664 = vrcp.pop %v1660
    %v1665 = vmul.f32 1.0, %v1664
    %v1666 = vrcp.pop %v1661
    %v1667 = vmul.f32 1.0, %v1666
    %v1668 = vrcp.pop %v1662
    %v1669 = vmul.f32 1.0, %v1668
    %v1670 = vrcp.pop %v1663
    %v1671 = vmul.f32 1.0, %v1670
    %v1672 = vmul.f32 %v778, %v1665
    %v1673 = vmul.f32 %v782, %v1667
    %v1674 = vmul.f32 %v788, %v1669
    %v1675 = vmul.f32 %v792, %v1671
    %v1676 = vmul.f32 %v1672, %v1644
    %v1677 = vmul.f32 %v1673, %v1645
    %v1678 = vmul.f32 %v1674, %v1646
    %v1679 = vmul.f32 %v1675, %v1647
    %v1680 = vpack.c.bf16 %v1677, %v1676
    %v1681 = vpack.c.bf16 %v1679, %v1678
    %v1682 = vld [vmem:[#allocation16] sm:$0xf]
    %v1683 = vld [vmem:[#allocation16 + $0x4] sm:$0xf]
    %v1684 = vld [vmem:[#allocation16 + $0x8] sm:$0xf]
    %v1685 = vld [vmem:[#allocation16 + $0xc] sm:$0xf]
    %v1686 = vld [vmem:[#allocation16 + $0x10] sm:$0xf]
    %v1687 = vld [vmem:[#allocation16 + $0x14] sm:$0xf]
    %v1688 = vld [vmem:[#allocation16 + $0x18] sm:$0xf]
    %v1689 = vld [vmem:[#allocation16 + $0x1c] sm:$0xf]
    %v1690 = vld [vmem:[#allocation16 + $0x20] sm:$0xf]
    %v1691 = vld [vmem:[#allocation16 + $0x24] sm:$0xf]
    %v1692 = vld [vmem:[#allocation16 + $0x28] sm:$0xf]
    %v1693 = vld [vmem:[#allocation16 + $0x2c] sm:$0xf]
    %v1694 = vld [vmem:[#allocation16 + $0x30] sm:$0xf]
    %v1695 = vld [vmem:[#allocation16 + $0x34] sm:$0xf]
    %v1696 = vld [vmem:[#allocation16 + $0x38] sm:$0xf]
    %v1697 = vld [vmem:[#allocation16 + $0x3c] sm:$0xf]
    %v1714 = vunpack.c.l.b16 %v1682
    %v1715 = vunpack.c.l.b16 %v1683
    %v1716 = vunpack.c.l.b16 %v1684
    %v1717 = vunpack.c.l.b16 %v1685
    %v1718 = vunpack.c.l.b16 %v1686
    %v1719 = vunpack.c.l.b16 %v1687
    %v1720 = vunpack.c.l.b16 %v1688
    %v1721 = vunpack.c.l.b16 %v1689
    %v1722 = vunpack.c.l.b16 %v1690
    %v1723 = vunpack.c.l.b16 %v1691
    %v1724 = vunpack.c.l.b16 %v1692
    %v1725 = vunpack.c.l.b16 %v1693
    %v1726 = vunpack.c.l.b16 %v1694
    %v1727 = vunpack.c.l.b16 %v1695
    %v1728 = vunpack.c.l.b16 %v1696
    %v1729 = vunpack.c.l.b16 %v1697
    %v1730 = vpack.c.b16 %v1715, %v1714
    %v1731 = vpack.c.b16 %v1717, %v1716
    %v1732 = vpack.c.b16 %v1719, %v1718
    %v1733 = vpack.c.b16 %v1721, %v1720
    %v1734 = vpack.c.b16 %v1723, %v1722
    %v1735 = vpack.c.b16 %v1725, %v1724
    %v1736 = vpack.c.b16 %v1727, %v1726
    %v1737 = vpack.c.b16 %v1729, %v1728
    %1746 = vmatprep.subr.bf16.mxu0 0
    %1747 = vmatpush1.bf16.msra.mxu0 %v1730
    %1748 = vmatprep.subr.bf16.mxu0 0
    %1749 = vmatpush1.bf16.msra.mxu0 %v1731
    %1750 = vmatprep.subr.bf16.mxu0 0
    %1751 = vmatpush1.bf16.msra.mxu0 %v1732
    %1752 = vmatprep.subr.bf16.mxu0 0
    %1753 = vmatpush1.bf16.msra.mxu0 %v1733
    %1754 = vmatprep.subr.bf16.mxu0 0
    %1755 = vmatpush1.bf16.msra.mxu0 %v1734
    %1756 = vmatprep.subr.bf16.mxu0 0
    %1757 = vmatpush1.bf16.msra.mxu0 %v1735
    %1758 = vmatprep.subr.bf16.mxu0 0
    %1759 = vmatpush1.bf16.msra.mxu0 %v1736
    %1760 = vmatprep.subr.bf16.mxu0 0
    %1761 = vmatpush1.bf16.msra.mxu0 %v1737
    %1762 = vmatprep.subr.bf16.mxu0 0
    %1763 = vmatpush1.bf16.msra.mxu0 0
    %1764 = vmatprep.subr.bf16.mxu0 0
    %1765 = vmatpush1.bf16.msra.mxu0 0
    %1766 = vmatprep.subr.bf16.mxu0 0
    %1767 = vmatpush1.bf16.msra.mxu0 0
    %1768 = vmatprep.subr.bf16.mxu0 0
    %1769 = vmatpush1.bf16.msra.mxu0 0
    %1770 = vmatprep.subr.bf16.mxu0 0
    %1771 = vmatpush1.bf16.msra.mxu0 0
    %1772 = vmatprep.subr.bf16.mxu0 0
    %1773 = vmatpush1.bf16.msra.mxu0 0
    %1774 = vmatprep.subr.bf16.mxu0 0
    %1775 = vmatpush1.bf16.msra.mxu0 0
    %1776 = vmatprep.subr.bf16.mxu0 0
    %1777 = vmatpush1.bf16.msra.mxu0 0
    %1778 = vmatprep.mubr.bf16.mxu0 0
    %1779 = vmatmul.mubr.bf16.gmra.mrb[0].mxu0 %v1680
    %v1780 = vpop.f32.mrb[0].mxu0
    %v1781 = vadd.f32 %v423, %v1780
    %v1782 = vpop.f32.mrb[0].mxu0
    %v1783 = vpop.f32.mrb[0].mxu0
    %v1784 = vadd.f32 %v424, %v1783
    %v1785 = vpop.f32.mrb[0].mxu0
    %1786 = vmatprep.mubr.bf16.mxu0 0
    %1787 = vmatmul.mubr.bf16.gmra.mrb[0].mxu0 %v1681
    %v1788 = vpop.f32.mrb[0].mxu0
    %v1789 = vadd.f32 %v425, %v1788
    %v1790 = vpop.f32.mrb[0].mxu0
    %v1791 = vpop.f32.mrb[0].mxu0
    %v1792 = vadd.f32 %v426, %v1791
    %v1793 = vpop.f32.mrb[0].mxu0
    %1794 = vdwg.mxu0
    %v1795 = vld [vmem:[#allocation20] sm:$0x1]
    %v1796 = vld [vmem:[#allocation22] sm:$0x1]
    %1797 = vadd.xlane.f32.xlu0 %v1781
    %v1798 = vpop.xlane.xlu0 %1797
    %1799 = vadd.xlane.f32.xlu0 %v1784
    %v1800 = vpop.xlane.xlu0 %1799
    %1801 = vadd.xlane.f32.xlu0 %v1789
    %v1802 = vpop.xlane.xlu0 %1801
    %1803 = vadd.xlane.f32.xlu0 %v1792
    %v1804 = vpop.xlane.xlu0 %1803
    %v1805 = vmul.f32 %v1798, %v437
    %v1806 = vmul.f32 %v1800, %v437
    %v1807 = vmul.f32 %v1802, %v437
    %v1808 = vmul.f32 %v1804, %v437
    %v1809 = vsub.f32 %v1781, %v1805
    %v1810 = vsub.f32 %v1784, %v1806
    %v1811 = vsub.f32 %v1789, %v1807
    %v1812 = vsub.f32 %v1792, %v1808
    %v1813 = vmul.f32 %v1809, %v1809
    %v1814 = vmul.f32 %v1810, %v1810
    %v1815 = vmul.f32 %v1811, %v1811
    %v1816 = vmul.f32 %v1812, %v1812
    %1817 = vadd.xlane.f32.xlu0 %v1813
    %v1818 = vpop.xlane.xlu0 %1817
    %1819 = vadd.xlane.f32.xlu0 %v1814
    %v1820 = vpop.xlane.xlu0 %1819
    %1821 = vadd.xlane.f32.xlu0 %v1815
    %v1822 = vpop.xlane.xlu0 %1821
    %1823 = vadd.xlane.f32.xlu0 %v1816
    %v1824 = vpop.xlane.xlu0 %1823
    %v1825 = vmul.f32 %v1818, %v437
    %v1826 = vmul.f32 %v1820, %v437
    %v1827 = vmul.f32 %v1822, %v437
    %v1828 = vmul.f32 %v1824, %v437
    %v1829 = vadd.f32 %v1825, 1e-05
    %v1830 = vadd.f32 %v1826, 1e-05
    %v1831 = vadd.f32 %v1827, 1e-05
    %v1832 = vadd.f32 %v1828, 1e-05
    %v1833 = vrsqrt.pop %v1829
    %v1834 = vrsqrt.pop %v1830
    %v1835 = vrsqrt.pop %v1831
    %v1836 = vrsqrt.pop %v1832
    %v1837 = vmul.f32 %v1809, %v1833
    %v1838 = vmul.f32 %v1810, %v1834
    %v1839 = vmul.f32 %v1811, %v1835
    %v1840 = vmul.f32 %v1812, %v1836
    %v1842 = vlaneseq
    %v1843 = vshrl.u32 %v1842, 7
    %v1844 = vsub.s32 0, %v1843
    %v1845 = vrot.slane %v1795, %v1844
    %v1847 = vmul.f32 %v1837, %v1845
    %v1848 = vmul.f32 %v1838, %v1845
    %v1849 = vmul.f32 %v1839, %v1845
    %v1850 = vmul.f32 %v1840, %v1845
    %v1852 = vlaneseq
    %v1853 = vshrl.u32 %v1852, 7
    %v1854 = vsub.s32 0, %v1853
    %v1855 = vrot.slane %v1796, %v1854
    %v1857 = vadd.f32 %v1847, %v1855
    %v1858 = vadd.f32 %v1848, %v1855
    %v1859 = vadd.f32 %v1849, %v1855
    %v1860 = vadd.f32 %v1850, %v1855
    %v1861 = vpack.c.bf16 %v1858, %v1857
    %v1862 = vpack.c.bf16 %v1860, %v1859
    %v1863 = vld [vmem:[#allocation23] sm:$0xff]
    %v1864 = vld [vmem:[#allocation23 + $0x8] sm:$0xff]
    %v1865 = vld [vmem:[#allocation23 + $0x10] sm:$0xff]
    %v1866 = vld [vmem:[#allocation23 + $0x18] sm:$0xff]
    %v1867 = vld [vmem:[#allocation23 + $0x20] sm:$0xff]
    %v1868 = vld [vmem:[#allocation23 + $0x28] sm:$0xff]
    %v1869 = vld [vmem:[#allocation23 + $0x30] sm:$0xff]
    %v1870 = vld [vmem:[#allocation23 + $0x38] sm:$0xff]
    %v1871 = vld [vmem:[#allocation23 + $0x40] sm:$0xff]
    %v1872 = vld [vmem:[#allocation23 + $0x48] sm:$0xff]
    %v1873 = vld [vmem:[#allocation23 + $0x50] sm:$0xff]
    %v1874 = vld [vmem:[#allocation23 + $0x58] sm:$0xff]
    %v1875 = vld [vmem:[#allocation23 + $0x60] sm:$0xff]
    %v1876 = vld [vmem:[#allocation23 + $0x68] sm:$0xff]
    %v1877 = vld [vmem:[#allocation23 + $0x70] sm:$0xff]
    %v1878 = vld [vmem:[#allocation23 + $0x78] sm:$0xff]
    %v1879 = vld [vmem:[#allocation25] sm:$0x3]
    %v1881 = vlaneseq
    %v1882 = vshrl.u32 %v1881, 7
    %v1883 = vsub.s32 0, %v1882
    %v1884 = vrot.slane %v1879, %v1883
    %v1885 = vlaneseq
    %v1886 = vshrl.u32 %v1885, 7
    %v1887 = vsub.s32 1, %v1886
    %v1888 = vrot.slane %v1879, %v1887
    %v1907 = vunpack.c.l.b16 %v1863
    %v1908 = vunpack.c.h.b16 %v1863
    %v1909 = vunpack.c.l.b16 %v1864
    %v1910 = vunpack.c.h.b16 %v1864
    %v1911 = vunpack.c.l.b16 %v1865
    %v1912 = vunpack.c.h.b16 %v1865
    %v1913 = vunpack.c.l.b16 %v1866
    %v1914 = vunpack.c.h.b16 %v1866
    %v1915 = vunpack.c.l.b16 %v1867
    %v1916 = vunpack.c.h.b16 %v1867
    %v1917 = vunpack.c.l.b16 %v1868
    %v1918 = vunpack.c.h.b16 %v1868
    %v1919 = vunpack.c.l.b16 %v1869
    %v1920 = vunpack.c.h.b16 %v1869
    %v1921 = vunpack.c.l.b16 %v1870
    %v1922 = vunpack.c.h.b16 %v1870
    %v1923 = vunpack.c.l.b16 %v1871
    %v1924 = vunpack.c.h.b16 %v1871
    %v1925 = vunpack.c.l.b16 %v1872
    %v1926 = vunpack.c.h.b16 %v1872
    %v1927 = vunpack.c.l.b16 %v1873
    %v1928 = vunpack.c.h.b16 %v1873
    %v1929 = vunpack.c.l.b16 %v1874
    %v1930 = vunpack.c.h.b16 %v1874
    %v1931 = vunpack.c.l.b16 %v1875
    %v1932 = vunpack.c.h.b16 %v1875
    %v1933 = vunpack.c.l.b16 %v1876
    %v1934 = vunpack.c.h.b16 %v1876
    %v1935 = vunpack.c.l.b16 %v1877
    %v1936 = vunpack.c.h.b16 %v1877
    %v1937 = vunpack.c.l.b16 %v1878
    %v1938 = vunpack.c.h.b16 %v1878
    %v1939 = vpack.c.b16 %v1909, %v1907
    %v1940 = vpack.c.b16 %v1910, %v1908
    %v1941 = vpack.c.b16 %v1913, %v1911
    %v1942 = vpack.c.b16 %v1914, %v1912
    %v1943 = vpack.c.b16 %v1917, %v1915
    %v1944 = vpack.c.b16 %v1918, %v1916
    %v1945 = vpack.c.b16 %v1921, %v1919
    %v1946 = vpack.c.b16 %v1922, %v1920
    %v1947 = vpack.c.b16 %v1925, %v1923
    %v1948 = vpack.c.b16 %v1926, %v1924
    %v1949 = vpack.c.b16 %v1929, %v1927
    %v1950 = vpack.c.b16 %v1930, %v1928
    %v1951 = vpack.c.b16 %v1933, %v1931
    %v1952 = vpack.c.b16 %v1934, %v1932
    %v1953 = vpack.c.b16 %v1937, %v1935
    %v1954 = vpack.c.b16 %v1938, %v1936
    %1971 = vmatprep.subr.bf16.mxu0 %v1940
    %1972 = vmatpush1.bf16.msra.mxu0 %v1939
    %1973 = vmatprep.subr.bf16.mxu0 %v1942
    %1974 = vmatpush1.bf16.msra.mxu0 %v1941
    %1975 = vmatprep.subr.bf16.mxu0 %v1944
    %1976 = vmatpush1.bf16.msra.mxu0 %v1943
    %1977 = vmatprep.subr.bf16.mxu0 %v1946
    %1978 = vmatpush1.bf16.msra.mxu0 %v1945
    %1979 = vmatprep.subr.bf16.mxu0 %v1948
    %1980 = vmatpush1.bf16.msra.mxu0 %v1947
    %1981 = vmatprep.subr.bf16.mxu0 %v1950
    %1982 = vmatpush1.bf16.msra.mxu0 %v1949
    %1983 = vmatprep.subr.bf16.mxu0 %v1952
    %1984 = vmatpush1.bf16.msra.mxu0 %v1951
    %1985 = vmatprep.subr.bf16.mxu0 %v1954
    %1986 = vmatpush1.bf16.msra.mxu0 %v1953
    %1987 = vmatprep.subr.bf16.mxu0 0
    %1988 = vmatpush1.bf16.msra.mxu0 0
    %1989 = vmatprep.subr.bf16.mxu0 0
    %1990 = vmatpush1.bf16.msra.mxu0 0
    %1991 = vmatprep.subr.bf16.mxu0 0
    %1992 = vmatpush1.bf16.msra.mxu0 0
    %1993 = vmatprep.subr.bf16.mxu0 0
    %1994 = vmatpush1.bf16.msra.mxu0 0
    %1995 = vmatprep.subr.bf16.mxu0 0
    %1996 = vmatpush1.bf16.msra.mxu0 0
    %1997 = vmatprep.subr.bf16.mxu0 0
    %1998 = vmatpush1.bf16.msra.mxu0 0
    %1999 = vmatprep.subr.bf16.mxu0 0
    %2000 = vmatpush1.bf16.msra.mxu0 0
    %2001 = vmatprep.subr.bf16.mxu0 0
    %2002 = vmatpush1.bf16.msra.mxu0 0
    %2003 = vmatprep.mubr.bf16.mxu0 0
    %2004 = vmatmul.mubr.bf16.gmra.mrb[0].mxu0 %v1861
    %v2005 = vpop.f32.mrb[0].mxu0
    %v2006 = vadd.f32 %v1884, %v2005
    %v2007 = vpop.f32.mrb[0].mxu0
    %v2008 = vadd.f32 %v1888, %v2007
    %v2009 = vpop.f32.mrb[0].mxu0
    %v2010 = vadd.f32 %v1884, %v2009
    %v2011 = vpop.f32.mrb[0].mxu0
    %v2012 = vadd.f32 %v1888, %v2011
    %2013 = vmatprep.mubr.bf16.mxu0 0
    %2014 = vmatmul.mubr.bf16.gmra.mrb[0].mxu0 %v1862
    %v2015 = vpop.f32.mrb[0].mxu0
    %v2016 = vadd.f32 %v1884, %v2015
    %v2017 = vpop.f32.mrb[0].mxu0
    %v2018 = vadd.f32 %v1888, %v2017
    %v2019 = vpop.f32.mrb[0].mxu0
    %v2020 = vadd.f32 %v1884, %v2019
    %v2021 = vpop.f32.mrb[0].mxu0
    %v2022 = vadd.f32 %v1888, %v2021
    %2023 = vdwg.mxu0
    %v2024 = vmul.f32 %v2006, 0.5
    %v2025 = vmul.f32 %v2008, 0.5
    %v2026 = vmul.f32 %v2010, 0.5
    %v2027 = vmul.f32 %v2012, 0.5
    %v2028 = vmul.f32 %v2016, 0.5
    %v2029 = vmul.f32 %v2018, 0.5
    %v2030 = vmul.f32 %v2020, 0.5
    %v2031 = vmul.f32 %v2022, 0.5
    %v2032 = vmul.f32 %v2006, 0.70710677
    %v2033 = vmul.f32 %v2008, 0.70710677
    %v2034 = vmul.f32 %v2010, 0.70710677
    %v2035 = vmul.f32 %v2012, 0.70710677
    %v2036 = vmul.f32 %v2016, 0.70710677
    %v2037 = vmul.f32 %v2018, 0.70710677
    %v2038 = vmul.f32 %v2020, 0.70710677
    %v2039 = vmul.f32 %v2022, 0.70710677
    %v2040 = verf.f32.pop %v2032
    %v2041 = verf.f32.pop %v2033
    %v2042 = verf.f32.pop %v2034
    %v2043 = verf.f32.pop %v2035
    %v2044 = verf.f32.pop %v2036
    %v2045 = verf.f32.pop %v2037
    %v2046 = verf.f32.pop %v2038
    %v2047 = verf.f32.pop %v2039
    %v2048 = vadd.f32 %v2040, 1.0
    %v2049 = vadd.f32 %v2041, 1.0
    %v2050 = vadd.f32 %v2042, 1.0
    %v2051 = vadd.f32 %v2043, 1.0
    %v2052 = vadd.f32 %v2044, 1.0
    %v2053 = vadd.f32 %v2045, 1.0
    %v2054 = vadd.f32 %v2046, 1.0
    %v2055 = vadd.f32 %v2047, 1.0
    %v2056 = vmul.f32 %v2024, %v2048
    %v2057 = vmul.f32 %v2025, %v2049
    %v2058 = vmul.f32 %v2026, %v2050
    %v2059 = vmul.f32 %v2027, %v2051
    %v2060 = vmul.f32 %v2028, %v2052
    %v2061 = vmul.f32 %v2029, %v2053
    %v2062 = vmul.f32 %v2030, %v2054
    %v2063 = vmul.f32 %v2031, %v2055
    %v2064 = vpack.c.bf16 %v2058, %v2056
    %v2065 = vpack.c.bf16 %v2059, %v2057
    %v2066 = vpack.c.bf16 %v2062, %v2060
    %v2067 = vpack.c.bf16 %v2063, %v2061
    %v2068 = vld [vmem:[#allocation26] sm:$0xf]
    %v2069 = vld [vmem:[#allocation26 + $0x4] sm:$0xf]
    %v2070 = vld [vmem:[#allocation26 + $0x8] sm:$0xf]
    %v2071 = vld [vmem:[#allocation26 + $0xc] sm:$0xf]
    %v2072 = vld [vmem:[#allocation26 + $0x10] sm:$0xf]
    %v2073 = vld [vmem:[#allocation26 + $0x14] sm:$0xf]
    %v2074 = vld [vmem:[#allocation26 + $0x18] sm:$0xf]
    %v2075 = vld [vmem:[#allocation26 + $0x1c] sm:$0xf]
    %v2076 = vld [vmem:[#allocation26 + $0x20] sm:$0xf]
    %v2077 = vld [vmem:[#allocation26 + $0x24] sm:$0xf]
    %v2078 = vld [vmem:[#allocation26 + $0x28] sm:$0xf]
    %v2079 = vld [vmem:[#allocation26 + $0x2c] sm:$0xf]
    %v2080 = vld [vmem:[#allocation26 + $0x30] sm:$0xf]
    %v2081 = vld [vmem:[#allocation26 + $0x34] sm:$0xf]
    %v2082 = vld [vmem:[#allocation26 + $0x38] sm:$0xf]
    %v2083 = vld [vmem:[#allocation26 + $0x3c] sm:$0xf]
    %v2084 = vld [vmem:[#allocation26 + $0x40] sm:$0xf]
    %v2085 = vld [vmem:[#allocation26 + $0x44] sm:$0xf]
    %v2086 = vld [vmem:[#allocation26 + $0x48] sm:$0xf]
    %v2087 = vld [vmem:[#allocation26 + $0x4c] sm:$0xf]
    %v2088 = vld [vmem:[#allocation26 + $0x50] sm:$0xf]
    %v2089 = vld [vmem:[#allocation26 + $0x54] sm:$0xf]
    %v2090 = vld [vmem:[#allocation26 + $0x58] sm:$0xf]
    %v2091 = vld [vmem:[#allocation26 + $0x5c] sm:$0xf]
    %v2092 = vld [vmem:[#allocation26 + $0x60] sm:$0xf]
    %v2093 = vld [vmem:[#allocation26 + $0x64] sm:$0xf]
    %v2094 = vld [vmem:[#allocation26 + $0x68] sm:$0xf]
    %v2095 = vld [vmem:[#allocation26 + $0x6c] sm:$0xf]
    %v2096 = vld [vmem:[#allocation26 + $0x70] sm:$0xf]
    %v2097 = vld [vmem:[#allocation26 + $0x74] sm:$0xf]
    %v2098 = vld [vmem:[#allocation26 + $0x78] sm:$0xf]
    %v2099 = vld [vmem:[#allocation26 + $0x7c] sm:$0xf]
    %v2100 = vld [vmem:[#allocation28] sm:$0x1]
    %v2102 = vlaneseq
    %v2103 = vshrl.u32 %v2102, 7
    %v2104 = vsub.s32 0, %v2103
    %v2105 = vrot.slane %v2100, %v2104
    %v2139 = vunpack.c.l.b16 %v2068
    %v2140 = vunpack.c.l.b16 %v2069
    %v2141 = vunpack.c.l.b16 %v2070
    %v2142 = vunpack.c.l.b16 %v2071
    %v2143 = vunpack.c.l.b16 %v2072
    %v2144 = vunpack.c.l.b16 %v2073
    %v2145 = vunpack.c.l.b16 %v2074
    %v2146 = vunpack.c.l.b16 %v2075
    %v2147 = vunpack.c.l.b16 %v2076
    %v2148 = vunpack.c.l.b16 %v2077
    %v2149 = vunpack.c.l.b16 %v2078
    %v2150 = vunpack.c.l.b16 %v2079
    %v2151 = vunpack.c.l.b16 %v2080
    %v2152 = vunpack.c.l.b16 %v2081
    %v2153 = vunpack.c.l.b16 %v2082
    %v2154 = vunpack.c.l.b16 %v2083
    %v2155 = vunpack.c.l.b16 %v2084
    %v2156 = vunpack.c.l.b16 %v2085
    %v2157 = vunpack.c.l.b16 %v2086
    %v2158 = vunpack.c.l.b16 %v2087
    %v2159 = vunpack.c.l.b16 %v2088
    %v2160 = vunpack.c.l.b16 %v2089
    %v2161 = vunpack.c.l.b16 %v2090
    %v2162 = vunpack.c.l.b16 %v2091
    %v2163 = vunpack.c.l.b16 %v2092
    %v2164 = vunpack.c.l.b16 %v2093
    %v2165 = vunpack.c.l.b16 %v2094
    %v2166 = vunpack.c.l.b16 %v2095
    %v2167 = vunpack.c.l.b16 %v2096
    %v2168 = vunpack.c.l.b16 %v2097
    %v2169 = vunpack.c.l.b16 %v2098
    %v2170 = vunpack.c.l.b16 %v2099
    %v2171 = vpack.c.b16 %v2140, %v2139
    %v2172 = vpack.c.b16 %v2142, %v2141
    %v2173 = vpack.c.b16 %v2144, %v2143
    %v2174 = vpack.c.b16 %v2146, %v2145
    %v2175 = vpack.c.b16 %v2148, %v2147
    %v2176 = vpack.c.b16 %v2150, %v2149
    %v2177 = vpack.c.b16 %v2152, %v2151
    %v2178 = vpack.c.b16 %v2154, %v2153
    %v2179 = vpack.c.b16 %v2156, %v2155
    %v2180 = vpack.c.b16 %v2158, %v2157
    %v2181 = vpack.c.b16 %v2160, %v2159
    %v2182 = vpack.c.b16 %v2162, %v2161
    %v2183 = vpack.c.b16 %v2164, %v2163
    %v2184 = vpack.c.b16 %v2166, %v2165
    %v2185 = vpack.c.b16 %v2168, %v2167
    %v2186 = vpack.c.b16 %v2170, %v2169
    %2203 = vmatprep.subr.bf16.mxu0 0
    %2204 = vmatpush1.bf16.msra.mxu0 %v2171
    %2205 = vmatprep.subr.bf16.mxu0 0
    %2206 = vmatpush1.bf16.msra.mxu0 %v2172
    %2207 = vmatprep.subr.bf16.mxu0 0
    %2208 = vmatpush1.bf16.msra.mxu0 %v2173
    %2209 = vmatprep.subr.bf16.mxu0 0
    %2210 = vmatpush1.bf16.msra.mxu0 %v2174
    %2211 = vmatprep.subr.bf16.mxu0 0
    %2212 = vmatpush1.bf16.msra.mxu0 %v2175
    %2213 = vmatprep.subr.bf16.mxu0 0
    %2214 = vmatpush1.bf16.msra.mxu0 %v2176
    %2215 = vmatprep.subr.bf16.mxu0 0
    %2216 = vmatpush1.bf16.msra.mxu0 %v2177
    %2217 = vmatprep.subr.bf16.mxu0 0
    %2218 = vmatpush1.bf16.msra.mxu0 %v2178
    %2219 = vmatprep.subr.bf16.mxu0 0
    %2220 = vmatpush1.bf16.msra.mxu0 %v2179
    %2221 = vmatprep.subr.bf16.mxu0 0
    %2222 = vmatpush1.bf16.msra.mxu0 %v2180
    %2223 = vmatprep.subr.bf16.mxu0 0
    %2224 = vmatpush1.bf16.msra.mxu0 %v2181
    %2225 = vmatprep.subr.bf16.mxu0 0
    %2226 = vmatpush1.bf16.msra.mxu0 %v2182
    %2227 = vmatprep.subr.bf16.mxu0 0
    %2228 = vmatpush1.bf16.msra.mxu0 %v2183
    %2229 = vmatprep.subr.bf16.mxu0 0
    %2230 = vmatpush1.bf16.msra.mxu0 %v2184
    %2231 = vmatprep.subr.bf16.mxu0 0
    %2232 = vmatpush1.bf16.msra.mxu0 %v2185
    %2233 = vmatprep.subr.bf16.mxu0 0
    %2234 = vmatpush1.bf16.msra.mxu0 %v2186
    %2235 = vmatprep.mubr.bf16.mxu0 %v2065
    %2236 = vmatmul.mubr.bf16.gmra.mrb[0].mxu0 %v2064
    %v2237 = vpop.f32.mrb[0].mxu0
    %v2238 = vadd.f32 %v2105, %v2237
    %v2239 = vpop.f32.mrb[0].mxu0
    %v2240 = vpop.f32.mrb[0].mxu0
    %v2241 = vadd.f32 %v2105, %v2240
    %v2242 = vpop.f32.mrb[0].mxu0
    %2243 = vmatprep.mubr.bf16.mxu0 %v2067
    %2244 = vmatmul.mubr.bf16.gmra.mrb[0].mxu0 %v2066
    %v2245 = vpop.f32.mrb[0].mxu0
    %v2246 = vadd.f32 %v2105, %v2245
    %v2247 = vpop.f32.mrb[0].mxu0
    %v2248 = vpop.f32.mrb[0].mxu0
    %v2249 = vadd.f32 %v2105, %v2248
    %v2250 = vpop.f32.mrb[0].mxu0
    %2251 = vdwg.mxu0
    %v2252 = vadd.f32 %v2238, %v1781
    %v2253 = vadd.f32 %v2241, %v1784
    %v2254 = vadd.f32 %v2246, %v1789
    %v2255 = vadd.f32 %v2249, %v1792
    %2256 = vst [vmem:[#allocation33] sm:$0xff] %v2252
    %2257 = vst [vmem:[#allocation33 + $0x8] sm:$0xff] %v2253
    %2258 = vst [vmem:[#allocation33 + $0x10] sm:$0xff] %v2254
    %2259 = vst [vmem:[#allocation33 + $0x18] sm:$0xff] %v2255
    %s2260 = scalar_lea.vmem [#allocation11], 1
    %v2261 = vld [vmem:[%s2260] sm:$0x1]
    %s2262 = scalar_lea.vmem [#allocation13], 1
    %v2263 = vld [vmem:[%s2262] sm:$0x1]
    %2264 = vadd.xlane.f32.xlu0 %v2252
    %v2265 = vpop.xlane.xlu0 %2264
    %2266 = vadd.xlane.f32.xlu0 %v2253
    %v2267 = vpop.xlane.xlu0 %2266
    %2268 = vadd.xlane.f32.xlu0 %v2254
    %v2269 = vpop.xlane.xlu0 %2268
    %2270 = vadd.xlane.f32.xlu0 %v2255
    %v2271 = vpop.xlane.xlu0 %2270
    %v2272 = vmul.f32 %v2265, %v437
    %v2273 = vmul.f32 %v2267, %v437
    %v2274 = vmul.f32 %v2269, %v437
    %v2275 = vmul.f32 %v2271, %v437
    %v2276 = vsub.f32 %v2252, %v2272
    %v2277 = vsub.f32 %v2253, %v2273
    %v2278 = vsub.f32 %v2254, %v2274
    %v2279 = vsub.f32 %v2255, %v2275
    %v2280 = vmul.f32 %v2276, %v2276
    %v2281 = vmul.f32 %v2277, %v2277
    %v2282 = vmul.f32 %v2278, %v2278
    %v2283 = vmul.f32 %v2279, %v2279
    %2284 = vadd.xlane.f32.xlu0 %v2280
    %v2285 = vpop.xlane.xlu0 %2284
    %2286 = vadd.xlane.f32.xlu0 %v2281
    %v2287 = vpop.xlane.xlu0 %2286
    %2288 = vadd.xlane.f32.xlu0 %v2282
    %v2289 = vpop.xlane.xlu0 %2288
    %2290 = vadd.xlane.f32.xlu0 %v2283
    %v2291 = vpop.xlane.xlu0 %2290
    %v2292 = vmul.f32 %v2285, %v437
    %v2293 = vmul.f32 %v2287, %v437
    %v2294 = vmul.f32 %v2289, %v437
    %v2295 = vmul.f32 %v2291, %v437
    %v2296 = vadd.f32 %v2292, 1e-05
    %v2297 = vadd.f32 %v2293, 1e-05
    %v2298 = vadd.f32 %v2294, 1e-05
    %v2299 = vadd.f32 %v2295, 1e-05
    %v2300 = vrsqrt.pop %v2296
    %v2301 = vrsqrt.pop %v2297
    %v2302 = vrsqrt.pop %v2298
    %v2303 = vrsqrt.pop %v2299
    %v2304 = vmul.f32 %v2276, %v2300
    %v2305 = vmul.f32 %v2277, %v2301
    %v2306 = vmul.f32 %v2278, %v2302
    %v2307 = vmul.f32 %v2279, %v2303
    %v2309 = vlaneseq
    %v2310 = vshrl.u32 %v2309, 7
    %v2311 = vsub.s32 0, %v2310
    %v2312 = vrot.slane %v2261, %v2311
    %v2314 = vmul.f32 %v2304, %v2312
    %v2315 = vmul.f32 %v2305, %v2312
    %v2316 = vmul.f32 %v2306, %v2312
    %v2317 = vmul.f32 %v2307, %v2312
    %v2319 = vlaneseq
    %v2320 = vshrl.u32 %v2319, 7
    %v2321 = vsub.s32 0, %v2320
    %v2322 = vrot.slane %v2263, %v2321
    %v2324 = vadd.f32 %v2314, %v2322
    %v2325 = vadd.f32 %v2315, %v2322
    %v2326 = vadd.f32 %v2316, %v2322
    %v2327 = vadd.f32 %v2317, %v2322
    %v2328 = vpack.c.bf16 %v2325, %v2324
    %v2329 = vpack.c.bf16 %v2327, %v2326
    %s2330 = scalar_lea.vmem [#allocation14], 256
    %v2331 = vld [vmem:[%s2330] sm:$0xff]
    %v2332 = vld [vmem:[%s2330 + $0x8] sm:$0xff]
    %v2333 = vld [vmem:[%s2330 + $0x10] sm:$0xff]
    %v2334 = vld [vmem:[%s2330 + $0x18] sm:$0xff]
    %v2335 = vld [vmem:[%s2330 + $0x20] sm:$0xff]
    %v2336 = vld [vmem:[%s2330 + $0x28] sm:$0xff]
    %v2337 = vld [vmem:[%s2330 + $0x30] sm:$0xff]
    %v2338 = vld [vmem:[%s2330 + $0x38] sm:$0xff]
    %v2339 = vld [vmem:[%s2330 + $0x40] sm:$0xff]
    %v2340 = vld [vmem:[%s2330 + $0x48] sm:$0xff]
    %v2341 = vld [vmem:[%s2330 + $0x50] sm:$0xff]
    %v2342 = vld [vmem:[%s2330 + $0x58] sm:$0xff]
    %v2343 = vld [vmem:[%s2330 + $0x60] sm:$0xff]
    %v2344 = vld [vmem:[%s2330 + $0x68] sm:$0xff]
    %v2345 = vld [vmem:[%s2330 + $0x70] sm:$0xff]
    %v2346 = vld [vmem:[%s2330 + $0x78] sm:$0xff]
    %v2347 = vld [vmem:[%s2330 + $0x80] sm:$0xff]
    %v2348 = vld [vmem:[%s2330 + $0x88] sm:$0xff]
    %v2349 = vld [vmem:[%s2330 + $0x90] sm:$0xff]
    %v2350 = vld [vmem:[%s2330 + $0x98] sm:$0xff]
    %v2351 = vld [vmem:[%s2330 + $0xa0] sm:$0xff]
    %v2352 = vld [vmem:[%s2330 + $0xa8] sm:$0xff]
    %v2353 = vld [vmem:[%s2330 + $0xb0] sm:$0xff]
    %v2354 = vld [vmem:[%s2330 + $0xb8] sm:$0xff]
    %v2355 = vld [vmem:[%s2330 + $0xc0] sm:$0xff]
    %v2356 = vld [vmem:[%s2330 + $0xc8] sm:$0xff]
    %v2357 = vld [vmem:[%s2330 + $0xd0] sm:$0xff]
    %v2358 = vld [vmem:[%s2330 + $0xd8] sm:$0xff]
    %v2359 = vld [vmem:[%s2330 + $0xe0] sm:$0xff]
    %v2360 = vld [vmem:[%s2330 + $0xe8] sm:$0xff]
    %v2361 = vld [vmem:[%s2330 + $0xf0] sm:$0xff]
    %v2362 = vld [vmem:[%s2330 + $0xf8] sm:$0xff]
    %v2395 = vunpack.c.l.b16 %v2331
    %v2396 = vunpack.c.h.b16 %v2331
    %v2397 = vunpack.c.l.b16 %v2332
    %v2398 = vunpack.c.h.b16 %v2332
    %v2399 = vunpack.c.l.b16 %v2333
    %v2400 = vunpack.c.h.b16 %v2333
    %v2401 = vunpack.c.l.b16 %v2334
    %v2402 = vunpack.c.h.b16 %v2334
    %v2403 = vunpack.c.l.b16 %v2335
    %v2404 = vunpack.c.h.b16 %v2335
    %v2405 = vunpack.c.l.b16 %v2336
    %v2406 = vunpack.c.h.b16 %v2336
    %v2407 = vunpack.c.l.b16 %v2337
    %v2408 = vunpack.c.h.b16 %v2337
    %v2409 = vunpack.c.l.b16 %v2338
    %v2410 = vunpack.c.h.b16 %v2338
    %v2411 = vunpack.c.l.b16 %v2339
    %v2412 = vunpack.c.h.b16 %v2339
    %v2413 = vunpack.c.l.b16 %v2340
    %v2414 = vunpack.c.h.b16 %v2340
    %v2415 = vunpack.c.l.b16 %v2341
    %v2416 = vunpack.c.h.b16 %v2341
    %v2417 = vunpack.c.l.b16 %v2342
    %v2418 = vunpack.c.h.b16 %v2342
    %v2419 = vunpack.c.l.b16 %v2343
    %v2420 = vunpack.c.h.b16 %v2343
    %v2421 = vunpack.c.l.b16 %v2344
    %v2422 = vunpack.c.h.b16 %v2344
    %v2423 = vunpack.c.l.b16 %v2345
    %v2424 = vunpack.c.h.b16 %v2345
    %v2425 = vunpack.c.l.b16 %v2346
    %v2426 = vunpack.c.h.b16 %v2346
    %v2427 = vunpack.c.l.b16 %v2347
    %v2428 = vunpack.c.h.b16 %v2347
    %v2429 = vunpack.c.l.b16 %v2348
    %v2430 = vunpack.c.h.b16 %v2348
    %v2431 = vunpack.c.l.b16 %v2349
    %v2432 = vunpack.c.h.b16 %v2349
    %v2433 = vunpack.c.l.b16 %v2350
    %v2434 = vunpack.c.h.b16 %v2350
    %v2435 = vunpack.c.l.b16 %v2351
    %v2436 = vunpack.c.h.b16 %v2351
    %v2437 = vunpack.c.l.b16 %v2352
    %v2438 = vunpack.c.h.b16 %v2352
    %v2439 = vunpack.c.l.b16 %v2353
    %v2440 = vunpack.c.h.b16 %v2353
    %v2441 = vunpack.c.l.b16 %v2354
    %v2442 = vunpack.c.h.b16 %v2354
    %v2443 = vunpack.c.l.b16 %v2355
    %v2444 = vunpack.c.h.b16 %v2355
    %v2445 = vunpack.c.l.b16 %v2356
    %v2446 = vunpack.c.h.b16 %v2356
    %v2447 = vunpack.c.l.b16 %v2357
    %v2448 = vunpack.c.h.b16 %v2357
    %v2449 = vunpack.c.l.b16 %v2358
    %v2450 = vunpack.c.h.b16 %v2358
    %v2451 = vunpack.c.l.b16 %v2359
    %v2452 = vunpack.c.h.b16 %v2359
    %v2453 = vunpack.c.l.b16 %v2360
    %v2454 = vunpack.c.h.b16 %v2360
    %v2455 = vunpack.c.l.b16 %v2361
    %v2456 = vunpack.c.h.b16 %v2361
    %v2457 = vunpack.c.l.b16 %v2362
    %v2458 = vunpack.c.h.b16 %v2362
    %v2459 = vpack.c.b16 %v2399, %v2395
    %v2460 = vpack.c.b16 %v2400, %v2396
    %v2461 = vpack.c.b16 %v2401, %v2397
    %v2462 = vpack.c.b16 %v2402, %v2398
    %v2463 = vpack.c.b16 %v2407, %v2403
    %v2464 = vpack.c.b16 %v2408, %v2404
    %v2465 = vpack.c.b16 %v2409, %v2405
    %v2466 = vpack.c.b16 %v2410, %v2406
    %v2467 = vpack.c.b16 %v2415, %v2411
    %v2468 = vpack.c.b16 %v2416, %v2412
    %v2469 = vpack.c.b16 %v2417, %v2413
    %v2470 = vpack.c.b16 %v2418, %v2414
    %v2471 = vpack.c.b16 %v2423, %v2419
    %v2472 = vpack.c.b16 %v2424, %v2420
    %v2473 = vpack.c.b16 %v2425, %v2421
    %v2474 = vpack.c.b16 %v2426, %v2422
    %v2475 = vpack.c.b16 %v2431, %v2427
    %v2476 = vpack.c.b16 %v2432, %v2428
    %v2477 = vpack.c.b16 %v2433, %v2429
    %v2478 = vpack.c.b16 %v2434, %v2430
    %v2479 = vpack.c.b16 %v2439, %v2435
    %v2480 = vpack.c.b16 %v2440, %v2436
    %v2481 = vpack.c.b16 %v2441, %v2437
    %v2482 = vpack.c.b16 %v2442, %v2438
    %v2483 = vpack.c.b16 %v2447, %v2443
    %v2484 = vpack.c.b16 %v2448, %v2444
    %v2485 = vpack.c.b16 %v2449, %v2445
    %v2486 = vpack.c.b16 %v2450, %v2446
    %v2487 = vpack.c.b16 %v2455, %v2451
    %v2488 = vpack.c.b16 %v2456, %v2452
    %v2489 = vpack.c.b16 %v2457, %v2453
    %v2490 = vpack.c.b16 %v2458, %v2454
    %2523 = vmatprep.subr.bf16.mxu0 %v2460
    %2524 = vmatpush1.bf16.msra.mxu0 %v2459
    %2525 = vmatprep.subr.bf16.mxu0 %v2464
    %2526 = vmatpush1.bf16.msra.mxu0 %v2463
    %2527 = vmatprep.subr.bf16.mxu0 %v2468
    %2528 = vmatpush1.bf16.msra.mxu0 %v2467
    %2529 = vmatprep.subr.bf16.mxu0 %v2472
    %2530 = vmatpush1.bf16.msra.mxu0 %v2471
    %2531 = vmatprep.subr.bf16.mxu0 %v2476
    %2532 = vmatpush1.bf16.msra.mxu0 %v2475
    %2533 = vmatprep.subr.bf16.mxu0 %v2480
    %2534 = vmatpush1.bf16.msra.mxu0 %v2479
    %2535 = vmatprep.subr.bf16.mxu0 %v2484
    %2536 = vmatpush1.bf16.msra.mxu0 %v2483
    %2537 = vmatprep.subr.bf16.mxu0 %v2488
    %2538 = vmatpush1.bf16.msra.mxu0 %v2487
    %2539 = vmatprep.subr.bf16.mxu0 0
    %2540 = vmatpush1.bf16.msra.mxu0 0
    %2541 = vmatprep.subr.bf16.mxu0 0
    %2542 = vmatpush1.bf16.msra.mxu0 0
    %2543 = vmatprep.subr.bf16.mxu0 0
    %2544 = vmatpush1.bf16.msra.mxu0 0
    %2545 = vmatprep.subr.bf16.mxu0 0
    %2546 = vmatpush1.bf16.msra.mxu0 0
    %2547 = vmatprep.subr.bf16.mxu0 0
    %2548 = vmatpush1.bf16.msra.mxu0 0
    %2549 = vmatprep.subr.bf16.mxu0 0
    %2550 = vmatpush1.bf16.msra.mxu0 0
    %2551 = vmatprep.subr.bf16.mxu0 0
    %2552 = vmatpush1.bf16.msra.mxu0 0
    %2553 = vmatprep.subr.bf16.mxu0 0
    %2554 = vmatpush1.bf16.msra.mxu0 0
    %2555 = vmatprep.mubr.bf16.mxu0 0
    %2556 = vmatmul.mubr.bf16.gmra.mrb[0].mxu0 %v2328
    %v2557 = vpop.f32.mrb[0].mxu0
    %v2558 = vadd.f32 0.0, %v2557
    %v2559 = vpop.f32.mrb[0].mxu0
    %v2560 = vadd.f32 0.0, %v2559
    %v2561 = vpop.f32.mrb[0].mxu0
    %v2562 = vadd.f32 0.0, %v2561
    %v2563 = vpop.f32.mrb[0].mxu0
    %v2564 = vadd.f32 0.0, %v2563
    %2565 = vmatprep.mubr.bf16.mxu0 0
    %2566 = vmatmul.mubr.bf16.gmra.mrb[0].mxu0 %v2329
    %v2567 = vpop.f32.mrb[0].mxu0
    %v2568 = vadd.f32 0.0, %v2567
    %v2569 = vpop.f32.mrb[0].mxu0
    %v2570 = vadd.f32 0.0, %v2569
    %v2571 = vpop.f32.mrb[0].mxu0
    %v2572 = vadd.f32 0.0, %v2571
    %v2573 = vpop.f32.mrb[0].mxu0
    %v2574 = vadd.f32 0.0, %v2573
    %2575 = vdwg.mxu0
    %2576 = vmatprep.subr.bf16.mxu0 %v2462
    %2577 = vmatpush1.bf16.msra.mxu0 %v2461
    %2578 = vmatprep.subr.bf16.mxu0 %v2466
    %2579 = vmatpush1.bf16.msra.mxu0 %v2465
    %2580 = vmatprep.subr.bf16.mxu0 %v2470
    %2581 = vmatpush1.bf16.msra.mxu0 %v2469
    %2582 = vmatprep.subr.bf16.mxu0 %v2474
    %2583 = vmatpush1.bf16.msra.mxu0 %v2473
    %2584 = vmatprep.subr.bf16.mxu0 %v2478
    %2585 = vmatpush1.bf16.msra.mxu0 %v2477
    %2586 = vmatprep.subr.bf16.mxu0 %v2482
    %2587 = vmatpush1.bf16.msra.mxu0 %v2481
    %2588 = vmatprep.subr.bf16.mxu0 %v2486
    %2589 = vmatpush1.bf16.msra.mxu0 %v2485
    %2590 = vmatprep.subr.bf16.mxu0 %v2490
    %2591 = vmatpush1.bf16.msra.mxu0 %v2489
    %2592 = vmatprep.subr.bf16.mxu0 0
    %2593 = vmatpush1.bf16.msra.mxu0 0
    %2594 = vmatprep.subr.bf16.mxu0 0
    %2595 = vmatpush1.bf16.msra.mxu0 0
    %2596 = vmatprep.subr.bf16.mxu0 0
    %2597 = vmatpush1.bf16.msra.mxu0 0
    %2598 = vmatprep.subr.bf16.mxu0 0
    %2599 = vmatpush1.bf16.msra.mxu0 0
    %2600 = vmatprep.subr.bf16.mxu0 0
    %2601 = vmatpush1.bf16.msra.mxu0 0
    %2602 = vmatprep.subr.bf16.mxu0 0
    %2603 = vmatpush1.bf16.msra.mxu0 0
    %2604 = vmatprep.subr.bf16.mxu0 0
    %2605 = vmatpush1.bf16.msra.mxu0 0
    %2606 = vmatprep.subr.bf16.mxu0 0
    %2607 = vmatpush1.bf16.msra.mxu0 0
    %2608 = vmatprep.mubr.bf16.mxu0 0
    %2609 = vmatmul.mubr.bf16.gmra.mrb[0].mxu0 %v2328
    %v2610 = vpop.f32.mrb[0].mxu0
    %v2611 = vadd.f32 0.0, %v2610
    %v2612 = vpop.f32.mrb[0].mxu0
    %v2613 = vadd.f32 0.0, %v2612
    %v2614 = vpop.f32.mrb[0].mxu0
    %v2615 = vadd.f32 0.0, %v2614
    %v2616 = vpop.f32.mrb[0].mxu0
    %v2617 = vadd.f32 0.0, %v2616
    %2618 = vmatprep.mubr.bf16.mxu0 0
    %2619 = vmatmul.mubr.bf16.gmra.mrb[0].mxu0 %v2329
    %v2620 = vpop.f32.mrb[0].mxu0
    %v2621 = vadd.f32 0.0, %v2620
    %v2622 = vpop.f32.mrb[0].mxu0
    %v2623 = vadd.f32 0.0, %v2622
    %v2624 = vpop.f32.mrb[0].mxu0
    %v2625 = vadd.f32 0.0, %v2624
    %v2626 = vpop.f32.mrb[0].mxu0
    %v2627 = vadd.f32 0.0, %v2626
    %2628 = vdwg.mxu0
    %v2629 = vpack.c.bf16 %v2562, %v2558
    %v2630 = vpack.c.bf16 %v2572, %v2568
    %v2631 = vpack.c.bf16 %v2564, %v2560
    %v2632 = vpack.c.bf16 %v2574, %v2570
    %v2634 = vsel %vm798, %v2629, 0
    %v2637 = vsel %vm798, %v2630, 0
    %v2640 = vsel %vm798, %v2631, 0
    %v2643 = vsel %vm798, %v2632, 0
    %2645 = vmatprep.subr.bf16.mxu0 0
    %2646 = vmatpush1.bf16.xpose.msra.mxu0 %v2640
    %2647 = vmatprep.subr.bf16.mxu0 0
    %2648 = vmatpush1.bf16.xpose.msra.mxu0 %v2643
    %2649 = vmatprep.subr.bf16.mxu0 0
    %2650 = vmatpush1.bf16.xpose.msra.mxu0 0
    %2651 = vmatprep.subr.bf16.mxu0 0
    %2652 = vmatpush1.bf16.xpose.msra.mxu0 0
    %2653 = vmatprep.subr.bf16.mxu0 0
    %2654 = vmatpush1.bf16.xpose.msra.mxu0 0
    %2655 = vmatprep.subr.bf16.mxu0 0
    %2656 = vmatpush1.bf16.xpose.msra.mxu0 0
    %2657 = vmatprep.subr.bf16.mxu0 0
    %2658 = vmatpush1.bf16.xpose.msra.mxu0 0
    %2659 = vmatprep.subr.bf16.mxu0 0
    %2660 = vmatpush1.bf16.xpose.msra.mxu0 0
    %2661 = vmatprep.subr.bf16.mxu0 0
    %2662 = vmatpush1.bf16.xpose.msra.mxu0 0
    %2663 = vmatprep.subr.bf16.mxu0 0
    %2664 = vmatpush1.bf16.xpose.msra.mxu0 0
    %2665 = vmatprep.subr.bf16.mxu0 0
    %2666 = vmatpush1.bf16.xpose.msra.mxu0 0
    %2667 = vmatprep.subr.bf16.mxu0 0
    %2668 = vmatpush1.bf16.xpose.msra.mxu0 0
    %2669 = vmatprep.subr.bf16.mxu0 0
    %2670 = vmatpush1.bf16.xpose.msra.mxu0 0
    %2671 = vmatprep.subr.bf16.mxu0 0
    %2672 = vmatpush1.bf16.xpose.msra.mxu0 0
    %2673 = vmatprep.subr.bf16.mxu0 0
    %2674 = vmatpush1.bf16.xpose.msra.mxu0 0
    %2675 = vmatprep.subr.bf16.mxu0 0
    %2676 = vmatpush1.bf16.xpose.msra.mxu0 0
    %2677 = vmatprep.mubr.bf16.mxu0 0
    %2678 = vmatmul.mubr.bf16.gmra.mrb[0].mxu0 %v2634
    %v2679 = vpop.f32.mrb[0].mxu0
    %v2680 = vadd.f32 0.0, %v2679
    %v2681 = vpop.f32.mrb[0].mxu0
    %v2682 = vpop.f32.mrb[0].mxu0
    %v2683 = vadd.f32 0.0, %v2682
    %v2684 = vpop.f32.mrb[0].mxu0
    %2685 = vmatprep.mubr.bf16.mxu0 0
    %2686 = vmatmul.mubr.bf16.gmra.mrb[0].mxu0 %v2637
    %v2687 = vpop.f32.mrb[0].mxu0
    %v2688 = vadd.f32 0.0, %v2687
    %v2689 = vpop.f32.mrb[0].mxu0
    %v2690 = vpop.f32.mrb[0].mxu0
    %v2691 = vadd.f32 0.0, %v2690
    %v2692 = vpop.f32.mrb[0].mxu0
    %2693 = vdwg.mxu0
    %v2694 = vld [vmem:[#allocation10] sm:$0xff]
    %v2695 = vld [vmem:[#allocation10 + $0x8] sm:$0xff]
    %v2696 = vld [vmem:[#allocation10 + $0x10] sm:$0xff]
    %v2697 = vld [vmem:[#allocation10 + $0x18] sm:$0xff]
    %v2698 = vmul.f32 %v2680, %v2694
    %v2699 = vmul.f32 %v2683, %v2695
    %v2700 = vmul.f32 %v2688, %v2696
    %v2701 = vmul.f32 %v2691, %v2697
    %v2702 = vpack.c.bf16 %v2699, %v2698
    %v2703 = vpack.c.bf16 %v2701, %v2700
    %v2704 = vpack.c.bf16 %v2615, %v2611
    %v2705 = vpack.c.bf16 %v2625, %v2621
    %v2707 = vsel %vm798, %v2702, 0
    %v2710 = vsel %vm798, %v2703, 0
    %2712 = vmatprep.subr.bf16.mxu0 0
    %2713 = vmatpush1.bf16.msra.mxu0 %v2704
    %2714 = vmatprep.subr.bf16.mxu0 0
    %2715 = vmatpush1.bf16.msra.mxu0 %v2705
    %2716 = vmatprep.subr.bf16.mxu0 0
    %2717 = vmatpush1.bf16.msra.mxu0 0
    %2718 = vmatprep.subr.bf16.mxu0 0
    %2719 = vmatpush1.bf16.msra.mxu0 0
    %2720 = vmatprep.subr.bf16.mxu0 0
    %2721 = vmatpush1.bf16.msra.mxu0 0
    %2722 = vmatprep.subr.bf16.mxu0 0
    %2723 = vmatpush1.bf16.msra.mxu0 0
    %2724 = vmatprep.subr.bf16.mxu0 0
    %2725 = vmatpush1.bf16.msra.mxu0 0
    %2726 = vmatprep.subr.bf16.mxu0 0
    %2727 = vmatpush1.bf16.msra.mxu0 0
    %2728 = vmatprep.subr.bf16.mxu0 0
    %2729 = vmatpush1.bf16.msra.mxu0 0
    %2730 = vmatprep.subr.bf16.mxu0 0
    %2731 = vmatpush1.bf16.msra.mxu0 0
    %2732 = vmatprep.subr.bf16.mxu0 0
    %2733 = vmatpush1.bf16.msra.mxu0 0
    %2734 = vmatprep.subr.bf16.mxu0 0
    %2735 = vmatpush1.bf16.msra.mxu0 0
    %2736 = vmatprep.subr.bf16.mxu0 0
    %2737 = vmatpush1.bf16.msra.mxu0 0
    %2738 = vmatprep.subr.bf16.mxu0 0
    %2739 = vmatpush1.bf16.msra.mxu0 0
    %2740 = vmatprep.subr.bf16.mxu0 0
    %2741 = vmatpush1.bf16.msra.mxu0 0
    %2742 = vmatprep.subr.bf16.mxu0 0
    %2743 = vmatpush1.bf16.msra.mxu0 0
    %2744 = vmatprep.mubr.bf16.mxu0 0
    %2745 = vmatmul.mubr.bf16.gmra.mrb[0].mxu0 %v2707
    %v2746 = vpop.f32.mrb[0].mxu0
    %v2747 = vadd.f32 0.0, %v2746
    %v2748 = vpop.f32.mrb[0].mxu0
    %v2749 = vpop.f32.mrb[0].mxu0
    %v2750 = vadd.f32 0.0, %v2749
    %v2751 = vpop.f32.mrb[0].mxu0
    %2752 = vmatprep.mubr.bf16.mxu0 0
    %2753 = vmatmul.mubr.bf16.gmra.mrb[0].mxu0 %v2710
    %v2754 = vpop.f32.mrb[0].mxu0
    %v2755 = vadd.f32 0.0, %v2754
    %v2756 = vpop.f32.mrb[0].mxu0
    %v2757 = vpop.f32.mrb[0].mxu0
    %v2758 = vadd.f32 0.0, %v2757
    %v2759 = vpop.f32.mrb[0].mxu0
    %2760 = vdwg.mxu0
    %v2761 = vsel %vm798, %v2747, 0.0
    %2762 = vadd.xlane.f32.xlu0 %v2761
    %v2763 = vpop.xlane.xlu0 %2762
    %v2764 = vsel %vm798, %v2750, 0.0
    %2765 = vadd.xlane.f32.xlu0 %v2764
    %v2766 = vpop.xlane.xlu0 %2765
    %v2767 = vsel %vm798, %v2755, 0.0
    %2768 = vadd.xlane.f32.xlu0 %v2767
    %v2769 = vpop.xlane.xlu0 %2768
    %v2770 = vsel %vm798, %v2758, 0.0
    %2771 = vadd.xlane.f32.xlu0 %v2770
    %v2772 = vpop.xlane.xlu0 %2771
    %v2773 = vmul.f32 %v2763, %v939
    %v2774 = vmul.f32 %v2766, %v939
    %v2775 = vmul.f32 %v2769, %v939
    %v2776 = vmul.f32 %v2772, %v939
    %v2777 = vsub.f32 %v2747, %v2773
    %v2778 = vsub.f32 %v2750, %v2774
    %v2779 = vsub.f32 %v2755, %v2775
    %v2780 = vsub.f32 %v2758, %v2776
    %v2781 = vmul.f32 %v2777, %v2777
    %v2782 = vmul.f32 %v2778, %v2778
    %v2783 = vmul.f32 %v2779, %v2779
    %v2784 = vmul.f32 %v2780, %v2780
    %v2785 = vsel %vm798, %v2781, 0.0
    %2786 = vadd.xlane.f32.xlu0 %v2785
    %v2787 = vpop.xlane.xlu0 %2786
    %v2788 = vsel %vm798, %v2782, 0.0
    %2789 = vadd.xlane.f32.xlu0 %v2788
    %v2790 = vpop.xlane.xlu0 %2789
    %v2791 = vsel %vm798, %v2783, 0.0
    %2792 = vadd.xlane.f32.xlu0 %v2791
    %v2793 = vpop.xlane.xlu0 %2792
    %v2794 = vsel %vm798, %v2784, 0.0
    %2795 = vadd.xlane.f32.xlu0 %v2794
    %v2796 = vpop.xlane.xlu0 %2795
    %v2797 = vmul.f32 %v2787, %v939
    %v2798 = vmul.f32 %v2790, %v939
    %v2799 = vmul.f32 %v2793, %v939
    %v2800 = vmul.f32 %v2796, %v939
    %v2801 = vadd.f32 %v2797, 1e-05
    %v2802 = vadd.f32 %v2798, 1e-05
    %v2803 = vadd.f32 %v2799, 1e-05
    %v2804 = vadd.f32 %v2800, 1e-05
    %v2805 = vrsqrt.pop %v2801
    %v2806 = vrsqrt.pop %v2802
    %v2807 = vrsqrt.pop %v2803
    %v2808 = vrsqrt.pop %v2804
    %v2809 = vmul.f32 %v2777, %v2805
    %v2810 = vmul.f32 %v2778, %v2806
    %v2811 = vmul.f32 %v2779, %v2807
    %v2812 = vmul.f32 %v2780, %v2808
    %2815 = vrot.lane.b32.xlu0 %v2629, 96
    %v2816 = vpop.permute.xlu0 %2815
    %2817 = vrot.lane.b32.xlu0 %v2630, 96
    %v2818 = vpop.permute.xlu0 %2817
    %2821 = vrot.lane.b32.xlu0 %v2631, 96
    %v2822 = vpop.permute.xlu0 %2821
    %2823 = vrot.lane.b32.xlu0 %v2632, 96
    %v2824 = vpop.permute.xlu0 %2823
    %v2826 = vsel %vm798, %v2816, 0
    %v2829 = vsel %vm798, %v2818, 0
    %v2832 = vsel %vm798, %v2822, 0
    %v2835 = vsel %vm798, %v2824, 0
    %2837 = vmatprep.subr.bf16.mxu0 0
    %2838 = vmatpush1.bf16.xpose.msra.mxu0 %v2832
    %2839 = vmatprep.subr.bf16.mxu0 0
    %2840 = vmatpush1.bf16.xpose.msra.mxu0 %v2835
    %2841 = vmatprep.subr.bf16.mxu0 0
    %2842 = vmatpush1.bf16.xpose.msra.mxu0 0
    %2843 = vmatprep.subr.bf16.mxu0 0
    %2844 = vmatpush1.bf16.xpose.msra.mxu0 0
    %2845 = vmatprep.subr.bf16.mxu0 0
    %2846 = vmatpush1.bf16.xpose.msra.mxu0 0
    %2847 = vmatprep.subr.bf16.mxu0 0
    %2848 = vmatpush1.bf16.xpose.msra.mxu0 0
    %2849 = vmatprep.subr.bf16.mxu0 0
    %2850 = vmatpush1.bf16.xpose.msra.mxu0 0
    %2851 = vmatprep.subr.bf16.mxu0 0
    %2852 = vmatpush1.bf16.xpose.msra.mxu0 0
    %2853 = vmatprep.subr.bf16.mxu0 0
    %2854 = vmatpush1.bf16.xpose.msra.mxu0 0
    %2855 = vmatprep.subr.bf16.mxu0 0
    %2856 = vmatpush1.bf16.xpose.msra.mxu0 0
    %2857 = vmatprep.subr.bf16.mxu0 0
    %2858 = vmatpush1.bf16.xpose.msra.mxu0 0
    %2859 = vmatprep.subr.bf16.mxu0 0
    %2860 = vmatpush1.bf16.xpose.msra.mxu0 0
    %2861 = vmatprep.subr.bf16.mxu0 0
    %2862 = vmatpush1.bf16.xpose.msra.mxu0 0
    %2863 = vmatprep.subr.bf16.mxu0 0
    %2864 = vmatpush1.bf16.xpose.msra.mxu0 0
    %2865 = vmatprep.subr.bf16.mxu0 0
    %2866 = vmatpush1.bf16.xpose.msra.mxu0 0
    %2867 = vmatprep.subr.bf16.mxu0 0
    %2868 = vmatpush1.bf16.xpose.msra.mxu0 0
    %2869 = vmatprep.mubr.bf16.mxu0 0
    %2870 = vmatmul.mubr.bf16.gmra.mrb[0].mxu0 %v2826
    %v2871 = vpop.f32.mrb[0].mxu0
    %v2872 = vadd.f32 0.0, %v2871
    %v2873 = vpop.f32.mrb[0].mxu0
    %v2874 = vpop.f32.mrb[0].mxu0
    %v2875 = vadd.f32 0.0, %v2874
    %v2876 = vpop.f32.mrb[0].mxu0
    %2877 = vmatprep.mubr.bf16.mxu0 0
    %2878 = vmatmul.mubr.bf16.gmra.mrb[0].mxu0 %v2829
    %v2879 = vpop.f32.mrb[0].mxu0
    %v2880 = vadd.f32 0.0, %v2879
    %v2881 = vpop.f32.mrb[0].mxu0
    %v2882 = vpop.f32.mrb[0].mxu0
    %v2883 = vadd.f32 0.0, %v2882
    %v2884 = vpop.f32.mrb[0].mxu0
    %2885 = vdwg.mxu0
    %v2886 = vld [vmem:[%s1053] sm:$0xff]
    %v2887 = vld [vmem:[%s1053 + $0x8] sm:$0xff]
    %v2888 = vld [vmem:[%s1053 + $0x10] sm:$0xff]
    %v2889 = vld [vmem:[%s1053 + $0x18] sm:$0xff]
    %v2890 = vmul.f32 %v2872, %v2886
    %v2891 = vmul.f32 %v2875, %v2887
    %v2892 = vmul.f32 %v2880, %v2888
    %v2893 = vmul.f32 %v2883, %v2889
    %v2894 = vpack.c.bf16 %v2891, %v2890
    %v2895 = vpack.c.bf16 %v2893, %v2892
    %2898 = vrot.lane.b32.xlu0 %v2704, 96
    %v2899 = vpop.permute.xlu0 %2898
    %2900 = vrot.lane.b32.xlu0 %v2705, 96
    %v2901 = vpop.permute.xlu0 %2900
    %v2905 = vsel %vm798, %v2894, 0
    %v2908 = vsel %vm798, %v2895, 0
    %2910 = vmatprep.subr.bf16.mxu0 0
    %2911 = vmatpush1.bf16.msra.mxu0 %v2899
    %2912 = vmatprep.subr.bf16.mxu0 0
    %2913 = vmatpush1.bf16.msra.mxu0 %v2901
    %2914 = vmatprep.subr.bf16.mxu0 0
    %2915 = vmatpush1.bf16.msra.mxu0 0
    %2916 = vmatprep.subr.bf16.mxu0 0
    %2917 = vmatpush1.bf16.msra.mxu0 0
    %2918 = vmatprep.subr.bf16.mxu0 0
    %2919 = vmatpush1.bf16.msra.mxu0 0
    %2920 = vmatprep.subr.bf16.mxu0 0
    %2921 = vmatpush1.bf16.msra.mxu0 0
    %2922 = vmatprep.subr.bf16.mxu0 0
    %2923 = vmatpush1.bf16.msra.mxu0 0
    %2924 = vmatprep.subr.bf16.mxu0 0
    %2925 = vmatpush1.bf16.msra.mxu0 0
    %2926 = vmatprep.subr.bf16.mxu0 0
    %2927 = vmatpush1.bf16.msra.mxu0 0
    %2928 = vmatprep.subr.bf16.mxu0 0
    %2929 = vmatpush1.bf16.msra.mxu0 0
    %2930 = vmatprep.subr.bf16.mxu0 0
    %2931 = vmatpush1.bf16.msra.mxu0 0
    %2932 = vmatprep.subr.bf16.mxu0 0
    %2933 = vmatpush1.bf16.msra.mxu0 0
    %2934 = vmatprep.subr.bf16.mxu0 0
    %2935 = vmatpush1.bf16.msra.mxu0 0
    %2936 = vmatprep.subr.bf16.mxu0 0
    %2937 = vmatpush1.bf16.msra.mxu0 0
    %2938 = vmatprep.subr.bf16.mxu0 0
    %2939 = vmatpush1.bf16.msra.mxu0 0
    %2940 = vmatprep.subr.bf16.mxu0 0
    %2941 = vmatpush1.bf16.msra.mxu0 0
    %2942 = vmatprep.mubr.bf16.mxu0 0
    %2943 = vmatmul.mubr.bf16.gmra.mrb[0].mxu0 %v2905
    %v2944 = vpop.f32.mrb[0].mxu0
    %v2945 = vadd.f32 0.0, %v2944
    %v2946 = vpop.f32.mrb[0].mxu0
    %v2947 = vpop.f32.mrb[0].mxu0
    %v2948 = vadd.f32 0.0, %v2947
    %v2949 = vpop.f32.mrb[0].mxu0
    %2950 = vmatprep.mubr.bf16.mxu0 0
    %2951 = vmatmul.mubr.bf16.gmra.mrb[0].mxu0 %v2908
    %v2952 = vpop.f32.mrb[0].mxu0
    %v2953 = vadd.f32 0.0, %v2952
    %v2954 = vpop.f32.mrb[0].mxu0
    %v2955 = vpop.f32.mrb[0].mxu0
    %v2956 = vadd.f32 0.0, %v2955
    %v2957 = vpop.f32.mrb[0].mxu0
    %2958 = vdwg.mxu0
    %v2959 = vsel %vm798, %v2945, 0.0
    %2960 = vadd.xlane.f32.xlu0 %v2959
    %v2961 = vpop.xlane.xlu0 %2960
    %v2962 = vsel %vm798, %v2948, 0.0
    %2963 = vadd.xlane.f32.xlu0 %v2962
    %v2964 = vpop.xlane.xlu0 %2963
    %v2965 = vsel %vm798, %v2953, 0.0
    %2966 = vadd.xlane.f32.xlu0 %v2965
    %v2967 = vpop.xlane.xlu0 %2966
    %v2968 = vsel %vm798, %v2956, 0.0
    %2969 = vadd.xlane.f32.xlu0 %v2968
    %v2970 = vpop.xlane.xlu0 %2969
    %v2971 = vmul.f32 %v2961, %v939
    %v2972 = vmul.f32 %v2964, %v939
    %v2973 = vmul.f32 %v2967, %v939
    %v2974 = vmul.f32 %v2970, %v939
    %v2975 = vsub.f32 %v2945, %v2971
    %v2976 = vsub.f32 %v2948, %v2972
    %v2977 = vsub.f32 %v2953, %v2973
    %v2978 = vsub.f32 %v2956, %v2974
    %v2979 = vmul.f32 %v2975, %v2975
    %v2980 = vmul.f32 %v2976, %v2976
    %v2981 = vmul.f32 %v2977, %v2977
    %v2982 = vmul.f32 %v2978, %v2978
    %v2983 = vsel %vm798, %v2979, 0.0
    %2984 = vadd.xlane.f32.xlu0 %v2983
    %v2985 = vpop.xlane.xlu0 %2984
    %v2986 = vsel %vm798, %v2980, 0.0
    %2987 = vadd.xlane.f32.xlu0 %v2986
    %v2988 = vpop.xlane.xlu0 %2987
    %v2989 = vsel %vm798, %v2981, 0.0
    %2990 = vadd.xlane.f32.xlu0 %v2989
    %v2991 = vpop.xlane.xlu0 %2990
    %v2992 = vsel %vm798, %v2982, 0.0
    %2993 = vadd.xlane.f32.xlu0 %v2992
    %v2994 = vpop.xlane.xlu0 %2993
    %v2995 = vmul.f32 %v2985, %v939
    %v2996 = vmul.f32 %v2988, %v939
    %v2997 = vmul.f32 %v2991, %v939
    %v2998 = vmul.f32 %v2994, %v939
    %v2999 = vadd.f32 %v2995, 1e-05
    %v3000 = vadd.f32 %v2996, 1e-05
    %v3001 = vadd.f32 %v2997, 1e-05
    %v3002 = vadd.f32 %v2998, 1e-05
    %v3003 = vrsqrt.pop %v2999
    %v3004 = vrsqrt.pop %v3000
    %v3005 = vrsqrt.pop %v3001
    %v3006 = vrsqrt.pop %v3002
    %v3007 = vmul.f32 %v2975, %v3003
    %v3008 = vmul.f32 %v2976, %v3004
    %v3009 = vmul.f32 %v2977, %v3005
    %v3010 = vmul.f32 %v2978, %v3006
    %3011 = vrot.lane.b32.xlu0 %v2629, 64
    %v3012 = vpop.permute.xlu0 %3011
    %3013 = vrot.lane.b32.xlu0 %v2630, 64
    %v3014 = vpop.permute.xlu0 %3013
    %3015 = vrot.lane.b32.xlu0 %v2631, 64
    %v3016 = vpop.permute.xlu0 %3015
    %3017 = vrot.lane.b32.xlu0 %v2632, 64
    %v3018 = vpop.permute.xlu0 %3017
    %v3020 = vsel %vm798, %v3012, 0
    %v3023 = vsel %vm798, %v3014, 0
    %v3026 = vsel %vm798, %v3016, 0
    %v3029 = vsel %vm798, %v3018, 0
    %3031 = vmatprep.subr.bf16.mxu0 0
    %3032 = vmatpush1.bf16.xpose.msra.mxu0 %v3026
    %3033 = vmatprep.subr.bf16.mxu0 0
    %3034 = vmatpush1.bf16.xpose.msra.mxu0 %v3029
    %3035 = vmatprep.subr.bf16.mxu0 0
    %3036 = vmatpush1.bf16.xpose.msra.mxu0 0
    %3037 = vmatprep.subr.bf16.mxu0 0
    %3038 = vmatpush1.bf16.xpose.msra.mxu0 0
    %3039 = vmatprep.subr.bf16.mxu0 0
    %3040 = vmatpush1.bf16.xpose.msra.mxu0 0
    %3041 = vmatprep.subr.bf16.mxu0 0
    %3042 = vmatpush1.bf16.xpose.msra.mxu0 0
    %3043 = vmatprep.subr.bf16.mxu0 0
    %3044 = vmatpush1.bf16.xpose.msra.mxu0 0
    %3045 = vmatprep.subr.bf16.mxu0 0
    %3046 = vmatpush1.bf16.xpose.msra.mxu0 0
    %3047 = vmatprep.subr.bf16.mxu0 0
    %3048 = vmatpush1.bf16.xpose.msra.mxu0 0
    %3049 = vmatprep.subr.bf16.mxu0 0
    %3050 = vmatpush1.bf16.xpose.msra.mxu0 0
    %3051 = vmatprep.subr.bf16.mxu0 0
    %3052 = vmatpush1.bf16.xpose.msra.mxu0 0
    %3053 = vmatprep.subr.bf16.mxu0 0
    %3054 = vmatpush1.bf16.xpose.msra.mxu0 0
    %3055 = vmatprep.subr.bf16.mxu0 0
    %3056 = vmatpush1.bf16.xpose.msra.mxu0 0
    %3057 = vmatprep.subr.bf16.mxu0 0
    %3058 = vmatpush1.bf16.xpose.msra.mxu0 0
    %3059 = vmatprep.subr.bf16.mxu0 0
    %3060 = vmatpush1.bf16.xpose.msra.mxu0 0
    %3061 = vmatprep.subr.bf16.mxu0 0
    %3062 = vmatpush1.bf16.xpose.msra.mxu0 0
    %3063 = vmatprep.mubr.bf16.mxu0 0
    %3064 = vmatmul.mubr.bf16.gmra.mrb[0].mxu0 %v3020
    %v3065 = vpop.f32.mrb[0].mxu0
    %v3066 = vadd.f32 0.0, %v3065
    %v3067 = vpop.f32.mrb[0].mxu0
    %v3068 = vpop.f32.mrb[0].mxu0
    %v3069 = vadd.f32 0.0, %v3068
    %v3070 = vpop.f32.mrb[0].mxu0
    %3071 = vmatprep.mubr.bf16.mxu0 0
    %3072 = vmatmul.mubr.bf16.gmra.mrb[0].mxu0 %v3023
    %v3073 = vpop.f32.mrb[0].mxu0
    %v3074 = vadd.f32 0.0, %v3073
    %v3075 = vpop.f32.mrb[0].mxu0
    %v3076 = vpop.f32.mrb[0].mxu0
    %v3077 = vadd.f32 0.0, %v3076
    %v3078 = vpop.f32.mrb[0].mxu0
    %3079 = vdwg.mxu0
    %v3080 = vld [vmem:[%s1248] sm:$0xff]
    %v3081 = vld [vmem:[%s1248 + $0x8] sm:$0xff]
    %v3082 = vld [vmem:[%s1248 + $0x10] sm:$0xff]
    %v3083 = vld [vmem:[%s1248 + $0x18] sm:$0xff]
    %v3084 = vmul.f32 %v3066, %v3080
    %v3085 = vmul.f32 %v3069, %v3081
    %v3086 = vmul.f32 %v3074, %v3082
    %v3087 = vmul.f32 %v3077, %v3083
    %v3088 = vpack.c.bf16 %v3085, %v3084
    %v3089 = vpack.c.bf16 %v3087, %v3086
    %3090 = vrot.lane.b32.xlu0 %v2704, 64
    %v3091 = vpop.permute.xlu0 %3090
    %3092 = vrot.lane.b32.xlu0 %v2705, 64
    %v3093 = vpop.permute.xlu0 %3092
    %v3097 = vsel %vm798, %v3088, 0
    %v3100 = vsel %vm798, %v3089, 0
    %3102 = vmatprep.subr.bf16.mxu0 0
    %3103 = vmatpush1.bf16.msra.mxu0 %v3091
    %3104 = vmatprep.subr.bf16.mxu0 0
    %3105 = vmatpush1.bf16.msra.mxu0 %v3093
    %3106 = vmatprep.subr.bf16.mxu0 0
    %3107 = vmatpush1.bf16.msra.mxu0 0
    %3108 = vmatprep.subr.bf16.mxu0 0
    %3109 = vmatpush1.bf16.msra.mxu0 0
    %3110 = vmatprep.subr.bf16.mxu0 0
    %3111 = vmatpush1.bf16.msra.mxu0 0
    %3112 = vmatprep.subr.bf16.mxu0 0
    %3113 = vmatpush1.bf16.msra.mxu0 0
    %3114 = vmatprep.subr.bf16.mxu0 0
    %3115 = vmatpush1.bf16.msra.mxu0 0
    %3116 = vmatprep.subr.bf16.mxu0 0
    %3117 = vmatpush1.bf16.msra.mxu0 0
    %3118 = vmatprep.subr.bf16.mxu0 0
    %3119 = vmatpush1.bf16.msra.mxu0 0
    %3120 = vmatprep.subr.bf16.mxu0 0
    %3121 = vmatpush1.bf16.msra.mxu0 0
    %3122 = vmatprep.subr.bf16.mxu0 0
    %3123 = vmatpush1.bf16.msra.mxu0 0
    %3124 = vmatprep.subr.bf16.mxu0 0
    %3125 = vmatpush1.bf16.msra.mxu0 0
    %3126 = vmatprep.subr.bf16.mxu0 0
    %3127 = vmatpush1.bf16.msra.mxu0 0
    %3128 = vmatprep.subr.bf16.mxu0 0
    %3129 = vmatpush1.bf16.msra.mxu0 0
    %3130 = vmatprep.subr.bf16.mxu0 0
    %3131 = vmatpush1.bf16.msra.mxu0 0
    %3132 = vmatprep.subr.bf16.mxu0 0
    %3133 = vmatpush1.bf16.msra.mxu0 0
    %3134 = vmatprep.mubr.bf16.mxu0 0
    %3135 = vmatmul.mubr.bf16.gmra.mrb[0].mxu0 %v3097
    %v3136 = vpop.f32.mrb[0].mxu0
    %v3137 = vadd.f32 0.0, %v3136
    %v3138 = vpop.f32.mrb[0].mxu0
    %v3139 = vpop.f32.mrb[0].mxu0
    %v3140 = vadd.f32 0.0, %v3139
    %v3141 = vpop.f32.mrb[0].mxu0
    %3142 = vmatprep.mubr.bf16.mxu0 0
    %3143 = vmatmul.mubr.bf16.gmra.mrb[0].mxu0 %v3100
    %v3144 = vpop.f32.mrb[0].mxu0
    %v3145 = vadd.f32 0.0, %v3144
    %v3146 = vpop.f32.mrb[0].mxu0
    %v3147 = vpop.f32.mrb[0].mxu0
    %v3148 = vadd.f32 0.0, %v3147
    %v3149 = vpop.f32.mrb[0].mxu0
    %3150 = vdwg.mxu0
    %v3151 = vsel %vm798, %v3137, 0.0
    %3152 = vadd.xlane.f32.xlu0 %v3151
    %v3153 = vpop.xlane.xlu0 %3152
    %v3154 = vsel %vm798, %v3140, 0.0
    %3155 = vadd.xlane.f32.xlu0 %v3154
    %v3156 = vpop.xlane.xlu0 %3155
    %v3157 = vsel %vm798, %v3145, 0.0
    %3158 = vadd.xlane.f32.xlu0 %v3157
    %v3159 = vpop.xlane.xlu0 %3158
    %v3160 = vsel %vm798, %v3148, 0.0
    %3161 = vadd.xlane.f32.xlu0 %v3160
    %v3162 = vpop.xlane.xlu0 %3161
    %v3163 = vmul.f32 %v3153, %v939
    %v3164 = vmul.f32 %v3156, %v939
    %v3165 = vmul.f32 %v3159, %v939
    %v3166 = vmul.f32 %v3162, %v939
    %v3167 = vsub.f32 %v3137, %v3163
    %v3168 = vsub.f32 %v3140, %v3164
    %v3169 = vsub.f32 %v3145, %v3165
    %v3170 = vsub.f32 %v3148, %v3166
    %v3171 = vmul.f32 %v3167, %v3167
    %v3172 = vmul.f32 %v3168, %v3168
    %v3173 = vmul.f32 %v3169, %v3169
    %v3174 = vmul.f32 %v3170, %v3170
    %v3175 = vsel %vm798, %v3171, 0.0
    %3176 = vadd.xlane.f32.xlu0 %v3175
    %v3177 = vpop.xlane.xlu0 %3176
    %v3178 = vsel %vm798, %v3172, 0.0
    %3179 = vadd.xlane.f32.xlu0 %v3178
    %v3180 = vpop.xlane.xlu0 %3179
    %v3181 = vsel %vm798, %v3173, 0.0
    %3182 = vadd.xlane.f32.xlu0 %v3181
    %v3183 = vpop.xlane.xlu0 %3182
    %v3184 = vsel %vm798, %v3174, 0.0
    %3185 = vadd.xlane.f32.xlu0 %v3184
    %v3186 = vpop.xlane.xlu0 %3185
    %v3187 = vmul.f32 %v3177, %v939
    %v3188 = vmul.f32 %v3180, %v939
    %v3189 = vmul.f32 %v3183, %v939
    %v3190 = vmul.f32 %v3186, %v939
    %v3191 = vadd.f32 %v3187, 1e-05
    %v3192 = vadd.f32 %v3188, 1e-05
    %v3193 = vadd.f32 %v3189, 1e-05
    %v3194 = vadd.f32 %v3190, 1e-05
    %v3195 = vrsqrt.pop %v3191
    %v3196 = vrsqrt.pop %v3192
    %v3197 = vrsqrt.pop %v3193
    %v3198 = vrsqrt.pop %v3194
    %v3199 = vmul.f32 %v3167, %v3195
    %v3200 = vmul.f32 %v3168, %v3196
    %v3201 = vmul.f32 %v3169, %v3197
    %v3202 = vmul.f32 %v3170, %v3198
    %3203 = vrot.lane.b32.xlu0 %v2629, 32
    %v3204 = vpop.permute.xlu0 %3203
    %3205 = vrot.lane.b32.xlu0 %v2630, 32
    %v3206 = vpop.permute.xlu0 %3205
    %3207 = vrot.lane.b32.xlu0 %v2631, 32
    %v3208 = vpop.permute.xlu0 %3207
    %3209 = vrot.lane.b32.xlu0 %v2632, 32
    %v3210 = vpop.permute.xlu0 %3209
    %v3212 = vsel %vm798, %v3204, 0
    %v3215 = vsel %vm798, %v3206, 0
    %v3218 = vsel %vm798, %v3208, 0
    %v3221 = vsel %vm798, %v3210, 0
    %3223 = vmatprep.subr.bf16.mxu0 0
    %3224 = vmatpush1.bf16.xpose.msra.mxu0 %v3218
    %3225 = vmatprep.subr.bf16.mxu0 0
    %3226 = vmatpush1.bf16.xpose.msra.mxu0 %v3221
    %3227 = vmatprep.subr.bf16.mxu0 0
    %3228 = vmatpush1.bf16.xpose.msra.mxu0 0
    %3229 = vmatprep.subr.bf16.mxu0 0
    %3230 = vmatpush1.bf16.xpose.msra.mxu0 0
    %3231 = vmatprep.subr.bf16.mxu0 0
    %3232 = vmatpush1.bf16.xpose.msra.mxu0 0
    %3233 = vmatprep.subr.bf16.mxu0 0
    %3234 = vmatpush1.bf16.xpose.msra.mxu0 0
    %3235 = vmatprep.subr.bf16.mxu0 0
    %3236 = vmatpush1.bf16.xpose.msra.mxu0 0
    %3237 = vmatprep.subr.bf16.mxu0 0
    %3238 = vmatpush1.bf16.xpose.msra.mxu0 0
    %3239 = vmatprep.subr.bf16.mxu0 0
    %3240 = vmatpush1.bf16.xpose.msra.mxu0 0
    %3241 = vmatprep.subr.bf16.mxu0 0
    %3242 = vmatpush1.bf16.xpose.msra.mxu0 0
    %3243 = vmatprep.subr.bf16.mxu0 0
    %3244 = vmatpush1.bf16.xpose.msra.mxu0 0
    %3245 = vmatprep.subr.bf16.mxu0 0
    %3246 = vmatpush1.bf16.xpose.msra.mxu0 0
    %3247 = vmatprep.subr.bf16.mxu0 0
    %3248 = vmatpush1.bf16.xpose.msra.mxu0 0
    %3249 = vmatprep.subr.bf16.mxu0 0
    %3250 = vmatpush1.bf16.xpose.msra.mxu0 0
    %3251 = vmatprep.subr.bf16.mxu0 0
    %3252 = vmatpush1.bf16.xpose.msra.mxu0 0
    %3253 = vmatprep.subr.bf16.mxu0 0
    %3254 = vmatpush1.bf16.xpose.msra.mxu0 0
    %3255 = vmatprep.mubr.bf16.mxu0 0
    %3256 = vmatmul.mubr.bf16.gmra.mrb[0].mxu0 %v3212
    %v3257 = vpop.f32.mrb[0].mxu0
    %v3258 = vadd.f32 0.0, %v3257
    %v3259 = vpop.f32.mrb[0].mxu0
    %v3260 = vpop.f32.mrb[0].mxu0
    %v3261 = vadd.f32 0.0, %v3260
    %v3262 = vpop.f32.mrb[0].mxu0
    %3263 = vmatprep.mubr.bf16.mxu0 0
    %3264 = vmatmul.mubr.bf16.gmra.mrb[0].mxu0 %v3215
    %v3265 = vpop.f32.mrb[0].mxu0
    %v3266 = vadd.f32 0.0, %v3265
    %v3267 = vpop.f32.mrb[0].mxu0
    %v3268 = vpop.f32.mrb[0].mxu0
    %v3269 = vadd.f32 0.0, %v3268
    %v3270 = vpop.f32.mrb[0].mxu0
    %3271 = vdwg.mxu0
    %v3272 = vld [vmem:[%s1441] sm:$0xff]
    %v3273 = vld [vmem:[%s1441 + $0x8] sm:$0xff]
    %v3274 = vld [vmem:[%s1441 + $0x10] sm:$0xff]
    %v3275 = vld [vmem:[%s1441 + $0x18] sm:$0xff]
    %v3276 = vmul.f32 %v3258, %v3272
    %v3277 = vmul.f32 %v3261, %v3273
    %v3278 = vmul.f32 %v3266, %v3274
    %v3279 = vmul.f32 %v3269, %v3275
    %v3280 = vpack.c.bf16 %v3277, %v3276
    %v3281 = vpack.c.bf16 %v3279, %v3278
    %3282 = vrot.lane.b32.xlu0 %v2704, 32
    %v3283 = vpop.permute.xlu0 %3282
    %3284 = vrot.lane.b32.xlu0 %v2705, 32
    %v3285 = vpop.permute.xlu0 %3284
    %v3289 = vsel %vm798, %v3280, 0
    %v3292 = vsel %vm798, %v3281, 0
    %3294 = vmatprep.subr.bf16.mxu0 0
    %3295 = vmatpush1.bf16.msra.mxu0 %v3283
    %3296 = vmatprep.subr.bf16.mxu0 0
    %3297 = vmatpush1.bf16.msra.mxu0 %v3285
    %3298 = vmatprep.subr.bf16.mxu0 0
    %3299 = vmatpush1.bf16.msra.mxu0 0
    %3300 = vmatprep.subr.bf16.mxu0 0
    %3301 = vmatpush1.bf16.msra.mxu0 0
    %3302 = vmatprep.subr.bf16.mxu0 0
    %3303 = vmatpush1.bf16.msra.mxu0 0
    %3304 = vmatprep.subr.bf16.mxu0 0
    %3305 = vmatpush1.bf16.msra.mxu0 0
    %3306 = vmatprep.subr.bf16.mxu0 0
    %3307 = vmatpush1.bf16.msra.mxu0 0
    %3308 = vmatprep.subr.bf16.mxu0 0
    %3309 = vmatpush1.bf16.msra.mxu0 0
    %3310 = vmatprep.subr.bf16.mxu0 0
    %3311 = vmatpush1.bf16.msra.mxu0 0
    %3312 = vmatprep.subr.bf16.mxu0 0
    %3313 = vmatpush1.bf16.msra.mxu0 0
    %3314 = vmatprep.subr.bf16.mxu0 0
    %3315 = vmatpush1.bf16.msra.mxu0 0
    %3316 = vmatprep.subr.bf16.mxu0 0
    %3317 = vmatpush1.bf16.msra.mxu0 0
    %3318 = vmatprep.subr.bf16.mxu0 0
    %3319 = vmatpush1.bf16.msra.mxu0 0
    %3320 = vmatprep.subr.bf16.mxu0 0
    %3321 = vmatpush1.bf16.msra.mxu0 0
    %3322 = vmatprep.subr.bf16.mxu0 0
    %3323 = vmatpush1.bf16.msra.mxu0 0
    %3324 = vmatprep.subr.bf16.mxu0 0
    %3325 = vmatpush1.bf16.msra.mxu0 0
    %3326 = vmatprep.mubr.bf16.mxu0 0
    %3327 = vmatmul.mubr.bf16.gmra.mrb[0].mxu0 %v3289
    %v3328 = vpop.f32.mrb[0].mxu0
    %v3329 = vadd.f32 0.0, %v3328
    %v3330 = vpop.f32.mrb[0].mxu0
    %v3331 = vpop.f32.mrb[0].mxu0
    %v3332 = vadd.f32 0.0, %v3331
    %v3333 = vpop.f32.mrb[0].mxu0
    %3334 = vmatprep.mubr.bf16.mxu0 0
    %3335 = vmatmul.mubr.bf16.gmra.mrb[0].mxu0 %v3292
    %v3336 = vpop.f32.mrb[0].mxu0
    %v3337 = vadd.f32 0.0, %v3336
    %v3338 = vpop.f32.mrb[0].mxu0
    %v3339 = vpop.f32.mrb[0].mxu0
    %v3340 = vadd.f32 0.0, %v3339
    %v3341 = vpop.f32.mrb[0].mxu0
    %3342 = vdwg.mxu0
    %v3343 = vsel %vm798, %v3329, 0.0
    %3344 = vadd.xlane.f32.xlu0 %v3343
    %v3345 = vpop.xlane.xlu0 %3344
    %v3346 = vsel %vm798, %v3332, 0.0
    %3347 = vadd.xlane.f32.xlu0 %v3346
    %v3348 = vpop.xlane.xlu0 %3347
    %v3349 = vsel %vm798, %v3337, 0.0
    %3350 = vadd.xlane.f32.xlu0 %v3349
    %v3351 = vpop.xlane.xlu0 %3350
    %v3352 = vsel %vm798, %v3340, 0.0
    %3353 = vadd.xlane.f32.xlu0 %v3352
    %v3354 = vpop.xlane.xlu0 %3353
    %v3355 = vmul.f32 %v3345, %v939
    %v3356 = vmul.f32 %v3348, %v939
    %v3357 = vmul.f32 %v3351, %v939
    %v3358 = vmul.f32 %v3354, %v939
    %v3359 = vsub.f32 %v3329, %v3355
    %v3360 = vsub.f32 %v3332, %v3356
    %v3361 = vsub.f32 %v3337, %v3357
    %v3362 = vsub.f32 %v3340, %v3358
    %v3363 = vmul.f32 %v3359, %v3359
    %v3364 = vmul.f32 %v3360, %v3360
    %v3365 = vmul.f32 %v3361, %v3361
    %v3366 = vmul.f32 %v3362, %v3362
    %v3367 = vsel %vm798, %v3363, 0.0
    %3368 = vadd.xlane.f32.xlu0 %v3367
    %v3369 = vpop.xlane.xlu0 %3368
    %v3370 = vsel %vm798, %v3364, 0.0
    %3371 = vadd.xlane.f32.xlu0 %v3370
    %v3372 = vpop.xlane.xlu0 %3371
    %v3373 = vsel %vm798, %v3365, 0.0
    %3374 = vadd.xlane.f32.xlu0 %v3373
    %v3375 = vpop.xlane.xlu0 %3374
    %v3376 = vsel %vm798, %v3366, 0.0
    %3377 = vadd.xlane.f32.xlu0 %v3376
    %v3378 = vpop.xlane.xlu0 %3377
    %v3379 = vmul.f32 %v3369, %v939
    %v3380 = vmul.f32 %v3372, %v939
    %v3381 = vmul.f32 %v3375, %v939
    %v3382 = vmul.f32 %v3378, %v939
    %v3383 = vadd.f32 %v3379, 1e-05
    %v3384 = vadd.f32 %v3380, 1e-05
    %v3385 = vadd.f32 %v3381, 1e-05
    %v3386 = vadd.f32 %v3382, 1e-05
    %v3387 = vrsqrt.pop %v3383
    %v3388 = vrsqrt.pop %v3384
    %v3389 = vrsqrt.pop %v3385
    %v3390 = vrsqrt.pop %v3386
    %v3391 = vmul.f32 %v3359, %v3387
    %v3392 = vmul.f32 %v3360, %v3388
    %v3393 = vmul.f32 %v3361, %v3389
    %v3394 = vmul.f32 %v3362, %v3390
    %3399 = vrot.lane.b32.xlu0 %v3007, 32
    %v3400 = vpop.permute.xlu0 %3399
    %3401 = vrot.lane.b32.xlu0 %v3008, 32
    %v3402 = vpop.permute.xlu0 %3401
    %3403 = vrot.lane.b32.xlu0 %v3009, 32
    %v3404 = vpop.permute.xlu0 %3403
    %3405 = vrot.lane.b32.xlu0 %v3010, 32
    %v3406 = vpop.permute.xlu0 %3405
    %3415 = vrot.lane.b32.xlu0 %v3199, 64
    %v3416 = vpop.permute.xlu0 %3415
    %3417 = vrot.lane.b32.xlu0 %v3200, 64
    %v3418 = vpop.permute.xlu0 %3417
    %3419 = vrot.lane.b32.xlu0 %v3201, 64
    %v3420 = vpop.permute.xlu0 %3419
    %3421 = vrot.lane.b32.xlu0 %v3202, 64
    %v3422 = vpop.permute.xlu0 %3421
    %3431 = vrot.lane.b32.xlu0 %v3391, 96
    %v3432 = vpop.permute.xlu0 %3431
    %3433 = vrot.lane.b32.xlu0 %v3392, 96
    %v3434 = vpop.permute.xlu0 %3433
    %3435 = vrot.lane.b32.xlu0 %v3393, 96
    %v3436 = vpop.permute.xlu0 %3435
    %3437 = vrot.lane.b32.xlu0 %v3394, 96
    %v3438 = vpop.permute.xlu0 %3437
    %v3443 = vsel %vm798, %v2809, %v3400
    %v3444 = vsel %vm798, %v2810, %v3402
    %v3445 = vsel %vm798, %v2811, %v3404
    %v3446 = vsel %vm798, %v2812, %v3406
    %v3447 = vsel %vm363, %v3443, %v3416
    %v3448 = vsel %vm363, %v3444, %v3418
    %v3449 = vsel %vm363, %v3445, %v3420
    %v3450 = vsel %vm363, %v3446, %v3422
    %v3451 = vsel %vm1621, %v3447, %v3432
    %v3452 = vsel %vm1621, %v3448, %v3434
    %v3453 = vsel %vm1621, %v3449, %v3436
    %v3454 = vsel %vm1621, %v3450, %v3438
    %s3455 = scalar_lea.vmem [#allocation17], 1
    %v3456 = vld [vmem:[%s3455] sm:$0x1]
    %v3458 = vlaneseq
    %v3459 = vshrl.u32 %v3458, 7
    %v3460 = vsub.s32 0, %v3459
    %v3461 = vrot.slane %v3456, %v3460
    %v3463 = vmul.f32 %v3451, %v3461
    %v3464 = vmul.f32 %v3452, %v3461
    %v3465 = vmul.f32 %v3453, %v3461
    %v3466 = vmul.f32 %v3454, %v3461
    %s3467 = scalar_lea.vmem [#allocation19], 1
    %v3468 = vld [vmem:[%s3467] sm:$0x1]
    %v3470 = vlaneseq
    %v3471 = vshrl.u32 %v3470, 7
    %v3472 = vsub.s32 0, %v3471
    %v3473 = vrot.slane %v3468, %v3472
    %v3475 = vadd.f32 %v3463, %v3473
    %v3476 = vadd.f32 %v3464, %v3473
    %v3477 = vadd.f32 %v3465, %v3473
    %v3478 = vadd.f32 %v3466, %v3473
    %v3479 = vxor.u32 %v2613, 2147483648
    %v3480 = vxor.u32 %v2617, 2147483648
    %v3481 = vxor.u32 %v2623, 2147483648
    %v3482 = vxor.u32 %v2627, 2147483648
    %v3483 = vmul.f32 %v3479, 1.442695
    %v3484 = vpow.pop %v3483
    %v3485 = vmul.f32 %v3480, 1.442695
    %v3486 = vpow.pop %v3485
    %v3487 = vmul.f32 %v3481, 1.442695
    %v3488 = vpow.pop %v3487
    %v3489 = vmul.f32 %v3482, 1.442695
    %v3490 = vpow.pop %v3489
    %v3491 = vadd.f32 %v3484, 1.0
    %v3492 = vadd.f32 %v3486, 1.0
    %v3493 = vadd.f32 %v3488, 1.0
    %v3494 = vadd.f32 %v3490, 1.0
    %v3495 = vrcp.pop %v3491
    %v3496 = vmul.f32 1.0, %v3495
    %v3497 = vrcp.pop %v3492
    %v3498 = vmul.f32 1.0, %v3497
    %v3499 = vrcp.pop %v3493
    %v3500 = vmul.f32 1.0, %v3499
    %v3501 = vrcp.pop %v3494
    %v3502 = vmul.f32 1.0, %v3501
    %v3503 = vmul.f32 %v2613, %v3496
    %v3504 = vmul.f32 %v2617, %v3498
    %v3505 = vmul.f32 %v2623, %v3500
    %v3506 = vmul.f32 %v2627, %v3502
    %v3507 = vmul.f32 %v3503, %v3475
    %v3508 = vmul.f32 %v3504, %v3476
    %v3509 = vmul.f32 %v3505, %v3477
    %v3510 = vmul.f32 %v3506, %v3478
    %v3511 = vpack.c.bf16 %v3508, %v3507
    %v3512 = vpack.c.bf16 %v3510, %v3509
    %s3513 = scalar_lea.vmem [#allocation16], 64
    %v3514 = vld [vmem:[%s3513] sm:$0xf]
    %v3515 = vld [vmem:[%s3513 + $0x4] sm:$0xf]
    %v3516 = vld [vmem:[%s3513 + $0x8] sm:$0xf]
    %v3517 = vld [vmem:[%s3513 + $0xc] sm:$0xf]
    %v3518 = vld [vmem:[%s3513 + $0x10] sm:$0xf]
    %v3519 = vld [vmem:[%s3513 + $0x14] sm:$0xf]
    %v3520 = vld [vmem:[%s3513 + $0x18] sm:$0xf]
    %v3521 = vld [vmem:[%s3513 + $0x1c] sm:$0xf]
    %v3522 = vld [vmem:[%s3513 + $0x20] sm:$0xf]
    %v3523 = vld [vmem:[%s3513 + $0x24] sm:$0xf]
    %v3524 = vld [vmem:[%s3513 + $0x28] sm:$0xf]
    %v3525 = vld [vmem:[%s3513 + $0x2c] sm:$0xf]
    %v3526 = vld [vmem:[%s3513 + $0x30] sm:$0xf]
    %v3527 = vld [vmem:[%s3513 + $0x34] sm:$0xf]
    %v3528 = vld [vmem:[%s3513 + $0x38] sm:$0xf]
    %v3529 = vld [vmem:[%s3513 + $0x3c] sm:$0xf]
    %v3546 = vunpack.c.l.b16 %v3514
    %v3547 = vunpack.c.l.b16 %v3515
    %v3548 = vunpack.c.l.b16 %v3516
    %v3549 = vunpack.c.l.b16 %v3517
    %v3550 = vunpack.c.l.b16 %v3518
    %v3551 = vunpack.c.l.b16 %v3519
    %v3552 = vunpack.c.l.b16 %v3520
    %v3553 = vunpack.c.l.b16 %v3521
    %v3554 = vunpack.c.l.b16 %v3522
    %v3555 = vunpack.c.l.b16 %v3523
    %v3556 = vunpack.c.l.b16 %v3524
    %v3557 = vunpack.c.l.b16 %v3525
    %v3558 = vunpack.c.l.b16 %v3526
    %v3559 = vunpack.c.l.b16 %v3527
    %v3560 = vunpack.c.l.b16 %v3528
    %v3561 = vunpack.c.l.b16 %v3529
    %v3562 = vpack.c.b16 %v3547, %v3546
    %v3563 = vpack.c.b16 %v3549, %v3548
    %v3564 = vpack.c.b16 %v3551, %v3550
    %v3565 = vpack.c.b16 %v3553, %v3552
    %v3566 = vpack.c.b16 %v3555, %v3554
    %v3567 = vpack.c.b16 %v3557, %v3556
    %v3568 = vpack.c.b16 %v3559, %v3558
    %v3569 = vpack.c.b16 %v3561, %v3560
    %3578 = vmatprep.subr.bf16.mxu0 0
    %3579 = vmatpush1.bf16.msra.mxu0 %v3562
    %3580 = vmatprep.subr.bf16.mxu0 0
    %3581 = vmatpush1.bf16.msra.mxu0 %v3563
    %3582 = vmatprep.subr.bf16.mxu0 0
    %3583 = vmatpush1.bf16.msra.mxu0 %v3564
    %3584 = vmatprep.subr.bf16.mxu0 0
    %3585 = vmatpush1.bf16.msra.mxu0 %v3565
    %3586 = vmatprep.subr.bf16.mxu0 0
    %3587 = vmatpush1.bf16.msra.mxu0 %v3566
    %3588 = vmatprep.subr.bf16.mxu0 0
    %3589 = vmatpush1.bf16.msra.mxu0 %v3567
    %3590 = vmatprep.subr.bf16.mxu0 0
    %3591 = vmatpush1.bf16.msra.mxu0 %v3568
    %3592 = vmatprep.subr.bf16.mxu0 0
    %3593 = vmatpush1.bf16.msra.mxu0 %v3569
    %3594 = vmatprep.subr.bf16.mxu0 0
    %3595 = vmatpush1.bf16.msra.mxu0 0
    %3596 = vmatprep.subr.bf16.mxu0 0
    %3597 = vmatpush1.bf16.msra.mxu0 0
    %3598 = vmatprep.subr.bf16.mxu0 0
    %3599 = vmatpush1.bf16.msra.mxu0 0
    %3600 = vmatprep.subr.bf16.mxu0 0
    %3601 = vmatpush1.bf16.msra.mxu0 0
    %3602 = vmatprep.subr.bf16.mxu0 0
    %3603 = vmatpush1.bf16.msra.mxu0 0
    %3604 = vmatprep.subr.bf16.mxu0 0
    %3605 = vmatpush1.bf16.msra.mxu0 0
    %3606 = vmatprep.subr.bf16.mxu0 0
    %3607 = vmatpush1.bf16.msra.mxu0 0
    %3608 = vmatprep.subr.bf16.mxu0 0
    %3609 = vmatpush1.bf16.msra.mxu0 0
    %3610 = vmatprep.mubr.bf16.mxu0 0
    %3611 = vmatmul.mubr.bf16.gmra.mrb[0].mxu0 %v3511
    %v3612 = vpop.f32.mrb[0].mxu0
    %v3613 = vadd.f32 %v2252, %v3612
    %v3614 = vpop.f32.mrb[0].mxu0
    %v3615 = vpop.f32.mrb[0].mxu0
    %v3616 = vadd.f32 %v2253, %v3615
    %v3617 = vpop.f32.mrb[0].mxu0
    %3618 = vmatprep.mubr.bf16.mxu0 0
    %3619 = vmatmul.mubr.bf16.gmra.mrb[0].mxu0 %v3512
    %v3620 = vpop.f32.mrb[0].mxu0
    %v3621 = vadd.f32 %v2254, %v3620
    %v3622 = vpop.f32.mrb[0].mxu0
    %v3623 = vpop.f32.mrb[0].mxu0
    %v3624 = vadd.f32 %v2255, %v3623
    %v3625 = vpop.f32.mrb[0].mxu0
    %3626 = vdwg.mxu0
    %s3627 = scalar_lea.vmem [#allocation20], 1
    %v3628 = vld [vmem:[%s3627] sm:$0x1]
    %s3629 = scalar_lea.vmem [#allocation22], 1
    %v3630 = vld [vmem:[%s3629] sm:$0x1]
    %3631 = vadd.xlane.f32.xlu0 %v3613
    %v3632 = vpop.xlane.xlu0 %3631
    %3633 = vadd.xlane.f32.xlu0 %v3616
    %v3634 = vpop.xlane.xlu0 %3633
    %3635 = vadd.xlane.f32.xlu0 %v3621
    %v3636 = vpop.xlane.xlu0 %3635
    %3637 = vadd.xlane.f32.xlu0 %v3624
    %v3638 = vpop.xlane.xlu0 %3637
    %v3639 = vmul.f32 %v3632, %v437
    %v3640 = vmul.f32 %v3634, %v437
    %v3641 = vmul.f32 %v3636, %v437
    %v3642 = vmul.f32 %v3638, %v437
    %v3643 = vsub.f32 %v3613, %v3639
    %v3644 = vsub.f32 %v3616, %v3640
    %v3645 = vsub.f32 %v3621, %v3641
    %v3646 = vsub.f32 %v3624, %v3642
    %v3647 = vmul.f32 %v3643, %v3643
    %v3648 = vmul.f32 %v3644, %v3644
    %v3649 = vmul.f32 %v3645, %v3645
    %v3650 = vmul.f32 %v3646, %v3646
    %3651 = vadd.xlane.f32.xlu0 %v3647
    %v3652 = vpop.xlane.xlu0 %3651
    %3653 = vadd.xlane.f32.xlu0 %v3648
    %v3654 = vpop.xlane.xlu0 %3653
    %3655 = vadd.xlane.f32.xlu0 %v3649
    %v3656 = vpop.xlane.xlu0 %3655
    %3657 = vadd.xlane.f32.xlu0 %v3650
    %v3658 = vpop.xlane.xlu0 %3657
    %v3659 = vmul.f32 %v3652, %v437
    %v3660 = vmul.f32 %v3654, %v437
    %v3661 = vmul.f32 %v3656, %v437
    %v3662 = vmul.f32 %v3658, %v437
    %v3663 = vadd.f32 %v3659, 1e-05
    %v3664 = vadd.f32 %v3660, 1e-05
    %v3665 = vadd.f32 %v3661, 1e-05
    %v3666 = vadd.f32 %v3662, 1e-05
    %v3667 = vrsqrt.pop %v3663
    %v3668 = vrsqrt.pop %v3664
    %v3669 = vrsqrt.pop %v3665
    %v3670 = vrsqrt.pop %v3666
    %v3671 = vmul.f32 %v3643, %v3667
    %v3672 = vmul.f32 %v3644, %v3668
    %v3673 = vmul.f32 %v3645, %v3669
    %v3674 = vmul.f32 %v3646, %v3670
    %v3676 = vlaneseq
    %v3677 = vshrl.u32 %v3676, 7
    %v3678 = vsub.s32 0, %v3677
    %v3679 = vrot.slane %v3628, %v3678
    %v3681 = vmul.f32 %v3671, %v3679
    %v3682 = vmul.f32 %v3672, %v3679
    %v3683 = vmul.f32 %v3673, %v3679
    %v3684 = vmul.f32 %v3674, %v3679
    %v3686 = vlaneseq
    %v3687 = vshrl.u32 %v3686, 7
    %v3688 = vsub.s32 0, %v3687
    %v3689 = vrot.slane %v3630, %v3688
    %v3691 = vadd.f32 %v3681, %v3689
    %v3692 = vadd.f32 %v3682, %v3689
    %v3693 = vadd.f32 %v3683, %v3689
    %v3694 = vadd.f32 %v3684, %v3689
    %v3695 = vpack.c.bf16 %v3692, %v3691
    %v3696 = vpack.c.bf16 %v3694, %v3693
    %s3697 = scalar_lea.vmem [#allocation23], 128
    %v3698 = vld [vmem:[%s3697] sm:$0xff]
    %v3699 = vld [vmem:[%s3697 + $0x8] sm:$0xff]
    %v3700 = vld [vmem:[%s3697 + $0x10] sm:$0xff]
    %v3701 = vld [vmem:[%s3697 + $0x18] sm:$0xff]
    %v3702 = vld [vmem:[%s3697 + $0x20] sm:$0xff]
    %v3703 = vld [vmem:[%s3697 + $0x28] sm:$0xff]
    %v3704 = vld [vmem:[%s3697 + $0x30] sm:$0xff]
    %v3705 = vld [vmem:[%s3697 + $0x38] sm:$0xff]
    %v3706 = vld [vmem:[%s3697 + $0x40] sm:$0xff]
    %v3707 = vld [vmem:[%s3697 + $0x48] sm:$0xff]
    %v3708 = vld [vmem:[%s3697 + $0x50] sm:$0xff]
    %v3709 = vld [vmem:[%s3697 + $0x58] sm:$0xff]
    %v3710 = vld [vmem:[%s3697 + $0x60] sm:$0xff]
    %v3711 = vld [vmem:[%s3697 + $0x68] sm:$0xff]
    %v3712 = vld [vmem:[%s3697 + $0x70] sm:$0xff]
    %v3713 = vld [vmem:[%s3697 + $0x78] sm:$0xff]
    %s3714 = scalar_lea.vmem [#allocation25], 2
    %v3715 = vld [vmem:[%s3714] sm:$0x3]
    %v3717 = vlaneseq
    %v3718 = vshrl.u32 %v3717, 7
    %v3719 = vsub.s32 0, %v3718
    %v3720 = vrot.slane %v3715, %v3719
    %v3721 = vlaneseq
    %v3722 = vshrl.u32 %v3721, 7
    %v3723 = vsub.s32 1, %v3722
    %v3724 = vrot.slane %v3715, %v3723
    %v3743 = vunpack.c.l.b16 %v3698
    %v3744 = vunpack.c.h.b16 %v3698
    %v3745 = vunpack.c.l.b16 %v3699
    %v3746 = vunpack.c.h.b16 %v3699
    %v3747 = vunpack.c.l.b16 %v3700
    %v3748 = vunpack.c.h.b16 %v3700
    %v3749 = vunpack.c.l.b16 %v3701
    %v3750 = vunpack.c.h.b16 %v3701
    %v3751 = vunpack.c.l.b16 %v3702
    %v3752 = vunpack.c.h.b16 %v3702
    %v3753 = vunpack.c.l.b16 %v3703
    %v3754 = vunpack.c.h.b16 %v3703
    %v3755 = vunpack.c.l.b16 %v3704
    %v3756 = vunpack.c.h.b16 %v3704
    %v3757 = vunpack.c.l.b16 %v3705
    %v3758 = vunpack.c.h.b16 %v3705
    %v3759 = vunpack.c.l.b16 %v3706
    %v3760 = vunpack.c.h.b16 %v3706
    %v3761 = vunpack.c.l.b16 %v3707
    %v3762 = vunpack.c.h.b16 %v3707
    %v3763 = vunpack.c.l.b16 %v3708
    %v3764 = vunpack.c.h.b16 %v3708
    %v3765 = vunpack.c.l.b16 %v3709
    %v3766 = vunpack.c.h.b16 %v3709
    %v3767 = vunpack.c.l.b16 %v3710
    %v3768 = vunpack.c.h.b16 %v3710
    %v3769 = vunpack.c.l.b16 %v3711
    %v3770 = vunpack.c.h.b16 %v3711
    %v3771 = vunpack.c.l.b16 %v3712
    %v3772 = vunpack.c.h.b16 %v3712
    %v3773 = vunpack.c.l.b16 %v3713
    %v3774 = vunpack.c.h.b16 %v3713
    %v3775 = vpack.c.b16 %v3745, %v3743
    %v3776 = vpack.c.b16 %v3746, %v3744
    %v3777 = vpack.c.b16 %v3749, %v3747
    %v3778 = vpack.c.b16 %v3750, %v3748
    %v3779 = vpack.c.b16 %v3753, %v3751
    %v3780 = vpack.c.b16 %v3754, %v3752
    %v3781 = vpack.c.b16 %v3757, %v3755
    %v3782 = vpack.c.b16 %v3758, %v3756
    %v3783 = vpack.c.b16 %v3761, %v3759
    %v3784 = vpack.c.b16 %v3762, %v3760
    %v3785 = vpack.c.b16 %v3765, %v3763
    %v3786 = vpack.c.b16 %v3766, %v3764
    %v3787 = vpack.c.b16 %v3769, %v3767
    %v3788 = vpack.c.b16 %v3770, %v3768
    %v3789 = vpack.c.b16 %v3773, %v3771
    %v3790 = vpack.c.b16 %v3774, %v3772
    %3807 = vmatprep.subr.bf16.mxu0 %v3776
    %3808 = vmatpush1.bf16.msra.mxu0 %v3775
    %3809 = vmatprep.subr.bf16.mxu0 %v3778
    %3810 = vmatpush1.bf16.msra.mxu0 %v3777
    %3811 = vmatprep.subr.bf16.mxu0 %v3780
    %3812 = vmatpush1.bf16.msra.mxu0 %v3779
    %3813 = vmatprep.subr.bf16.mxu0 %v3782
    %3814 = vmatpush1.bf16.msra.mxu0 %v3781
    %3815 = vmatprep.subr.bf16.mxu0 %v3784
    %3816 = vmatpush1.bf16.msra.mxu0 %v3783
    %3817 = vmatprep.subr.bf16.mxu0 %v3786
    %3818 = vmatpush1.bf16.msra.mxu0 %v3785
    %3819 = vmatprep.subr.bf16.mxu0 %v3788
    %3820 = vmatpush1.bf16.msra.mxu0 %v3787
    %3821 = vmatprep.subr.bf16.mxu0 %v3790
    %3822 = vmatpush1.bf16.msra.mxu0 %v3789
    %3823 = vmatprep.subr.bf16.mxu0 0
    %3824 = vmatpush1.bf16.msra.mxu0 0
    %3825 = vmatprep.subr.bf16.mxu0 0
    %3826 = vmatpush1.bf16.msra.mxu0 0
    %3827 = vmatprep.subr.bf16.mxu0 0
    %3828 = vmatpush1.bf16.msra.mxu0 0
    %3829 = vmatprep.subr.bf16.mxu0 0
    %3830 = vmatpush1.bf16.msra.mxu0 0
    %3831 = vmatprep.subr.bf16.mxu0 0
    %3832 = vmatpush1.bf16.msra.mxu0 0
    %3833 = vmatprep.subr.bf16.mxu0 0
    %3834 = vmatpush1.bf16.msra.mxu0 0
    %3835 = vmatprep.subr.bf16.mxu0 0
    %3836 = vmatpush1.bf16.msra.mxu0 0
    %3837 = vmatprep.subr.bf16.mxu0 0
    %3838 = vmatpush1.bf16.msra.mxu0 0
    %3839 = vmatprep.mubr.bf16.mxu0 0
    %3840 = vmatmul.mubr.bf16.gmra.mrb[0].mxu0 %v3695
    %v3841 = vpop.f32.mrb[0].mxu0
    %v3842 = vadd.f32 %v3720, %v3841
    %v3843 = vpop.f32.mrb[0].mxu0
    %v3844 = vadd.f32 %v3724, %v3843
    %v3845 = vpop.f32.mrb[0].mxu0
    %v3846 = vadd.f32 %v3720, %v3845
    %v3847 = vpop.f32.mrb[0].mxu0
    %v3848 = vadd.f32 %v3724, %v3847
    %3849 = vmatprep.mubr.bf16.mxu0 0
    %3850 = vmatmul.mubr.bf16.gmra.mrb[0].mxu0 %v3696
    %v3851 = vpop.f32.mrb[0].mxu0
    %v3852 = vadd.f32 %v3720, %v3851
    %v3853 = vpop.f32.mrb[0].mxu0
    %v3854 = vadd.f32 %v3724, %v3853
    %v3855 = vpop.f32.mrb[0].mxu0
    %v3856 = vadd.f32 %v3720, %v3855
    %v3857 = vpop.f32.mrb[0].mxu0
    %v3858 = vadd.f32 %v3724, %v3857
    %3859 = vdwg.mxu0
    %v3860 = vmul.f32 %v3842, 0.5
    %v3861 = vmul.f32 %v3844, 0.5
    %v3862 = vmul.f32 %v3846, 0.5
    %v3863 = vmul.f32 %v3848, 0.5
    %v3864 = vmul.f32 %v3852, 0.5
    %v3865 = vmul.f32 %v3854, 0.5
    %v3866 = vmul.f32 %v3856, 0.5
    %v3867 = vmul.f32 %v3858, 0.5
    %v3868 = vmul.f32 %v3842, 0.70710677
    %v3869 = vmul.f32 %v3844, 0.70710677
    %v3870 = vmul.f32 %v3846, 0.70710677
    %v3871 = vmul.f32 %v3848, 0.70710677
    %v3872 = vmul.f32 %v3852, 0.70710677
    %v3873 = vmul.f32 %v3854, 0.70710677
    %v3874 = vmul.f32 %v3856, 0.70710677
    %v3875 = vmul.f32 %v3858, 0.70710677
    %v3876 = verf.f32.pop %v3868
    %v3877 = verf.f32.pop %v3869
    %v3878 = verf.f32.pop %v3870
    %v3879 = verf.f32.pop %v3871
    %v3880 = verf.f32.pop %v3872
    %v3881 = verf.f32.pop %v3873
    %v3882 = verf.f32.pop %v3874
    %v3883 = verf.f32.pop %v3875
    %v3884 = vadd.f32 %v3876, 1.0
    %v3885 = vadd.f32 %v3877, 1.0
    %v3886 = vadd.f32 %v3878, 1.0
    %v3887 = vadd.f32 %v3879, 1.0
    %v3888 = vadd.f32 %v3880, 1.0
    %v3889 = vadd.f32 %v3881, 1.0
    %v3890 = vadd.f32 %v3882, 1.0
    %v3891 = vadd.f32 %v3883, 1.0
    %v3892 = vmul.f32 %v3860, %v3884
    %v3893 = vmul.f32 %v3861, %v3885
    %v3894 = vmul.f32 %v3862, %v3886
    %v3895 = vmul.f32 %v3863, %v3887
    %v3896 = vmul.f32 %v3864, %v3888
    %v3897 = vmul.f32 %v3865, %v3889
    %v3898 = vmul.f32 %v3866, %v3890
    %v3899 = vmul.f32 %v3867, %v3891
    %v3900 = vpack.c.bf16 %v3894, %v3892
    %v3901 = vpack.c.bf16 %v3895, %v3893
    %v3902 = vpack.c.bf16 %v3898, %v3896
    %v3903 = vpack.c.bf16 %v3899, %v3897
    %s3904 = scalar_lea.vmem [#allocation26], 128
    %v3905 = vld [vmem:[%s3904] sm:$0xf]
    %v3906 = vld [vmem:[%s3904 + $0x4] sm:$0xf]
    %v3907 = vld [vmem:[%s3904 + $0x8] sm:$0xf]
    %v3908 = vld [vmem:[%s3904 + $0xc] sm:$0xf]
    %v3909 = vld [vmem:[%s3904 + $0x10] sm:$0xf]
    %v3910 = vld [vmem:[%s3904 + $0x14] sm:$0xf]
    %v3911 = vld [vmem:[%s3904 + $0x18] sm:$0xf]
    %v3912 = vld [vmem:[%s3904 + $0x1c] sm:$0xf]
    %v3913 = vld [vmem:[%s3904 + $0x20] sm:$0xf]
    %v3914 = vld [vmem:[%s3904 + $0x24] sm:$0xf]
    %v3915 = vld [vmem:[%s3904 + $0x28] sm:$0xf]
    %v3916 = vld [vmem:[%s3904 + $0x2c] sm:$0xf]
    %v3917 = vld [vmem:[%s3904 + $0x30] sm:$0xf]
    %v3918 = vld [vmem:[%s3904 + $0x34] sm:$0xf]
    %v3919 = vld [vmem:[%s3904 + $0x38] sm:$0xf]
    %v3920 = vld [vmem:[%s3904 + $0x3c] sm:$0xf]
    %v3921 = vld [vmem:[%s3904 + $0x40] sm:$0xf]
    %v3922 = vld [vmem:[%s3904 + $0x44] sm:$0xf]
    %v3923 = vld [vmem:[%s3904 + $0x48] sm:$0xf]
    %v3924 = vld [vmem:[%s3904 + $0x4c] sm:$0xf]
    %v3925 = vld [vmem:[%s3904 + $0x50] sm:$0xf]
    %v3926 = vld [vmem:[%s3904 + $0x54] sm:$0xf]
    %v3927 = vld [vmem:[%s3904 + $0x58] sm:$0xf]
    %v3928 = vld [vmem:[%s3904 + $0x5c] sm:$0xf]
    %v3929 = vld [vmem:[%s3904 + $0x60] sm:$0xf]
    %v3930 = vld [vmem:[%s3904 + $0x64] sm:$0xf]
    %v3931 = vld [vmem:[%s3904 + $0x68] sm:$0xf]
    %v3932 = vld [vmem:[%s3904 + $0x6c] sm:$0xf]
    %v3933 = vld [vmem:[%s3904 + $0x70] sm:$0xf]
    %v3934 = vld [vmem:[%s3904 + $0x74] sm:$0xf]
    %v3935 = vld [vmem:[%s3904 + $0x78] sm:$0xf]
    %v3936 = vld [vmem:[%s3904 + $0x7c] sm:$0xf]
    %s3937 = scalar_lea.vmem [#allocation28], 1
    %v3938 = vld [vmem:[%s3937] sm:$0x1]
    %v3940 = vlaneseq
    %v3941 = vshrl.u32 %v3940, 7
    %v3942 = vsub.s32 0, %v3941
    %v3943 = vrot.slane %v3938, %v3942
    %v3977 = vunpack.c.l.b16 %v3905
    %v3978 = vunpack.c.l.b16 %v3906
    %v3979 = vunpack.c.l.b16 %v3907
    %v3980 = vunpack.c.l.b16 %v3908
    %v3981 = vunpack.c.l.b16 %v3909
    %v3982 = vunpack.c.l.b16 %v3910
    %v3983 = vunpack.c.l.b16 %v3911
    %v3984 = vunpack.c.l.b16 %v3912
    %v3985 = vunpack.c.l.b16 %v3913
    %v3986 = vunpack.c.l.b16 %v3914
    %v3987 = vunpack.c.l.b16 %v3915
    %v3988 = vunpack.c.l.b16 %v3916
    %v3989 = vunpack.c.l.b16 %v3917
    %v3990 = vunpack.c.l.b16 %v3918
    %v3991 = vunpack.c.l.b16 %v3919
    %v3992 = vunpack.c.l.b16 %v3920
    %v3993 = vunpack.c.l.b16 %v3921
    %v3994 = vunpack.c.l.b16 %v3922
    %v3995 = vunpack.c.l.b16 %v3923
    %v3996 = vunpack.c.l.b16 %v3924
    %v3997 = vunpack.c.l.b16 %v3925
    %v3998 = vunpack.c.l.b16 %v3926
    %v3999 = vunpack.c.l.b16 %v3927
    %v4000 = vunpack.c.l.b16 %v3928
    %v4001 = vunpack.c.l.b16 %v3929
    %v4002 = vunpack.c.l.b16 %v3930
    %v4003 = vunpack.c.l.b16 %v3931
    %v4004 = vunpack.c.l.b16 %v3932
    %v4005 = vunpack.c.l.b16 %v3933
    %v4006 = vunpack.c.l.b16 %v3934
    %v4007 = vunpack.c.l.b16 %v3935
    %v4008 = vunpack.c.l.b16 %v3936
    %v4009 = vpack.c.b16 %v3978, %v3977
    %v4010 = vpack.c.b16 %v3980, %v3979
    %v4011 = vpack.c.b16 %v3982, %v3981
    %v4012 = vpack.c.b16 %v3984, %v3983
    %v4013 = vpack.c.b16 %v3986, %v3985
    %v4014 = vpack.c.b16 %v3988, %v3987
    %v4015 = vpack.c.b16 %v3990, %v3989
    %v4016 = vpack.c.b16 %v3992, %v3991
    %v4017 = vpack.c.b16 %v3994, %v3993
    %v4018 = vpack.c.b16 %v3996, %v3995
    %v4019 = vpack.c.b16 %v3998, %v3997
    %v4020 = vpack.c.b16 %v4000, %v3999
    %v4021 = vpack.c.b16 %v4002, %v4001
    %v4022 = vpack.c.b16 %v4004, %v4003
    %v4023 = vpack.c.b16 %v4006, %v4005
    %v4024 = vpack.c.b16 %v4008, %v4007
    %4041 = vmatprep.subr.bf16.mxu0 0
    %4042 = vmatpush1.bf16.msra.mxu0 %v4009
    %4043 = vmatprep.subr.bf16.mxu0 0
    %4044 = vmatpush1.bf16.msra.mxu0 %v4010
    %4045 = vmatprep.subr.bf16.mxu0 0
    %4046 = vmatpush1.bf16.msra.mxu0 %v4011
    %4047 = vmatprep.subr.bf16.mxu0 0
    %4048 = vmatpush1.bf16.msra.mxu0 %v4012
    %4049 = vmatprep.subr.bf16.mxu0 0
    %4050 = vmatpush1.bf16.msra.mxu0 %v4013
    %4051 = vmatprep.subr.bf16.mxu0 0
    %4052 = vmatpush1.bf16.msra.mxu0 %v4014
    %4053 = vmatprep.subr.bf16.mxu0 0
    %4054 = vmatpush1.bf16.msra.mxu0 %v4015
    %4055 = vmatprep.subr.bf16.mxu0 0
    %4056 = vmatpush1.bf16.msra.mxu0 %v4016
    %4057 = vmatprep.subr.bf16.mxu0 0
    %4058 = vmatpush1.bf16.msra.mxu0 %v4017
    %4059 = vmatprep.subr.bf16.mxu0 0
    %4060 = vmatpush1.bf16.msra.mxu0 %v4018
    %4061 = vmatprep.subr.bf16.mxu0 0
    %4062 = vmatpush1.bf16.msra.mxu0 %v4019
    %4063 = vmatprep.subr.bf16.mxu0 0
    %4064 = vmatpush1.bf16.msra.mxu0 %v4020
    %4065 = vmatprep.subr.bf16.mxu0 0
    %4066 = vmatpush1.bf16.msra.mxu0 %v4021
    %4067 = vmatprep.subr.bf16.mxu0 0
    %4068 = vmatpush1.bf16.msra.mxu0 %v4022
    %4069 = vmatprep.subr.bf16.mxu0 0
    %4070 = vmatpush1.bf16.msra.mxu0 %v4023
    %4071 = vmatprep.subr.bf16.mxu0 0
    %4072 = vmatpush1.bf16.msra.mxu0 %v4024
    %4073 = vmatprep.mubr.bf16.mxu0 %v3901
    %4074 = vmatmul.mubr.bf16.gmra.mrb[0].mxu0 %v3900
    %v4075 = vpop.f32.mrb[0].mxu0
    %v4076 = vadd.f32 %v3943, %v4075
    %v4077 = vpop.f32.mrb[0].mxu0
    %v4078 = vpop.f32.mrb[0].mxu0
    %v4079 = vadd.f32 %v3943, %v4078
    %v4080 = vpop.f32.mrb[0].mxu0
    %4081 = vmatprep.mubr.bf16.mxu0 %v3903
    %4082 = vmatmul.mubr.bf16.gmra.mrb[0].mxu0 %v3902
    %v4083 = vpop.f32.mrb[0].mxu0
    %v4084 = vadd.f32 %v3943, %v4083
    %v4085 = vpop.f32.mrb[0].mxu0
    %v4086 = vpop.f32.mrb[0].mxu0
    %v4087 = vadd.f32 %v3943, %v4086
    %v4088 = vpop.f32.mrb[0].mxu0
    %4089 = vdwg.mxu0
    %v4090 = vadd.f32 %v4076, %v3613
    %v4091 = vadd.f32 %v4079, %v3616
    %v4092 = vadd.f32 %v4084, %v3621
    %v4093 = vadd.f32 %v4087, %v3624
    %s4094 = scalar_lea.vmem [#allocation33], 32
    %4095 = vst [vmem:[%s4094] sm:$0xff] %v4090
    %4096 = vst [vmem:[%s4094 + $0x8] sm:$0xff] %v4091
    %4097 = vst [vmem:[%s4094 + $0x10] sm:$0xff] %v4092
    %4098 = vst [vmem:[%s4094 + $0x18] sm:$0xff] %v4093
    %v4099 = vld [vmem:[#allocation29] sm:$0x1]
    %v4100 = vld [vmem:[#allocation31] sm:$0x1]
    %4101 = vadd.xlane.f32.xlu0 %v4090
    %v4102 = vpop.xlane.xlu0 %4101
    %4103 = vadd.xlane.f32.xlu0 %v4091
    %v4104 = vpop.xlane.xlu0 %4103
    %4105 = vadd.xlane.f32.xlu0 %v4092
    %v4106 = vpop.xlane.xlu0 %4105
    %4107 = vadd.xlane.f32.xlu0 %v4093
    %v4108 = vpop.xlane.xlu0 %4107
    %v4109 = vmul.f32 %v4102, %v437
    %v4110 = vmul.f32 %v4104, %v437
    %v4111 = vmul.f32 %v4106, %v437
    %v4112 = vmul.f32 %v4108, %v437
    %v4113 = vsub.f32 %v4090, %v4109
    %v4114 = vsub.f32 %v4091, %v4110
    %v4115 = vsub.f32 %v4092, %v4111
    %v4116 = vsub.f32 %v4093, %v4112
    %v4117 = vmul.f32 %v4113, %v4113
    %v4118 = vmul.f32 %v4114, %v4114
    %v4119 = vmul.f32 %v4115, %v4115
    %v4120 = vmul.f32 %v4116, %v4116
    %4121 = vadd.xlane.f32.xlu0 %v4117
    %v4122 = vpop.xlane.xlu0 %4121
    %4123 = vadd.xlane.f32.xlu0 %v4118
    %v4124 = vpop.xlane.xlu0 %4123
    %4125 = vadd.xlane.f32.xlu0 %v4119
    %v4126 = vpop.xlane.xlu0 %4125
    %4127 = vadd.xlane.f32.xlu0 %v4120
    %v4128 = vpop.xlane.xlu0 %4127
    %v4129 = vmul.f32 %v4122, %v437
    %v4130 = vmul.f32 %v4124, %v437
    %v4131 = vmul.f32 %v4126, %v437
    %v4132 = vmul.f32 %v4128, %v437
    %v4133 = vadd.f32 %v4129, 1e-05
    %v4134 = vadd.f32 %v4130, 1e-05
    %v4135 = vadd.f32 %v4131, 1e-05
    %v4136 = vadd.f32 %v4132, 1e-05
    %v4137 = vrsqrt.pop %v4133
    %v4138 = vrsqrt.pop %v4134
    %v4139 = vrsqrt.pop %v4135
    %v4140 = vrsqrt.pop %v4136
    %v4141 = vmul.f32 %v4113, %v4137
    %v4142 = vmul.f32 %v4114, %v4138
    %v4143 = vmul.f32 %v4115, %v4139
    %v4144 = vmul.f32 %v4116, %v4140
    %v4146 = vlaneseq
    %v4147 = vshrl.u32 %v4146, 7
    %v4148 = vsub.s32 0, %v4147
    %v4149 = vrot.slane %v4099, %v4148
    %v4151 = vmul.f32 %v4141, %v4149
    %v4152 = vmul.f32 %v4142, %v4149
    %v4153 = vmul.f32 %v4143, %v4149
    %v4154 = vmul.f32 %v4144, %v4149
    %v4156 = vlaneseq
    %v4157 = vshrl.u32 %v4156, 7
    %v4158 = vsub.s32 0, %v4157
    %v4159 = vrot.slane %v4100, %v4158
    %v4161 = vadd.f32 %v4151, %v4159
    %v4162 = vadd.f32 %v4152, %v4159
    %v4163 = vadd.f32 %v4153, %v4159
    %v4164 = vadd.f32 %v4154, %v4159
    %4165 = vst [vmem:[#allocation32] sm:$0xff] %v4161
    %4166 = vst [vmem:[#allocation32 + $0x8] sm:$0xff] %v4162
    %4167 = vst [vmem:[#allocation32 + $0x10] sm:$0xff] %v4163
    %4168 = vst [vmem:[#allocation32 + $0x18] sm:$0xff] %v4164
    // Predicated region
    $region154: #{tpu_custom_call.1} parent=1 // pred_check
      _
    $region155: #{tpu_custom_call.1} parent=1 // pred_check_branch
      %4170 = sbr.rel (0) target = $region157
    $region156: #{tpu_custom_call.1} parent=1 // pred_region
      %s4172 = ssub.s32 512, 512
      %4173 = vsyncadd [#allocation4], %s4172
      %s4174 = sshll.u32 [#allocation32], 4
      %s4175 = int_to_ptr.vmem [resolvable:$true] %s4174
      %4180 = dma.vmem_to_hbm [thread:$0]  %s4175, 512, %s19, [#allocation4], 128, 128, 8
    $region157: #{tpu_custom_call.1} parent=1 // pred_fallthru
      _
    // Predicated region
    $region158: #{tpu_custom_call.1} parent=1 // pred_check
      _
    $region159: #{tpu_custom_call.1} parent=1 // pred_check_branch
      %4182 = sbr.rel (0) target = $region161
    $region160: #{tpu_custom_call.1} parent=1 // pred_region
      %s4184 = ssub.s32 1024, 1024
      %4185 = vsyncadd [#allocation34], %s4184
      %s4186 = sshll.u32 [#allocation33], 4
      %s4187 = int_to_ptr.vmem [resolvable:$true] %s4186
      %4192 = dma.vmem_to_hbm [thread:$0]  %s4187, 1024, %s20, [#allocation34], 128, 128, 8
    $region161: #{tpu_custom_call.1} parent=1 // pred_fallthru
      _
    // Predicated region
    $region162: #{tpu_custom_call.1} parent=1 // pred_check
      _
    $region163: #{tpu_custom_call.1} parent=1 // pred_check_branch
      %4194 = sbr.rel (0) target = $region165
    $region164: #{tpu_custom_call.1} parent=1 // pred_region
      %4195 = dma.done [#allocation4], 512
    $region165: #{tpu_custom_call.1} parent=1 // pred_fallthru
      _
    // Predicated region
    $region166: #{tpu_custom_call.1} parent=1 // pred_check
      _
    $region167: #{tpu_custom_call.1} parent=1 // pred_check_branch
      %4197 = sbr.rel (0) target = $region169
    $region168: #{tpu_custom_call.1} parent=1 // pred_region
      %4198 = dma.done [#allocation34], 1024
    $region169: #{tpu_custom_call.1} parent=1 // pred_fallthru
      _
    %4199 = vsyncpa [#allocation3], 1
    %4200 = vsyncpa [#allocation6], 1
    %4201 = vsyncpa [#allocation9], 1
    %4202 = vsyncpa [#allocation12], 1
    %4203 = vsyncpa [#allocation15], 1
    %4204 = vsyncpa [#allocation18], 1
    %4205 = vsyncpa [#allocation21], 1
    %4206 = vsyncpa [#allocation24], 1
    %4207 = vsyncpa [#allocation27], 1
    %4208 = vsyncpa [#allocation30], 1
    %4209 = vsyncpa [#allocation4], 1
    %4210 = vsyncpa [#allocation34], 1

</llo_original>
